<compile_context>
chip_gen: v7x
topology: tpu7x:2x2x1
jax: 0.10.0
libtpu: 0.0.40
codegen_flags: <defaults>
</compile_context>

<pallas_src>
import functools

import jax
import jax.numpy as jnp
from jax.experimental import pallas as pl
from jax.experimental.pallas import tpu as pltpu


# ------------------------------ Pallas kernel ------------------------------- #

def _correlation_kernel(e_ref, q_ref, wl_ref, wc_ref, b_ref, o_ref, xpad_ref, *, H, W):
    """One batch element.
    e_ref : (1, P, C)  exemplar, position-major (p = h*W + w)
    q_ref : (1, P, C)  query, position-major
    wl_ref: (C, C)     linear_e weight, already transposed (corr = E @ wl)
    wc_ref: (9, C, C)  3x3 conv weights (BN-folded), tap t = dy*3 + dx, (Cin, Cout)
    b_ref : (1, C)     BN-folded bias
    o_ref : (1, H, W, C)
    xpad_ref: VMEM scratch (H+2, W+16, C) for the zero-padded conv input
              (image stored at column offset 8 so the store is sublane-aligned).
    """
    P = H * W
    C = e_ref.shape[2]

    E = e_ref[0]          # (P, C)
    Qt = q_ref[0]         # (P, C)

    # exemplar_corr = exemplar^T @ W_l^T                              (MXU)
    corr = jnp.dot(E, wl_ref[...], preferred_element_type=jnp.float32)      # (P, C)

    # A[p_e, p_q] = sum_c corr[p_e, c] * query[c, p_q]                (MXU, rhs^T)
    A = jax.lax.dot_general(corr, Qt, (((1,), (1,)), ((), ())),
                            preferred_element_type=jnp.float32)             # (P, P)

    # softmax over query positions (last axis); normalization is factored out
    # of the readout matmul: att = (exp(A - max) @ Q) * 1/rowsum.
    A = jnp.exp(A - jnp.max(A, axis=-1, keepdims=True))
    denom = jnp.sum(A, axis=-1, keepdims=True)                              # (P, 1)

    # exemplar_att^T (unnormalized) = exp(A) @ query^T                 (MXU)
    attT = jnp.dot(A, Qt, preferred_element_type=jnp.float32)               # (P, C)
    attT = attT * pl.reciprocal(denom)                                      # normalize (P,C), not (P,P)

    # Zero-padded conv input in VMEM: rows 1..H, cols 8..8+W-1 hold the image.
    xpad_ref[...] = jnp.zeros_like(xpad_ref)
    xpad_ref[1:H + 1, 8:8 + W, :] = attT.reshape(H, W, C)
    xp = xpad_ref[...]                                                       # (H+2, W+16, C)

    # 3x3 conv (BN pre-folded) as 9 per-tap MXU dots over channels.
    # Only the 3 column-shifted views are sublane-misaligned slices; the row
    # taps are free leading-dim slices of those views.
    acc = None
    for dx in range(3):
        col = xp[:, 7 + dx:7 + dx + W, :]                                   # (H+2, W, C)
        for dy in range(3):
            patch = col[dy:dy + H].reshape(P, C)
            t = jnp.dot(patch, wc_ref[dy * 3 + dx],
                        preferred_element_type=jnp.float32)
            acc = t if acc is None else acc + t

    acc = acc + b_ref[...]                        # (1, C) broadcast, BN-folded bias
    acc = jnp.where(acc >= 0, acc, 0.1 * acc)     # LeakyReLU(0.1)
    o_ref[0, :, :, :] = acc.reshape(H, W, C).astype(o_ref.dtype)


# -------------------------------- Wrapper ----------------------------------- #

def correlation_forward(params, exemplar, query):
    """exemplar, query: NCHW float32. Returns NCHW float32."""
    N, C, H, W = exemplar.shape
    P = H * W

    # NCHW -> (N, P, C) position-major (same p = h*W + w ordering as torch .view)
    e_pc = jnp.transpose(exemplar, (0, 2, 3, 1)).reshape(N, P, C).astype(jnp.float32)
    q_pc = jnp.transpose(query, (0, 2, 3, 1)).reshape(N, P, C).astype(jnp.float32)

    # nn.Linear(C, C, bias=False): y = x @ W^T  -> pass W^T
    wl_t = jnp.transpose(params["linear_w"]).astype(jnp.float32)             # (C, C)

    # Fold eval-mode BatchNorm2d into the (bias-free) conv.
    scale = params["bn_gamma"] / jnp.sqrt(params["bn_var"] + params["bn_eps"])   # (C,)
    w_hwio = jnp.transpose(params["conv_w"], (2, 3, 1, 0))                   # (3,3,Cin,Cout)
    w_taps = (w_hwio * scale[None, None, None, :]).reshape(9, C, C).astype(jnp.float32)
    bias = (params["bn_beta"] - params["bn_mean"] * scale).reshape(1, C).astype(jnp.float32)

    kernel = functools.partial(_correlation_kernel, H=H, W=W)

    out_nhwc = pl.pallas_call(
        kernel,
        out_shape=jax.ShapeDtypeStruct((N, H, W, C), jnp.float32),
        grid=(N,),
        in_specs=[
            pl.BlockSpec((1, P, C), lambda n: (n, 0, 0)),
            pl.BlockSpec((1, P, C), lambda n: (n, 0, 0)),
            pl.BlockSpec((C, C), lambda n: (0, 0)),
            pl.BlockSpec((9, C, C), lambda n: (0, 0, 0)),
            pl.BlockSpec((1, C), lambda n: (0, 0)),
        ],
        out_specs=pl.BlockSpec((1, H, W, C), lambda n: (n, 0, 0, 0)),
        scratch_shapes=[pltpu.VMEM((H + 2, W + 16, C), jnp.float32)],
        compiler_params=pltpu.CompilerParams(
            dimension_semantics=("parallel",),
            vmem_limit_bytes=32 * 1024 * 1024,
        ),
    )(e_pc, q_pc, wl_t, w_taps, bias)

    return jnp.transpose(out_nhwc, (0, 3, 1, 2))


# ----------------------------- Parameters ------------------------------------ #

def init_params(key, channels):
    k1, k2, k3, k4, k5, k6 = jax.random.split(key, 6)
    lin_bound = 1.0 / float(channels) ** 0.5
    conv_bound = 1.0 / float(channels * 9) ** 0.5
    return {
        "linear_w": jax.random.uniform(k1, (channels, channels), jnp.float32,
                                       -lin_bound, lin_bound),
        "conv_w": jax.random.uniform(k2, (channels, channels, 3, 3), jnp.float32,
                                     -conv_bound, conv_bound),
        "bn_gamma": jax.random.uniform(k3, (channels,), jnp.float32, 0.5, 1.5),
        "bn_beta": 0.1 * jax.random.normal(k4, (channels,), jnp.float32),
        "bn_mean": 0.1 * jax.random.normal(k5, (channels,), jnp.float32),
        "bn_var": jax.random.uniform(k6, (channels,), jnp.float32, 0.5, 1.5),
        "bn_eps": 1e-5,
    }


# --------------------------- Pure-JAX reference ------------------------------ #

def correlation_ref(params, exemplar, query):
    N, C, H, W = exemplar.shape
    P = H * W
    hp = jax.lax.Precision.HIGHEST
    ex_flat = exemplar.reshape(N, C, P)
    q_flat = query.reshape(N, C, P)
    ex_t = jnp.swapaxes(ex_flat, 1, 2)                                    # (N, P, C)
    corr = jnp.einsum("npc,dc->npd", ex_t, params["linear_w"], precision=hp)
    A = jnp.einsum("npc,ncq->npq", corr, q_flat, precision=hp)            # (N, Pe, Pq)
    Bm = jax.nn.softmax(jnp.swapaxes(A, 1, 2), axis=1)                    # (N, Pq, Pe)
    att = jnp.einsum("ncq,nqp->ncp", q_flat, Bm, precision=hp)            # (N, C, Pe)
    att = att.reshape(N, C, H, W)
    out = jax.lax.conv_general_dilated(
        att, params["conv_w"], window_strides=(1, 1), padding=((1, 1), (1, 1)),
        dimension_numbers=("NCHW", "OIHW", "NCHW"), precision=hp)
    scale = params["bn_gamma"] / jnp.sqrt(params["bn_var"] + params["bn_eps"])
    out = (out - params["bn_mean"][None, :, None, None]) * scale[None, :, None, None] \
        + params["bn_beta"][None, :, None, None]
    return jnp.where(out >= 0, out, 0.1 * out)


# ----------------------------------- main ------------------------------------ #

if __name__ == "__main__":
    key = jax.random.PRNGKey(0)
    k_e, k_q, k_p = jax.random.split(key, 3)

    N, C, H, W = 2, 64, 16, 16        # all_channel = 64 (module default)
    exemplar = 0.5 * jax.random.normal(k_e, (N, C, H, W), jnp.float32)
    query = 0.5 * jax.random.normal(k_q, (N, C, H, W), jnp.float32)
    params = init_params(k_p, C)

    fwd = jax.jit(correlation_forward)
    out = jax.block_until_ready(fwd(params, exemplar, query))
    ref = jax.block_until_ready(correlation_ref(params, exemplar, query))

    assert out.shape == (N, C, H, W), out.shape
    max_err = float(jnp.max(jnp.abs(out - ref)))
    assert jnp.allclose(out, ref, atol=1e-2, rtol=1e-2), max_err
    print("KERNEL_OK")
</pallas_src>

<mosaic_0001>
module attributes {stable_mosaic.version = 11 : i64} {
  func.func @_correlation_kernel(%arg0: i32, %arg1: memref<1x256x64xf32, #tpu.memory_space<vmem>>, %arg2: memref<1x256x64xf32, #tpu.memory_space<vmem>>, %arg3: memref<64x64xf32, #tpu.memory_space<vmem>>, %arg4: memref<9x64x64xf32, #tpu.memory_space<vmem>>, %arg5: memref<1x64xf32, #tpu.memory_space<vmem>>, %arg6: memref<1x16x16x64xf32, #tpu.memory_space<vmem>>, %arg7: memref<18x32x64xf32, #tpu.memory_space<vmem>>) attributes {dimension_semantics = [#tpu.dimension_semantics<parallel>], iteration_bounds = array<i64: 2>, scalar_prefetch = 0 : i64, scratch_operands = 1 : i64, tpu.core_type = #tpu.core_type<tc>, window_params = [{transform_indices = @transform_0, window_bounds = array<i64: 1, 256, 64>}, {transform_indices = @transform_1, window_bounds = array<i64: 1, 256, 64>}, {pipeline_mode = #tpu.pipeline_mode<synchronous>, transform_indices = @transform_2, window_bounds = array<i64: 64, 64>}, {pipeline_mode = #tpu.pipeline_mode<synchronous>, transform_indices = @transform_3, window_bounds = array<i64: 9, 64, 64>}, {pipeline_mode = #tpu.pipeline_mode<synchronous>, transform_indices = @transform_4, window_bounds = array<i64: 1, 64>}, {transform_indices = @transform_5, window_bounds = array<i64: 1, 16, 16, 64>}]} {
    %c0 = arith.constant 0 : index
    %c0_0 = arith.constant 0 : index
    %c0_1 = arith.constant 0 : index
    %0 = vector.load %arg1[%c0, %c0_0, %c0_1] : memref<1x256x64xf32, #tpu.memory_space<vmem>>, vector<1x256x64xf32>
    %1 = vector.shape_cast %0 : vector<1x256x64xf32> to vector<256x64xf32>
    %c0_2 = arith.constant 0 : index
    %c0_3 = arith.constant 0 : index
    %c0_4 = arith.constant 0 : index
    %2 = vector.load %arg2[%c0_2, %c0_3, %c0_4] : memref<1x256x64xf32, #tpu.memory_space<vmem>>, vector<1x256x64xf32>
    %3 = vector.shape_cast %2 : vector<1x256x64xf32> to vector<256x64xf32>
    %c0_5 = arith.constant 0 : index
    %c0_6 = arith.constant 0 : index
    %4 = vector.load %arg3[%c0_5, %c0_6] : memref<64x64xf32, #tpu.memory_space<vmem>>, vector<64x64xf32>
    %cst = arith.constant dense<0.000000e+00> : vector<256x64xf32>
    %5 = tpu.matmul %1, %4, %cst {dimension_numbers = #tpu.dot_dimension_numbers<[1], [0], [0], [1], [0, 0, 1, 1], [], []>} : vector<256x64xf32>, vector<64x64xf32>, vector<256x64xf32> -> vector<256x64xf32>
    %cst_7 = arith.constant dense<0.000000e+00> : vector<256x256xf32>
    %6 = tpu.matmul %5, %3, %cst_7 {dimension_numbers = #tpu.dot_dimension_numbers<[1], [1], [0], [0], [0, 0, 1, 0], [], []>} : vector<256x64xf32>, vector<256x64xf32>, vector<256x256xf32> -> vector<256x256xf32>
    %cst_8 = arith.constant dense<0xFF800000> : vector<256xf32>
    %7 = vector.multi_reduction <maximumf>, %6, %cst_8 [1] : vector<256x256xf32> to vector<256xf32>
    %8 = vector.shape_cast %7 : vector<256xf32> to vector<256x1xf32>
    %9 = vector.broadcast %8 : vector<256x1xf32> to vector<256x256xf32>
    %10 = arith.subf %6, %9 : vector<256x256xf32>
    %11 = math.exp %10 : vector<256x256xf32>
    %cst_9 = arith.constant dense<0.000000e+00> : vector<256xf32>
    %12 = vector.multi_reduction <add>, %11, %cst_9 [1] : vector<256x256xf32> to vector<256xf32>
    %13 = vector.shape_cast %12 : vector<256xf32> to vector<256x1xf32>
    %cst_10 = arith.constant dense<0.000000e+00> : vector<256x64xf32>
    %14 = tpu.matmul %11, %3, %cst_10 {dimension_numbers = #tpu.dot_dimension_numbers<[1], [0], [0], [1], [0, 0, 1, 1], [], []>} : vector<256x256xf32>, vector<256x64xf32>, vector<256x64xf32> -> vector<256x64xf32>
    %15 = tpu.reciprocal %13 : vector<256x1xf32> -> vector<256x1xf32>
    %16 = vector.broadcast %15 : vector<256x1xf32> to vector<256x64xf32>
    %17 = arith.mulf %14, %16 : vector<256x64xf32>
    %cst_11 = arith.constant 0.000000e+00 : f32
    %18 = vector.broadcast %cst_11 : f32 to vector<18x32x64xf32>
    %c0_12 = arith.constant 0 : index
    %c0_13 = arith.constant 0 : index
    %c0_14 = arith.constant 0 : index
    %19 = vector.load %arg7[%c0_12, %c0_13, %c0_14] : memref<18x32x64xf32, #tpu.memory_space<vmem>>, vector<18x32x64xf32>
    tpu.vector_store %arg7[%c0_12, %c0_13, %c0_14], %18 {strides = array<i32>} : memref<18x32x64xf32, #tpu.memory_space<vmem>>, vector<18x32x64xf32>,
    %20 = vector.shape_cast %17 : vector<256x64xf32> to vector<16x16x64xf32>
    %c1 = arith.constant 1 : index
    %c8 = arith.constant 8 : index
    %c0_15 = arith.constant 0 : index
    %21 = vector.load %arg7[%c1, %c8, %c0_15] : memref<18x32x64xf32, #tpu.memory_space<vmem>>, vector<16x16x64xf32>
    tpu.vector_store %arg7[%c1, %c8, %c0_15], %20 {strides = array<i32>} : memref<18x32x64xf32, #tpu.memory_space<vmem>>, vector<16x16x64xf32>,
    %c0_16 = arith.constant 0 : index
    %c0_17 = arith.constant 0 : index
    %c0_18 = arith.constant 0 : index
    %22 = vector.load %arg7[%c0_16, %c0_17, %c0_18] : memref<18x32x64xf32, #tpu.memory_space<vmem>>, vector<18x32x64xf32>
    %23 = vector.extract_strided_slice %22 {offsets = [0, 7, 0], sizes = [18, 16, 64], strides = [1, 1, 1]} : vector<18x32x64xf32> to vector<18x16x64xf32>
    %24 = vector.extract_strided_slice %23 {offsets = [0, 0, 0], sizes = [16, 16, 64], strides = [1, 1, 1]} : vector<18x16x64xf32> to vector<16x16x64xf32>
    %25 = vector.shape_cast %24 : vector<16x16x64xf32> to vector<256x64xf32>
    %c0_19 = arith.constant 0 : index
    %c0_20 = arith.constant 0 : index
    %c0_21 = arith.constant 0 : index
    %26 = vector.load %arg4[%c0_19, %c0_20, %c0_21] : memref<9x64x64xf32, #tpu.memory_space<vmem>>, vector<1x64x64xf32>
    %27 = vector.shape_cast %26 : vector<1x64x64xf32> to vector<64x64xf32>
    %cst_22 = arith.constant dense<0.000000e+00> : vector<256x64xf32>
    %28 = tpu.matmul %25, %27, %cst_22 {dimension_numbers = #tpu.dot_dimension_numbers<[1], [0], [0], [1], [0, 0, 1, 1], [], []>} : vector<256x64xf32>, vector<64x64xf32>, vector<256x64xf32> -> vector<256x64xf32>
    %29 = vector.extract_strided_slice %23 {offsets = [1, 0, 0], sizes = [16, 16, 64], strides = [1, 1, 1]} : vector<18x16x64xf32> to vector<16x16x64xf32>
    %30 = vector.shape_cast %29 : vector<16x16x64xf32> to vector<256x64xf32>
    %c3 = arith.constant 3 : index
    %c0_23 = arith.constant 0 : index
    %c0_24 = arith.constant 0 : index
    %31 = vector.load %arg4[%c3, %c0_23, %c0_24] : memref<9x64x64xf32, #tpu.memory_space<vmem>>, vector<1x64x64xf32>
    %32 = vector.shape_cast %31 : vector<1x64x64xf32> to vector<64x64xf32>
    %cst_25 = arith.constant dense<0.000000e+00> : vector<256x64xf32>
    %33 = tpu.matmul %30, %32, %cst_25 {dimension_numbers = #tpu.dot_dimension_numbers<[1], [0], [0], [1], [0, 0, 1, 1], [], []>} : vector<256x64xf32>, vector<64x64xf32>, vector<256x64xf32> -> vector<256x64xf32>
    %34 = arith.addf %28, %33 : vector<256x64xf32>
    %35 = vector.extract_strided_slice %23 {offsets = [2, 0, 0], sizes = [16, 16, 64], strides = [1, 1, 1]} : vector<18x16x64xf32> to vector<16x16x64xf32>
    %36 = vector.shape_cast %35 : vector<16x16x64xf32> to vector<256x64xf32>
    %c6 = arith.constant 6 : index
    %c0_26 = arith.constant 0 : index
    %c0_27 = arith.constant 0 : index
    %37 = vector.load %arg4[%c6, %c0_26, %c0_27] : memref<9x64x64xf32, #tpu.memory_space<vmem>>, vector<1x64x64xf32>
    %38 = vector.shape_cast %37 : vector<1x64x64xf32> to vector<64x64xf32>
    %cst_28 = arith.constant dense<0.000000e+00> : vector<256x64xf32>
    %39 = tpu.matmul %36, %38, %cst_28 {dimension_numbers = #tpu.dot_dimension_numbers<[1], [0], [0], [1], [0, 0, 1, 1], [], []>} : vector<256x64xf32>, vector<64x64xf32>, vector<256x64xf32> -> vector<256x64xf32>
    %40 = arith.addf %34, %39 : vector<256x64xf32>
    %41 = vector.extract_strided_slice %22 {offsets = [0, 8, 0], sizes = [18, 16, 64], strides = [1, 1, 1]} : vector<18x32x64xf32> to vector<18x16x64xf32>
    %42 = vector.extract_strided_slice %41 {offsets = [0, 0, 0], sizes = [16, 16, 64], strides = [1, 1, 1]} : vector<18x16x64xf32> to vector<16x16x64xf32>
    %43 = vector.shape_cast %42 : vector<16x16x64xf32> to vector<256x64xf32>
    %c1_29 = arith.constant 1 : index
    %c0_30 = arith.constant 0 : index
    %c0_31 = arith.constant 0 : index
    %44 = vector.load %arg4[%c1_29, %c0_30, %c0_31] : memref<9x64x64xf32, #tpu.memory_space<vmem>>, vector<1x64x64xf32>
    %45 = vector.shape_cast %44 : vector<1x64x64xf32> to vector<64x64xf32>
    %cst_32 = arith.constant dense<0.000000e+00> : vector<256x64xf32>
    %46 = tpu.matmul %43, %45, %cst_32 {dimension_numbers = #tpu.dot_dimension_numbers<[1], [0], [0], [1], [0, 0, 1, 1], [], []>} : vector<256x64xf32>, vector<64x64xf32>, vector<256x64xf32> -> vector<256x64xf32>
    %47 = arith.addf %40, %46 : vector<256x64xf32>
    %48 = vector.extract_strided_slice %41 {offsets = [1, 0, 0], sizes = [16, 16, 64], strides = [1, 1, 1]} : vector<18x16x64xf32> to vector<16x16x64xf32>
    %49 = vector.shape_cast %48 : vector<16x16x64xf32> to vector<256x64xf32>
    %c4 = arith.constant 4 : index
    %c0_33 = arith.constant 0 : index
    %c0_34 = arith.constant 0 : index
    %50 = vector.load %arg4[%c4, %c0_33, %c0_34] : memref<9x64x64xf32, #tpu.memory_space<vmem>>, vector<1x64x64xf32>
    %51 = vector.shape_cast %50 : vector<1x64x64xf32> to vector<64x64xf32>
    %cst_35 = arith.constant dense<0.000000e+00> : vector<256x64xf32>
    %52 = tpu.matmul %49, %51, %cst_35 {dimension_numbers = #tpu.dot_dimension_numbers<[1], [0], [0], [1], [0, 0, 1, 1], [], []>} : vector<256x64xf32>, vector<64x64xf32>, vector<256x64xf32> -> vector<256x64xf32>
    %53 = arith.addf %47, %52 : vector<256x64xf32>
    %54 = vector.extract_strided_slice %41 {offsets = [2, 0, 0], sizes = [16, 16, 64], strides = [1, 1, 1]} : vector<18x16x64xf32> to vector<16x16x64xf32>
    %55 = vector.shape_cast %54 : vector<16x16x64xf32> to vector<256x64xf32>
    %c7 = arith.constant 7 : index
    %c0_36 = arith.constant 0 : index
    %c0_37 = arith.constant 0 : index
    %56 = vector.load %arg4[%c7, %c0_36, %c0_37] : memref<9x64x64xf32, #tpu.memory_space<vmem>>, vector<1x64x64xf32>
    %57 = vector.shape_cast %56 : vector<1x64x64xf32> to vector<64x64xf32>
    %cst_38 = arith.constant dense<0.000000e+00> : vector<256x64xf32>
    %58 = tpu.matmul %55, %57, %cst_38 {dimension_numbers = #tpu.dot_dimension_numbers<[1], [0], [0], [1], [0, 0, 1, 1], [], []>} : vector<256x64xf32>, vector<64x64xf32>, vector<256x64xf32> -> vector<256x64xf32>
    %59 = arith.addf %53, %58 : vector<256x64xf32>
    %60 = vector.extract_strided_slice %22 {offsets = [0, 9, 0], sizes = [18, 16, 64], strides = [1, 1, 1]} : vector<18x32x64xf32> to vector<18x16x64xf32>
    %61 = vector.extract_strided_slice %60 {offsets = [0, 0, 0], sizes = [16, 16, 64], strides = [1, 1, 1]} : vector<18x16x64xf32> to vector<16x16x64xf32>
    %62 = vector.shape_cast %61 : vector<16x16x64xf32> to vector<256x64xf32>
    %c2 = arith.constant 2 : index
    %c0_39 = arith.constant 0 : index
    %c0_40 = arith.constant 0 : index
    %63 = vector.load %arg4[%c2, %c0_39, %c0_40] : memref<9x64x64xf32, #tpu.memory_space<vmem>>, vector<1x64x64xf32>
    %64 = vector.shape_cast %63 : vector<1x64x64xf32> to vector<64x64xf32>
    %cst_41 = arith.constant dense<0.000000e+00> : vector<256x64xf32>
    %65 = tpu.matmul %62, %64, %cst_41 {dimension_numbers = #tpu.dot_dimension_numbers<[1], [0], [0], [1], [0, 0, 1, 1], [], []>} : vector<256x64xf32>, vector<64x64xf32>, vector<256x64xf32> -> vector<256x64xf32>
    %66 = arith.addf %59, %65 : vector<256x64xf32>
    %67 = vector.extract_strided_slice %60 {offsets = [1, 0, 0], sizes = [16, 16, 64], strides = [1, 1, 1]} : vector<18x16x64xf32> to vector<16x16x64xf32>
    %68 = vector.shape_cast %67 : vector<16x16x64xf32> to vector<256x64xf32>
    %c5 = arith.constant 5 : index
    %c0_42 = arith.constant 0 : index
    %c0_43 = arith.constant 0 : index
    %69 = vector.load %arg4[%c5, %c0_42, %c0_43] : memref<9x64x64xf32, #tpu.memory_space<vmem>>, vector<1x64x64xf32>
    %70 = vector.shape_cast %69 : vector<1x64x64xf32> to vector<64x64xf32>
    %cst_44 = arith.constant dense<0.000000e+00> : vector<256x64xf32>
    %71 = tpu.matmul %68, %70, %cst_44 {dimension_numbers = #tpu.dot_dimension_numbers<[1], [0], [0], [1], [0, 0, 1, 1], [], []>} : vector<256x64xf32>, vector<64x64xf32>, vector<256x64xf32> -> vector<256x64xf32>
    %72 = arith.addf %66, %71 : vector<256x64xf32>
    %73 = vector.extract_strided_slice %60 {offsets = [2, 0, 0], sizes = [16, 16, 64], strides = [1, 1, 1]} : vector<18x16x64xf32> to vector<16x16x64xf32>
    %74 = vector.shape_cast %73 : vector<16x16x64xf32> to vector<256x64xf32>
    %c8_45 = arith.constant 8 : index
    %c0_46 = arith.constant 0 : index
    %c0_47 = arith.constant 0 : index
    %75 = vector.load %arg4[%c8_45, %c0_46, %c0_47] : memref<9x64x64xf32, #tpu.memory_space<vmem>>, vector<1x64x64xf32>
    %76 = vector.shape_cast %75 : vector<1x64x64xf32> to vector<64x64xf32>
    %cst_48 = arith.constant dense<0.000000e+00> : vector<256x64xf32>
    %77 = tpu.matmul %74, %76, %cst_48 {dimension_numbers = #tpu.dot_dimension_numbers<[1], [0], [0], [1], [0, 0, 1, 1], [], []>} : vector<256x64xf32>, vector<64x64xf32>, vector<256x64xf32> -> vector<256x64xf32>
    %78 = arith.addf %72, %77 : vector<256x64xf32>
    %c0_49 = arith.constant 0 : index
    %c0_50 = arith.constant 0 : index
    %79 = vector.load %arg5[%c0_49, %c0_50] : memref<1x64xf32, #tpu.memory_space<vmem>>, vector<1x64xf32>
    %80 = vector.broadcast %79 : vector<1x64xf32> to vector<256x64xf32>
    %81 = arith.addf %78, %80 : vector<256x64xf32>
    %cst_51 = arith.constant 0.000000e+00 : f32
    %82 = vector.broadcast %cst_51 : f32 to vector<256x64xf32>
    %83 = arith.cmpf oge, %81, %82 : vector<256x64xf32>
    %cst_52 = arith.constant 1.000000e-01 : f32
    %84 = vector.broadcast %cst_52 : f32 to vector<256x64xf32>
    %85 = arith.mulf %84, %81 : vector<256x64xf32>
    %86 = arith.select %83, %81, %85 : vector<256x64xi1>, vector<256x64xf32>
    %87 = vector.shape_cast %86 : vector<256x64xf32> to vector<16x16x64xf32>
    %c0_53 = arith.constant 0 : index
    %c0_54 = arith.constant 0 : index
    %c0_55 = arith.constant 0 : index
    %c0_56 = arith.constant 0 : index
    %88 = vector.load %arg6[%c0_53, %c0_54, %c0_55, %c0_56] : memref<1x16x16x64xf32, #tpu.memory_space<vmem>>, vector<1x16x16x64xf32>
    %89 = vector.shape_cast %88 : vector<1x16x16x64xf32> to vector<16x16x64xf32>
    %90 = vector.shape_cast %87 : vector<16x16x64xf32> to vector<1x16x16x64xf32>
    tpu.vector_store %arg6[%c0_53, %c0_54, %c0_55, %c0_56], %90 {strides = array<i32>} : memref<1x16x16x64xf32, #tpu.memory_space<vmem>>, vector<1x16x16x64xf32>,
    return
  }
  func.func @transform_0(%arg0: i32) -> (i32, i32, i32) {
    %c0_i32 = arith.constant 0 : i32
    %c0_i32_0 = arith.constant 0 : i32
    %c0_i32_1 = arith.constant 0 : i32
    return %arg0, %c0_i32, %c0_i32_0 : i32, i32, i32
  }
  func.func @transform_1(%arg0: i32) -> (i32, i32, i32) {
    %c0_i32 = arith.constant 0 : i32
    %c0_i32_0 = arith.constant 0 : i32
    %c0_i32_1 = arith.constant 0 : i32
    return %arg0, %c0_i32, %c0_i32_0 : i32, i32, i32
  }
  func.func @transform_2(%arg0: i32) -> (i32, i32) {
    %c0_i32 = arith.constant 0 : i32
    %c0_i32_0 = arith.constant 0 : i32
    %c0_i32_1 = arith.constant 0 : i32
    return %c0_i32, %c0_i32_0 : i32, i32
  }
  func.func @transform_3(%arg0: i32) -> (i32, i32, i32) {
    %c0_i32 = arith.constant 0 : i32
    %c0_i32_0 = arith.constant 0 : i32
    %c0_i32_1 = arith.constant 0 : i32
    %c0_i32_2 = arith.constant 0 : i32
    return %c0_i32, %c0_i32_0, %c0_i32_1 : i32, i32, i32
  }
  func.func @transform_4(%arg0: i32) -> (i32, i32) {
    %c0_i32 = arith.constant 0 : i32
    %c0_i32_0 = arith.constant 0 : i32
    %c0_i32_1 = arith.constant 0 : i32
    return %c0_i32, %c0_i32_0 : i32, i32
  }
  func.func @transform_5(%arg0: i32) -> (i32, i32, i32, i32) {
    %c0_i32 = arith.constant 0 : i32
    %c0_i32_0 = arith.constant 0 : i32
    %c0_i32_1 = arith.constant 0 : i32
    %c0_i32_2 = arith.constant 0 : i32
    return %arg0, %c0_i32, %c0_i32_0, %c0_i32_1 : i32, i32, i32, i32
  }
}

</mosaic_0001>

<llo_original>
// kernel: correlation_forward.1
$region0: #{correlation_forward.1}
  #allocation0 [shape = 'u32[]', space=smem, size = 0x4, offset = 0x4, fixed_abs, tag = 'smem constant byte address 0x4 - core index']
  #allocation1 [shape = 'u32[144,128]{1,0:T(1,128)}', space=vmem, size = 0x12000, scoped, tag = 'internal scratch']
  #allocation2 [shape = 'f32[18,32,64]{2,1,0:T(8,128)}', space=vmem, size = 0x48000, scoped, tag = 'scratch operand']
  %s0 = inlined_call_operand.vmem [shape: f32[2,256,64], index: 0, kind: input, shape index: {}]
  %s1 = inlined_call_operand.vmem [shape: f32[2,256,64], index: 1, kind: input, shape index: {}]
  %s2 = inlined_call_operand.vmem [shape: f32[64,64], index: 2, kind: input, shape index: {}]
  %s3 = inlined_call_operand.vmem [shape: f32[9,64,64], index: 3, kind: input, shape index: {}]
  %s4 = inlined_call_operand.vmem [shape: f32[1,64], index: 4, kind: input, shape index: {}]
  %s5 = inlined_call_operand.hbm [shape: f32[2,16,16,64], index: 5, kind: output, shape index: {}]
  %s6 = sld [smem:[#allocation0]]
  $region53: #{correlation_forward.1} parent=0
    _
  %s8 = ssub.s32 1, %s6
  %s9 = scalar_select 0, %s8, %s6
  $region1: #{correlation_forward.1} parent=0
    #allocation3 [shape = 'u8[262144]{0}', space=vmem, size = 0x40000, scoped, tag = 'output window, operand 0']
    #allocation4 [shape = 's32[2]{0}', space=sflag, size = 0x8, scoped, tag = 'scoped memory for correlation_forward.1']
    %10 = vsyncpa [#allocation4], 0
    %s11 = scalar_lea.sflag [#allocation4], 1
    %12 = vsyncpa %s11, 0
    loop: start=0, step=1, limit=4
    $region2: #{correlation_forward.1} parent=1 // loop_pre_header
      _
    $region3: #{correlation_forward.1} parent=1 // loop_header
      %s14 = sphi 0, %s18
      %p15 = scmp.ge.s32.totalorder %s14, 4
      %s24 = sphi 0, %s26
      %s27 = sphi 0, %s24
      %s28 = sphi 0, %s27
      %s44 = sphi 0, %s28
      %s50 = sphi 0, %s52
      %s53 = sphi 0, %s50
      %s54 = sphi 0, %s53
      %s70 = sphi 0, %s54
      %s74 = sphi 0, %s74
      %s76 = sphi 0, %s74
      %s77 = sphi 0, %s76
      %s91 = sphi 0, %s77
      %s95 = sphi 0, %s95
      %s97 = sphi 0, %s95
      %s98 = sphi 0, %s97
      %s112 = sphi 0, %s98
      %s116 = sphi 0, %s116
      %s118 = sphi 0, %s116
      %s119 = sphi 0, %s118
      %s133 = sphi 0, %s119
      %s139 = sphi 0, %s141
      %s142 = sphi 0, %s139
      %s143 = sphi 0, %s142
      %s159 = sphi 0, %s143
    $region4: #{correlation_forward.1} parent=1 // loop_header_branch
      %17 = sbr.rel (%p15) target = $region8
    $region5: #{correlation_forward.1} parent=1 // loop_body
      %s19 = ssub.s32 %s14, 1
      %s20 = ssub.s32 %s14, 2
      %s21 = sadd.s32 %s14, 1
      %s22 = ssub.s32 %s14, %s21
      %p23 = scmp.eq.s32.totalorder %s22, 0
      %s25 = sadd.s32 %s24, 1
      %s26 = scalar_select %p23, %s24, %s25
      %p29 = pneg %p23
      %p30 = scmp.eq.s32.totalorder %s14, 1
      %p31 = por %p29, %p30
      %p32 = scmp.ne.s32.totalorder %s24, %s27
      %p33 = scmp.eq.s32.totalorder %s14, 0
      %p34 = por %p32, %p33
      %p35 = scmp.ne.s32.totalorder %s24, %s27
      %p36 = scmp.eq.s32.totalorder %s19, 1
      %p37 = por %p35, %p36
      %p38 = scmp.ne.s32.totalorder %s27, %s28
      %p39 = scmp.eq.s32.totalorder %s19, 0
      %p40 = por %p38, %p39
      %p41 = scmp.ne.s32.totalorder %s27, %s28
      %p42 = scmp.eq.s32.totalorder %s20, 1
      %p43 = por %p41, %p42
      %p45 = scmp.ne.s32.totalorder %s28, %s44
      %p46 = scmp.eq.s32.totalorder %s20, 0
      %p47 = por %p45, %p46
      %s48 = ssub.s32 %s14, %s21
      %p49 = scmp.eq.s32.totalorder %s48, 0
      %s51 = sadd.s32 %s50, 1
      %s52 = scalar_select %p49, %s50, %s51
      %p55 = pneg %p49
      %p56 = scmp.eq.s32.totalorder %s14, 1
      %p57 = por %p55, %p56
      %p58 = scmp.ne.s32.totalorder %s50, %s53
      %p59 = scmp.eq.s32.totalorder %s14, 0
      %p60 = por %p58, %p59
      %p61 = scmp.ne.s32.totalorder %s50, %s53
      %p62 = scmp.eq.s32.totalorder %s19, 1
      %p63 = por %p61, %p62
      %p64 = scmp.ne.s32.totalorder %s53, %s54
      %p65 = scmp.eq.s32.totalorder %s19, 0
      %p66 = por %p64, %p65
      %p67 = scmp.ne.s32.totalorder %s53, %s54
      %p68 = scmp.eq.s32.totalorder %s20, 1
      %p69 = por %p67, %p68
      %p71 = scmp.ne.s32.totalorder %s54, %s70
      %p72 = scmp.eq.s32.totalorder %s20, 0
      %p73 = por %p71, %p72
      %s75 = sadd.s32 %s74, 1
      %p78 = scmp.eq.s32.totalorder %s14, 1
      %p79 = scmp.ne.s32.totalorder %s74, %s76
      %p80 = scmp.eq.s32.totalorder %s14, 0
      %p81 = por %p79, %p80
      %p82 = scmp.ne.s32.totalorder %s74, %s76
      %p83 = scmp.eq.s32.totalorder %s19, 1
      %p84 = por %p82, %p83
      %p85 = scmp.ne.s32.totalorder %s76, %s77
      %p86 = scmp.eq.s32.totalorder %s19, 0
      %p87 = por %p85, %p86
      %p88 = scmp.ne.s32.totalorder %s76, %s77
      %p89 = scmp.eq.s32.totalorder %s20, 1
      %p90 = por %p88, %p89
      %p92 = scmp.ne.s32.totalorder %s77, %s91
      %p93 = scmp.eq.s32.totalorder %s20, 0
      %p94 = por %p92, %p93
      %s96 = sadd.s32 %s95, 1
      %p99 = scmp.eq.s32.totalorder %s14, 1
      %p100 = scmp.ne.s32.totalorder %s95, %s97
      %p101 = scmp.eq.s32.totalorder %s14, 0
      %p102 = por %p100, %p101
      %p103 = scmp.ne.s32.totalorder %s95, %s97
      %p104 = scmp.eq.s32.totalorder %s19, 1
      %p105 = por %p103, %p104
      %p106 = scmp.ne.s32.totalorder %s97, %s98
      %p107 = scmp.eq.s32.totalorder %s19, 0
      %p108 = por %p106, %p107
      %p109 = scmp.ne.s32.totalorder %s97, %s98
      %p110 = scmp.eq.s32.totalorder %s20, 1
      %p111 = por %p109, %p110
      %p113 = scmp.ne.s32.totalorder %s98, %s112
      %p114 = scmp.eq.s32.totalorder %s20, 0
      %p115 = por %p113, %p114
      %s117 = sadd.s32 %s116, 1
      %p120 = scmp.eq.s32.totalorder %s14, 1
      %p121 = scmp.ne.s32.totalorder %s116, %s118
      %p122 = scmp.eq.s32.totalorder %s14, 0
      %p123 = por %p121, %p122
      %p124 = scmp.ne.s32.totalorder %s116, %s118
      %p125 = scmp.eq.s32.totalorder %s19, 1
      %p126 = por %p124, %p125
      %p127 = scmp.ne.s32.totalorder %s118, %s119
      %p128 = scmp.eq.s32.totalorder %s19, 0
      %p129 = por %p127, %p128
      %p130 = scmp.ne.s32.totalorder %s118, %s119
      %p131 = scmp.eq.s32.totalorder %s20, 1
      %p132 = por %p130, %p131
      %p134 = scmp.ne.s32.totalorder %s119, %s133
      %p135 = scmp.eq.s32.totalorder %s20, 0
      %p136 = por %p134, %p135
      %s137 = ssub.s32 %s14, %s21
      %p138 = scmp.eq.s32.totalorder %s137, 0
      %s140 = sadd.s32 %s139, 1
      %s141 = scalar_select %p138, %s139, %s140
      %p144 = pneg %p138
      %p145 = scmp.eq.s32.totalorder %s14, 1
      %p146 = por %p144, %p145
      %p147 = scmp.ne.s32.totalorder %s139, %s142
      %p148 = scmp.eq.s32.totalorder %s14, 0
      %p149 = por %p147, %p148
      %p150 = scmp.ne.s32.totalorder %s139, %s142
      %p151 = scmp.eq.s32.totalorder %s19, 1
      %p152 = por %p150, %p151
      %p153 = scmp.ne.s32.totalorder %s142, %s143
      %p154 = scmp.eq.s32.totalorder %s19, 0
      %p155 = por %p153, %p154
      %p156 = scmp.ne.s32.totalorder %s142, %s143
      %p157 = scmp.eq.s32.totalorder %s20, 1
      %p158 = por %p156, %p157
      %p160 = scmp.ne.s32.totalorder %s143, %s159
      %p161 = scmp.eq.s32.totalorder %s20, 0
      %p162 = por %p160, %p161
      %p163 = scmp.le.s32.totalorder 1, %s14
      %p164 = scmp.lt.s32.totalorder %s14, 3
      %p165 = pnand %p163, %p164
      %p166 = pneg %p165
      // Predicated region
      $region9: #{correlation_forward.1} parent=5 // pred_check
        _
      $region10: #{correlation_forward.1} parent=5 // pred_check_branch
        %168 = sbr.rel (%p165) target = $region12
      $region11: #{correlation_forward.1} parent=5 // pred_region
        %s169 = ssub.s32 %s14, 1
        // Predicated region
        $region13: #{correlation_forward.1} parent=11 // pred_check
          %p170 = pneg %p87
        $region14: #{correlation_forward.1} parent=11 // pred_check_branch
          %172 = sbr.rel (%p170) target = $region16
        $region15: #{correlation_forward.1} parent=11 // pred_region
          _
        $region16: #{correlation_forward.1} parent=11 // pred_fallthru
          _
        // Predicated region
        $region17: #{correlation_forward.1} parent=11 // pred_check
          %p173 = pneg %p108
        $region18: #{correlation_forward.1} parent=11 // pred_check_branch
          %175 = sbr.rel (%p173) target = $region20
        $region19: #{correlation_forward.1} parent=11 // pred_region
          _
        $region20: #{correlation_forward.1} parent=11 // pred_fallthru
          _
        // Predicated region
        $region21: #{correlation_forward.1} parent=11 // pred_check
          %p176 = pneg %p129
        $region22: #{correlation_forward.1} parent=11 // pred_check_branch
          %178 = sbr.rel (%p176) target = $region24
        $region23: #{correlation_forward.1} parent=11 // pred_region
          _
        $region24: #{correlation_forward.1} parent=11 // pred_fallthru
          _
      $region12: #{correlation_forward.1} parent=5 // pred_fallthru
        _
      %p179 = scmp.lt.s32.totalorder %s14, 2
      // Predicated region
      $region25: #{correlation_forward.1} parent=5 // pred_check
        %p180 = pneg %p179
      $region26: #{correlation_forward.1} parent=5 // pred_check_branch
        %182 = sbr.rel (%p180) target = $region28
      $region27: #{correlation_forward.1} parent=5 // pred_region
        // Predicated region
        $region29: #{correlation_forward.1} parent=27 // pred_check
          %p183 = pneg %p34
        $region30: #{correlation_forward.1} parent=27 // pred_check_branch
          %185 = sbr.rel (%p183) target = $region32
        $region31: #{correlation_forward.1} parent=27 // pred_region
          %p186 = scmp.lt.s32.totalorder %s14, 1
          %s187 = scalar_select %p186, %s14, 1
          %s188 = smul.addr %s187, 32
          %s189 = smul.addr %s188, 8
          %s190 = scalar_lea.vmem %s0, %s189
        $region32: #{correlation_forward.1} parent=27 // pred_fallthru
          _
        // Predicated region
        $region33: #{correlation_forward.1} parent=27 // pred_check
          %p191 = pneg %p60
        $region34: #{correlation_forward.1} parent=27 // pred_check_branch
          %193 = sbr.rel (%p191) target = $region36
        $region35: #{correlation_forward.1} parent=27 // pred_region
          %p194 = scmp.lt.s32.totalorder %s14, 1
          %s195 = scalar_select %p194, %s14, 1
          %s196 = smul.addr %s195, 32
          %s197 = smul.addr %s196, 8
          %s198 = scalar_lea.vmem %s1, %s197
        $region36: #{correlation_forward.1} parent=27 // pred_fallthru
          _
      $region28: #{correlation_forward.1} parent=5 // pred_fallthru
        _
      %p199 = scmp.le.s32.totalorder 1, %s14
      %p200 = scmp.lt.s32.totalorder %s14, 3
      %p201 = pnand %p199, %p200
      %p202 = pneg %p201
      // Predicated region
      $region37: #{correlation_forward.1} parent=5 // pred_check
        _
      $region38: #{correlation_forward.1} parent=5 // pred_check_branch
        %204 = sbr.rel (%p201) target = $region40
      $region39: #{correlation_forward.1} parent=5 // pred_region
        %s205 = ssub.s32 %s14, 1
        %p206 = scmp.lt.s32.totalorder %s19, 1
        %s207 = scalar_select %p206, %s19, 1
        %s208 = smul.addr %s207, 32
        %s209 = smul.addr %s208, 8
        %s210 = scalar_lea.vmem %s0, %s209
        %p211 = pneg %p40
        %p212 = pneg %p37
        %p213 = scmp.lt.s32.totalorder %s19, 1
        %s214 = scalar_select %p213, %s19, 1
        %s215 = smul.addr %s214, 32
        %s216 = smul.addr %s215, 8
        %s217 = scalar_lea.vmem %s1, %s216
        %p218 = pneg %p66
        %p219 = pneg %p63
        %p220 = pneg %p87
        %p221 = pneg %p84
        %p222 = pneg %p108
        %p223 = pneg %p105
        %p224 = pneg %p129
        %p225 = pneg %p126
        %p226 = pneg %p155
        %p227 = pneg %p152
        %s228 = sand.u32 %s142, 1
        %s229 = scalar_lea.sflag [#allocation4], %s228
        %s230 = sand.u32 %s142, 1
        %s231 = smul.addr %s230, 256
        %s232 = scalar_lea.vmem [#allocation3], %s231
        %p233 = scmp.lt.s32.totalorder %s19, 1
        %s234 = scalar_select %p233, %s19, 1
        %s235 = smul.addr %s234, 32
        %s236 = smul.addr %s235, 8
        %s237 = scalar_lea.vmem %s0, %s236
        %p238 = scmp.lt.s32.totalorder %s19, 1
        %s239 = scalar_select %p238, %s19, 1
        %s240 = smul.addr %s239, 32
        %s241 = smul.addr %s240, 8
        %s242 = scalar_lea.vmem %s1, %s241
        %v243 = vld [vmem:[%s237] sm:$0xff]
        %v244 = vld [vmem:[%s237 + $0x8] sm:$0xff]
        %v245 = vld [vmem:[%s237 + $0x10] sm:$0xff]
        %v246 = vld [vmem:[%s237 + $0x18] sm:$0xff]
        %v247 = vld [vmem:[%s237 + $0x20] sm:$0xff]
        %v248 = vld [vmem:[%s237 + $0x28] sm:$0xff]
        %v249 = vld [vmem:[%s237 + $0x30] sm:$0xff]
        %v250 = vld [vmem:[%s237 + $0x38] sm:$0xff]
        %v251 = vld [vmem:[%s237 + $0x40] sm:$0xff]
        %v252 = vld [vmem:[%s237 + $0x48] sm:$0xff]
        %v253 = vld [vmem:[%s237 + $0x50] sm:$0xff]
        %v254 = vld [vmem:[%s237 + $0x58] sm:$0xff]
        %v255 = vld [vmem:[%s237 + $0x60] sm:$0xff]
        %v256 = vld [vmem:[%s237 + $0x68] sm:$0xff]
        %v257 = vld [vmem:[%s237 + $0x70] sm:$0xff]
        %v258 = vld [vmem:[%s237 + $0x78] sm:$0xff]
        %v259 = vld [vmem:[%s237 + $0x80] sm:$0xff]
        %v260 = vld [vmem:[%s237 + $0x88] sm:$0xff]
        %v261 = vld [vmem:[%s237 + $0x90] sm:$0xff]
        %v262 = vld [vmem:[%s237 + $0x98] sm:$0xff]
        %v263 = vld [vmem:[%s237 + $0xa0] sm:$0xff]
        %v264 = vld [vmem:[%s237 + $0xa8] sm:$0xff]
        %v265 = vld [vmem:[%s237 + $0xb0] sm:$0xff]
        %v266 = vld [vmem:[%s237 + $0xb8] sm:$0xff]
        %v267 = vld [vmem:[%s237 + $0xc0] sm:$0xff]
        %v268 = vld [vmem:[%s237 + $0xc8] sm:$0xff]
        %v269 = vld [vmem:[%s237 + $0xd0] sm:$0xff]
        %v270 = vld [vmem:[%s237 + $0xd8] sm:$0xff]
        %v271 = vld [vmem:[%s237 + $0xe0] sm:$0xff]
        %v272 = vld [vmem:[%s237 + $0xe8] sm:$0xff]
        %v273 = vld [vmem:[%s237 + $0xf0] sm:$0xff]
        %v274 = vld [vmem:[%s237 + $0xf8] sm:$0xff]
        %v275 = vld [vmem:[%s242] sm:$0xff]
        %v276 = vld [vmem:[%s242 + $0x8] sm:$0xff]
        %v277 = vld [vmem:[%s242 + $0x10] sm:$0xff]
        %v278 = vld [vmem:[%s242 + $0x18] sm:$0xff]
        %v279 = vld [vmem:[%s242 + $0x20] sm:$0xff]
        %v280 = vld [vmem:[%s242 + $0x28] sm:$0xff]
        %v281 = vld [vmem:[%s242 + $0x30] sm:$0xff]
        %v282 = vld [vmem:[%s242 + $0x38] sm:$0xff]
        %v283 = vld [vmem:[%s242 + $0x40] sm:$0xff]
        %v284 = vld [vmem:[%s242 + $0x48] sm:$0xff]
        %v285 = vld [vmem:[%s242 + $0x50] sm:$0xff]
        %v286 = vld [vmem:[%s242 + $0x58] sm:$0xff]
        %v287 = vld [vmem:[%s242 + $0x60] sm:$0xff]
        %v288 = vld [vmem:[%s242 + $0x68] sm:$0xff]
        %v289 = vld [vmem:[%s242 + $0x70] sm:$0xff]
        %v290 = vld [vmem:[%s242 + $0x78] sm:$0xff]
        %v291 = vld [vmem:[%s242 + $0x80] sm:$0xff]
        %v292 = vld [vmem:[%s242 + $0x88] sm:$0xff]
        %v293 = vld [vmem:[%s242 + $0x90] sm:$0xff]
        %v294 = vld [vmem:[%s242 + $0x98] sm:$0xff]
        %v295 = vld [vmem:[%s242 + $0xa0] sm:$0xff]
        %v296 = vld [vmem:[%s242 + $0xa8] sm:$0xff]
        %v297 = vld [vmem:[%s242 + $0xb0] sm:$0xff]
        %v298 = vld [vmem:[%s242 + $0xb8] sm:$0xff]
        %v299 = vld [vmem:[%s242 + $0xc0] sm:$0xff]
        %v300 = vld [vmem:[%s242 + $0xc8] sm:$0xff]
        %v301 = vld [vmem:[%s242 + $0xd0] sm:$0xff]
        %v302 = vld [vmem:[%s242 + $0xd8] sm:$0xff]
        %v303 = vld [vmem:[%s242 + $0xe0] sm:$0xff]
        %v304 = vld [vmem:[%s242 + $0xe8] sm:$0xff]
        %v305 = vld [vmem:[%s242 + $0xf0] sm:$0xff]
        %v306 = vld [vmem:[%s242 + $0xf8] sm:$0xff]
        %v307 = vld [vmem:[%s2] sm:$0xff]
        %v308 = vld [vmem:[%s2 + $0x8] sm:$0xff]
        %v309 = vld [vmem:[%s2 + $0x10] sm:$0xff]
        %v310 = vld [vmem:[%s2 + $0x18] sm:$0xff]
        %v311 = vld [vmem:[%s2 + $0x20] sm:$0xff]
        %v312 = vld [vmem:[%s2 + $0x28] sm:$0xff]
        %v313 = vld [vmem:[%s2 + $0x30] sm:$0xff]
        %v314 = vld [vmem:[%s2 + $0x38] sm:$0xff]
        %vm315 = vcmask 523264
        %v317 = vsel %vm315, %v243, 0
        %v320 = vsel %vm315, %v244, 0
        %v323 = vsel %vm315, %v245, 0
        %v326 = vsel %vm315, %v246, 0
        %v329 = vsel %vm315, %v247, 0
        %v332 = vsel %vm315, %v248, 0
        %v335 = vsel %vm315, %v249, 0
        %v338 = vsel %vm315, %v250, 0
        %v341 = vsel %vm315, %v251, 0
        %v344 = vsel %vm315, %v252, 0
        %v347 = vsel %vm315, %v253, 0
        %v350 = vsel %vm315, %v254, 0
        %v353 = vsel %vm315, %v255, 0
        %v356 = vsel %vm315, %v256, 0
        %v359 = vsel %vm315, %v257, 0
        %v362 = vsel %vm315, %v258, 0
        %v365 = vsel %vm315, %v259, 0
        %v368 = vsel %vm315, %v260, 0
        %v371 = vsel %vm315, %v261, 0
        %v374 = vsel %vm315, %v262, 0
        %v377 = vsel %vm315, %v263, 0
        %v380 = vsel %vm315, %v264, 0
        %v383 = vsel %vm315, %v265, 0
        %v386 = vsel %vm315, %v266, 0
        %v389 = vsel %vm315, %v267, 0
        %v392 = vsel %vm315, %v268, 0
        %v395 = vsel %vm315, %v269, 0
        %v398 = vsel %vm315, %v270, 0
        %v401 = vsel %vm315, %v271, 0
        %v404 = vsel %vm315, %v272, 0
        %v407 = vsel %vm315, %v273, 0
        %v410 = vsel %vm315, %v274, 0
        %412 = vmatprep.subr.mxu0 0.0
        %413 = vmatpush1.msra.mxu0 %v307
        %414 = vmatprep.subr.mxu0 0.0
        %415 = vmatpush1.msra.mxu0 %v308
        %416 = vmatprep.subr.mxu0 0.0
        %417 = vmatpush1.msra.mxu0 %v309
        %418 = vmatprep.subr.mxu0 0.0
        %419 = vmatpush1.msra.mxu0 %v310
        %420 = vmatprep.subr.mxu0 0.0
        %421 = vmatpush1.msra.mxu0 %v311
        %422 = vmatprep.subr.mxu0 0.0
        %423 = vmatpush1.msra.mxu0 %v312
        %424 = vmatprep.subr.mxu0 0.0
        %425 = vmatpush1.msra.mxu0 %v313
        %426 = vmatprep.subr.mxu0 0.0
        %427 = vmatpush1.msra.mxu0 %v314
        %428 = vmatprep.subr.mxu0 0.0
        %429 = vmatpush1.msra.mxu0 0.0
        %430 = vmatprep.subr.mxu0 0.0
        %431 = vmatpush1.msra.mxu0 0.0
        %432 = vmatprep.subr.mxu0 0.0
        %433 = vmatpush1.msra.mxu0 0.0
        %434 = vmatprep.subr.mxu0 0.0
        %435 = vmatpush1.msra.mxu0 0.0
        %436 = vmatprep.subr.mxu0 0.0
        %437 = vmatpush1.msra.mxu0 0.0
        %438 = vmatprep.subr.mxu0 0.0
        %439 = vmatpush1.msra.mxu0 0.0
        %440 = vmatprep.subr.mxu0 0.0
        %441 = vmatpush1.msra.mxu0 0.0
        %442 = vmatprep.subr.mxu0 0.0
        %443 = vmatpush1.msra.mxu0 0.0
        %444 = vmatprep.subr.mxu0 0.0
        %445 = vmatpush1.msra.mxu0 0.0
        %446 = vmatprep.subr.mxu0 0.0
        %447 = vmatpush1.msra.mxu0 0.0
        %448 = vmatprep.subr.mxu0 0.0
        %449 = vmatpush1.msra.mxu0 0.0
        %450 = vmatprep.subr.mxu0 0.0
        %451 = vmatpush1.msra.mxu0 0.0
        %452 = vmatprep.subr.mxu0 0.0
        %453 = vmatpush1.msra.mxu0 0.0
        %454 = vmatprep.subr.mxu0 0.0
        %455 = vmatpush1.msra.mxu0 0.0
        %456 = vmatprep.subr.mxu0 0.0
        %457 = vmatpush1.msra.mxu0 0.0
        %458 = vmatprep.subr.mxu0 0.0
        %459 = vmatpush1.msra.mxu0 0.0
        %460 = vmatprep.subr.mxu0 0.0
        %461 = vmatpush1.msra.mxu0 0.0
        %462 = vmatprep.subr.mxu0 0.0
        %463 = vmatpush1.msra.mxu0 0.0
        %464 = vmatprep.subr.mxu0 0.0
        %465 = vmatpush1.msra.mxu0 0.0
        %466 = vmatprep.subr.mxu0 0.0
        %467 = vmatpush1.msra.mxu0 0.0
        %468 = vmatprep.subr.mxu0 0.0
        %469 = vmatpush1.msra.mxu0 0.0
        %470 = vmatprep.subr.mxu0 0.0
        %471 = vmatpush1.msra.mxu0 0.0
        %472 = vmatprep.subr.mxu0 0.0
        %473 = vmatpush1.msra.mxu0 0.0
        %474 = vmatprep.subr.mxu0 0.0
        %475 = vmatpush1.msra.mxu0 0.0
        %476 = vmatprep.mubr.f32.mxu0 0.0
        %477 = vmatmul.mubr.f32.gmra.mrb[0].mxu0 %v317
        %v478 = vpop.f32.mrb[0].mxu0
        %v479 = vadd.f32 0.0, %v478
        %v480 = vpop.f32.mrb[0].mxu0
        %481 = vmatprep.mubr.f32.mxu0 0.0
        %482 = vmatmul.mubr.f32.gmra.mrb[0].mxu0 %v320
        %v483 = vpop.f32.mrb[0].mxu0
        %v484 = vadd.f32 0.0, %v483
        %v485 = vpop.f32.mrb[0].mxu0
        %486 = vmatprep.mubr.f32.mxu0 0.0
        %487 = vmatmul.mubr.f32.gmra.mrb[0].mxu0 %v323
        %v488 = vpop.f32.mrb[0].mxu0
        %v489 = vadd.f32 0.0, %v488
        %v490 = vpop.f32.mrb[0].mxu0
        %491 = vmatprep.mubr.f32.mxu0 0.0
        %492 = vmatmul.mubr.f32.gmra.mrb[0].mxu0 %v326
        %v493 = vpop.f32.mrb[0].mxu0
        %v494 = vadd.f32 0.0, %v493
        %v495 = vpop.f32.mrb[0].mxu0
        %496 = vmatprep.mubr.f32.mxu0 0.0
        %497 = vmatmul.mubr.f32.gmra.mrb[0].mxu0 %v329
        %v498 = vpop.f32.mrb[0].mxu0
        %v499 = vadd.f32 0.0, %v498
        %v500 = vpop.f32.mrb[0].mxu0
        %501 = vmatprep.mubr.f32.mxu0 0.0
        %502 = vmatmul.mubr.f32.gmra.mrb[0].mxu0 %v332
        %v503 = vpop.f32.mrb[0].mxu0
        %v504 = vadd.f32 0.0, %v503
        %v505 = vpop.f32.mrb[0].mxu0
        %506 = vmatprep.mubr.f32.mxu0 0.0
        %507 = vmatmul.mubr.f32.gmra.mrb[0].mxu0 %v335
        %v508 = vpop.f32.mrb[0].mxu0
        %v509 = vadd.f32 0.0, %v508
        %v510 = vpop.f32.mrb[0].mxu0
        %511 = vmatprep.mubr.f32.mxu0 0.0
        %512 = vmatmul.mubr.f32.gmra.mrb[0].mxu0 %v338
        %v513 = vpop.f32.mrb[0].mxu0
        %v514 = vadd.f32 0.0, %v513
        %v515 = vpop.f32.mrb[0].mxu0
        %516 = vmatprep.mubr.f32.mxu0 0.0
        %517 = vmatmul.mubr.f32.gmra.mrb[0].mxu0 %v341
        %v518 = vpop.f32.mrb[0].mxu0
        %v519 = vadd.f32 0.0, %v518
        %v520 = vpop.f32.mrb[0].mxu0
        %521 = vmatprep.mubr.f32.mxu0 0.0
        %522 = vmatmul.mubr.f32.gmra.mrb[0].mxu0 %v344
        %v523 = vpop.f32.mrb[0].mxu0
        %v524 = vadd.f32 0.0, %v523
        %v525 = vpop.f32.mrb[0].mxu0
        %526 = vmatprep.mubr.f32.mxu0 0.0
        %527 = vmatmul.mubr.f32.gmra.mrb[0].mxu0 %v347
        %v528 = vpop.f32.mrb[0].mxu0
        %v529 = vadd.f32 0.0, %v528
        %v530 = vpop.f32.mrb[0].mxu0
        %531 = vmatprep.mubr.f32.mxu0 0.0
        %532 = vmatmul.mubr.f32.gmra.mrb[0].mxu0 %v350
        %v533 = vpop.f32.mrb[0].mxu0
        %v534 = vadd.f32 0.0, %v533
        %v535 = vpop.f32.mrb[0].mxu0
        %536 = vmatprep.mubr.f32.mxu0 0.0
        %537 = vmatmul.mubr.f32.gmra.mrb[0].mxu0 %v353
        %v538 = vpop.f32.mrb[0].mxu0
        %v539 = vadd.f32 0.0, %v538
        %v540 = vpop.f32.mrb[0].mxu0
        %541 = vmatprep.mubr.f32.mxu0 0.0
        %542 = vmatmul.mubr.f32.gmra.mrb[0].mxu0 %v356
        %v543 = vpop.f32.mrb[0].mxu0
        %v544 = vadd.f32 0.0, %v543
        %v545 = vpop.f32.mrb[0].mxu0
        %546 = vmatprep.mubr.f32.mxu0 0.0
        %547 = vmatmul.mubr.f32.gmra.mrb[0].mxu0 %v359
        %v548 = vpop.f32.mrb[0].mxu0
        %v549 = vadd.f32 0.0, %v548
        %v550 = vpop.f32.mrb[0].mxu0
        %551 = vmatprep.mubr.f32.mxu0 0.0
        %552 = vmatmul.mubr.f32.gmra.mrb[0].mxu0 %v362
        %v553 = vpop.f32.mrb[0].mxu0
        %v554 = vadd.f32 0.0, %v553
        %v555 = vpop.f32.mrb[0].mxu0
        %556 = vmatprep.mubr.f32.mxu0 0.0
        %557 = vmatmul.mubr.f32.gmra.mrb[0].mxu0 %v365
        %v558 = vpop.f32.mrb[0].mxu0
        %v559 = vadd.f32 0.0, %v558
        %v560 = vpop.f32.mrb[0].mxu0
        %561 = vmatprep.mubr.f32.mxu0 0.0
        %562 = vmatmul.mubr.f32.gmra.mrb[0].mxu0 %v368
        %v563 = vpop.f32.mrb[0].mxu0
        %v564 = vadd.f32 0.0, %v563
        %v565 = vpop.f32.mrb[0].mxu0
        %566 = vmatprep.mubr.f32.mxu0 0.0
        %567 = vmatmul.mubr.f32.gmra.mrb[0].mxu0 %v371
        %v568 = vpop.f32.mrb[0].mxu0
        %v569 = vadd.f32 0.0, %v568
        %v570 = vpop.f32.mrb[0].mxu0
        %571 = vmatprep.mubr.f32.mxu0 0.0
        %572 = vmatmul.mubr.f32.gmra.mrb[0].mxu0 %v374
        %v573 = vpop.f32.mrb[0].mxu0
        %v574 = vadd.f32 0.0, %v573
        %v575 = vpop.f32.mrb[0].mxu0
        %576 = vmatprep.mubr.f32.mxu0 0.0
        %577 = vmatmul.mubr.f32.gmra.mrb[0].mxu0 %v377
        %v578 = vpop.f32.mrb[0].mxu0
        %v579 = vadd.f32 0.0, %v578
        %v580 = vpop.f32.mrb[0].mxu0
        %581 = vmatprep.mubr.f32.mxu0 0.0
        %582 = vmatmul.mubr.f32.gmra.mrb[0].mxu0 %v380
        %v583 = vpop.f32.mrb[0].mxu0
        %v584 = vadd.f32 0.0, %v583
        %v585 = vpop.f32.mrb[0].mxu0
        %586 = vmatprep.mubr.f32.mxu0 0.0
        %587 = vmatmul.mubr.f32.gmra.mrb[0].mxu0 %v383
        %v588 = vpop.f32.mrb[0].mxu0
        %v589 = vadd.f32 0.0, %v588
        %v590 = vpop.f32.mrb[0].mxu0
        %591 = vmatprep.mubr.f32.mxu0 0.0
        %592 = vmatmul.mubr.f32.gmra.mrb[0].mxu0 %v386
        %v593 = vpop.f32.mrb[0].mxu0
        %v594 = vadd.f32 0.0, %v593
        %v595 = vpop.f32.mrb[0].mxu0
        %596 = vmatprep.mubr.f32.mxu0 0.0
        %597 = vmatmul.mubr.f32.gmra.mrb[0].mxu0 %v389
        %v598 = vpop.f32.mrb[0].mxu0
        %v599 = vadd.f32 0.0, %v598
        %v600 = vpop.f32.mrb[0].mxu0
        %601 = vmatprep.mubr.f32.mxu0 0.0
        %602 = vmatmul.mubr.f32.gmra.mrb[0].mxu0 %v392
        %v603 = vpop.f32.mrb[0].mxu0
        %v604 = vadd.f32 0.0, %v603
        %v605 = vpop.f32.mrb[0].mxu0
        %606 = vmatprep.mubr.f32.mxu0 0.0
        %607 = vmatmul.mubr.f32.gmra.mrb[0].mxu0 %v395
        %v608 = vpop.f32.mrb[0].mxu0
        %v609 = vadd.f32 0.0, %v608
        %v610 = vpop.f32.mrb[0].mxu0
        %611 = vmatprep.mubr.f32.mxu0 0.0
        %612 = vmatmul.mubr.f32.gmra.mrb[0].mxu0 %v398
        %v613 = vpop.f32.mrb[0].mxu0
        %v614 = vadd.f32 0.0, %v613
        %v615 = vpop.f32.mrb[0].mxu0
        %616 = vmatprep.mubr.f32.mxu0 0.0
        %617 = vmatmul.mubr.f32.gmra.mrb[0].mxu0 %v401
        %v618 = vpop.f32.mrb[0].mxu0
        %v619 = vadd.f32 0.0, %v618
        %v620 = vpop.f32.mrb[0].mxu0
        %621 = vmatprep.mubr.f32.mxu0 0.0
        %622 = vmatmul.mubr.f32.gmra.mrb[0].mxu0 %v404
        %v623 = vpop.f32.mrb[0].mxu0
        %v624 = vadd.f32 0.0, %v623
        %v625 = vpop.f32.mrb[0].mxu0
        %626 = vmatprep.mubr.f32.mxu0 0.0
        %627 = vmatmul.mubr.f32.gmra.mrb[0].mxu0 %v407
        %v628 = vpop.f32.mrb[0].mxu0
        %v629 = vadd.f32 0.0, %v628
        %v630 = vpop.f32.mrb[0].mxu0
        %631 = vmatprep.mubr.f32.mxu0 0.0
        %632 = vmatmul.mubr.f32.gmra.mrb[0].mxu0 %v410
        %v633 = vpop.f32.mrb[0].mxu0
        %v634 = vadd.f32 0.0, %v633
        %v635 = vpop.f32.mrb[0].mxu0
        %636 = vdwg.mxu0
        %v638 = vsel %vm315, %v479, 0
        %v641 = vsel %vm315, %v484, 0
        %v644 = vsel %vm315, %v489, 0
        %v647 = vsel %vm315, %v494, 0
        %v650 = vsel %vm315, %v499, 0
        %v653 = vsel %vm315, %v504, 0
        %v656 = vsel %vm315, %v509, 0
        %v659 = vsel %vm315, %v514, 0
        %v662 = vsel %vm315, %v519, 0
        %v665 = vsel %vm315, %v524, 0
        %v668 = vsel %vm315, %v529, 0
        %v671 = vsel %vm315, %v534, 0
        %v674 = vsel %vm315, %v539, 0
        %v677 = vsel %vm315, %v544, 0
        %v680 = vsel %vm315, %v549, 0
        %v683 = vsel %vm315, %v554, 0
        %v686 = vsel %vm315, %v559, 0
        %v689 = vsel %vm315, %v564, 0
        %v692 = vsel %vm315, %v569, 0
        %v695 = vsel %vm315, %v574, 0
        %v698 = vsel %vm315, %v579, 0
        %v701 = vsel %vm315, %v584, 0
        %v704 = vsel %vm315, %v589, 0
        %v707 = vsel %vm315, %v594, 0
        %v710 = vsel %vm315, %v599, 0
        %v713 = vsel %vm315, %v604, 0
        %v716 = vsel %vm315, %v609, 0
        %v719 = vsel %vm315, %v614, 0
        %v722 = vsel %vm315, %v619, 0
        %v725 = vsel %vm315, %v624, 0
        %v728 = vsel %vm315, %v629, 0
        %v731 = vsel %vm315, %v634, 0
        %v734 = vsel %vm315, %v275, 0
        %v737 = vsel %vm315, %v276, 0
        %v740 = vsel %vm315, %v277, 0
        %v743 = vsel %vm315, %v278, 0
        %v746 = vsel %vm315, %v279, 0
        %v749 = vsel %vm315, %v280, 0
        %v752 = vsel %vm315, %v281, 0
        %v755 = vsel %vm315, %v282, 0
        %v758 = vsel %vm315, %v283, 0
        %v761 = vsel %vm315, %v284, 0
        %v764 = vsel %vm315, %v285, 0
        %v767 = vsel %vm315, %v286, 0
        %v770 = vsel %vm315, %v287, 0
        %v773 = vsel %vm315, %v288, 0
        %v776 = vsel %vm315, %v289, 0
        %v779 = vsel %vm315, %v290, 0
        %v782 = vsel %vm315, %v291, 0
        %v785 = vsel %vm315, %v292, 0
        %v788 = vsel %vm315, %v293, 0
        %v791 = vsel %vm315, %v294, 0
        %v794 = vsel %vm315, %v295, 0
        %v797 = vsel %vm315, %v296, 0
        %v800 = vsel %vm315, %v297, 0
        %v803 = vsel %vm315, %v298, 0
        %v806 = vsel %vm315, %v299, 0
        %v809 = vsel %vm315, %v300, 0
        %v812 = vsel %vm315, %v301, 0
        %v815 = vsel %vm315, %v302, 0
        %v818 = vsel %vm315, %v303, 0
        %v821 = vsel %vm315, %v304, 0
        %v824 = vsel %vm315, %v305, 0
        %v827 = vsel %vm315, %v306, 0
        %829 = vmatprep.subr.mxu0 0.0
        %830 = vmatpush1.xpose.msra.mxu0 %v734
        %831 = vmatprep.subr.mxu0 0.0
        %832 = vmatpush1.xpose.msra.mxu0 %v737
        %833 = vmatprep.subr.mxu0 0.0
        %834 = vmatpush1.xpose.msra.mxu0 %v740
        %835 = vmatprep.subr.mxu0 0.0
        %836 = vmatpush1.xpose.msra.mxu0 %v743
        %837 = vmatprep.subr.mxu0 0.0
        %838 = vmatpush1.xpose.msra.mxu0 %v746
        %839 = vmatprep.subr.mxu0 0.0
        %840 = vmatpush1.xpose.msra.mxu0 %v749
        %841 = vmatprep.subr.mxu0 0.0
        %842 = vmatpush1.xpose.msra.mxu0 %v752
        %843 = vmatprep.subr.mxu0 0.0
        %844 = vmatpush1.xpose.msra.mxu0 %v755
        %845 = vmatprep.subr.mxu0 0.0
        %846 = vmatpush1.xpose.msra.mxu0 %v758
        %847 = vmatprep.subr.mxu0 0.0
        %848 = vmatpush1.xpose.msra.mxu0 %v761
        %849 = vmatprep.subr.mxu0 0.0
        %850 = vmatpush1.xpose.msra.mxu0 %v764
        %851 = vmatprep.subr.mxu0 0.0
        %852 = vmatpush1.xpose.msra.mxu0 %v767
        %853 = vmatprep.subr.mxu0 0.0
        %854 = vmatpush1.xpose.msra.mxu0 %v770
        %855 = vmatprep.subr.mxu0 0.0
        %856 = vmatpush1.xpose.msra.mxu0 %v773
        %857 = vmatprep.subr.mxu0 0.0
        %858 = vmatpush1.xpose.msra.mxu0 %v776
        %859 = vmatprep.subr.mxu0 0.0
        %860 = vmatpush1.xpose.msra.mxu0 %v779
        %861 = vmatprep.subr.mxu0 0.0
        %862 = vmatpush1.xpose.msra.mxu0 %v782
        %863 = vmatprep.subr.mxu0 0.0
        %864 = vmatpush1.xpose.msra.mxu0 %v785
        %865 = vmatprep.subr.mxu0 0.0
        %866 = vmatpush1.xpose.msra.mxu0 %v788
        %867 = vmatprep.subr.mxu0 0.0
        %868 = vmatpush1.xpose.msra.mxu0 %v791
        %869 = vmatprep.subr.mxu0 0.0
        %870 = vmatpush1.xpose.msra.mxu0 %v794
        %871 = vmatprep.subr.mxu0 0.0
        %872 = vmatpush1.xpose.msra.mxu0 %v797
        %873 = vmatprep.subr.mxu0 0.0
        %874 = vmatpush1.xpose.msra.mxu0 %v800
        %875 = vmatprep.subr.mxu0 0.0
        %876 = vmatpush1.xpose.msra.mxu0 %v803
        %877 = vmatprep.subr.mxu0 0.0
        %878 = vmatpush1.xpose.msra.mxu0 %v806
        %879 = vmatprep.subr.mxu0 0.0
        %880 = vmatpush1.xpose.msra.mxu0 %v809
        %881 = vmatprep.subr.mxu0 0.0
        %882 = vmatpush1.xpose.msra.mxu0 %v812
        %883 = vmatprep.subr.mxu0 0.0
        %884 = vmatpush1.xpose.msra.mxu0 %v815
        %885 = vmatprep.subr.mxu0 0.0
        %886 = vmatpush1.xpose.msra.mxu0 %v818
        %887 = vmatprep.subr.mxu0 0.0
        %888 = vmatpush1.xpose.msra.mxu0 %v821
        %889 = vmatprep.subr.mxu0 0.0
        %890 = vmatpush1.xpose.msra.mxu0 %v824
        %891 = vmatprep.subr.mxu0 0.0
        %892 = vmatpush1.xpose.msra.mxu0 %v827
        %893 = vmatprep.mubr.f32.mxu0 0.0
        %894 = vmatmul.mubr.f32.gmra.mrb[0].mxu0 %v638
        %v895 = vpop.f32.mrb[0].mxu0
        %v896 = vadd.f32 0.0, %v895
        %v897 = vpop.f32.mrb[0].mxu0
        %v898 = vadd.f32 0.0, %v897
        %899 = vmatprep.mubr.f32.mxu0 0.0
        %900 = vmatmul.mubr.f32.gmra.mrb[0].mxu0 %v641
        %v901 = vpop.f32.mrb[0].mxu0
        %v902 = vadd.f32 0.0, %v901
        %v903 = vpop.f32.mrb[0].mxu0
        %v904 = vadd.f32 0.0, %v903
        %905 = vmatprep.mubr.f32.mxu0 0.0
        %906 = vmatmul.mubr.f32.gmra.mrb[0].mxu0 %v644
        %v907 = vpop.f32.mrb[0].mxu0
        %v908 = vadd.f32 0.0, %v907
        %v909 = vpop.f32.mrb[0].mxu0
        %v910 = vadd.f32 0.0, %v909
        %911 = vmatprep.mubr.f32.mxu0 0.0
        %912 = vmatmul.mubr.f32.gmra.mrb[0].mxu0 %v647
        %v913 = vpop.f32.mrb[0].mxu0
        %v914 = vadd.f32 0.0, %v913
        %v915 = vpop.f32.mrb[0].mxu0
        %v916 = vadd.f32 0.0, %v915
        %917 = vmatprep.mubr.f32.mxu0 0.0
        %918 = vmatmul.mubr.f32.gmra.mrb[0].mxu0 %v650
        %v919 = vpop.f32.mrb[0].mxu0
        %v920 = vadd.f32 0.0, %v919
        %v921 = vpop.f32.mrb[0].mxu0
        %v922 = vadd.f32 0.0, %v921
        %923 = vmatprep.mubr.f32.mxu0 0.0
        %924 = vmatmul.mubr.f32.gmra.mrb[0].mxu0 %v653
        %v925 = vpop.f32.mrb[0].mxu0
        %v926 = vadd.f32 0.0, %v925
        %v927 = vpop.f32.mrb[0].mxu0
        %v928 = vadd.f32 0.0, %v927
        %929 = vmatprep.mubr.f32.mxu0 0.0
        %930 = vmatmul.mubr.f32.gmra.mrb[0].mxu0 %v656
        %v931 = vpop.f32.mrb[0].mxu0
        %v932 = vadd.f32 0.0, %v931
        %v933 = vpop.f32.mrb[0].mxu0
        %v934 = vadd.f32 0.0, %v933
        %935 = vmatprep.mubr.f32.mxu0 0.0
        %936 = vmatmul.mubr.f32.gmra.mrb[0].mxu0 %v659
        %v937 = vpop.f32.mrb[0].mxu0
        %v938 = vadd.f32 0.0, %v937
        %v939 = vpop.f32.mrb[0].mxu0
        %v940 = vadd.f32 0.0, %v939
        %941 = vmatprep.mubr.f32.mxu0 0.0
        %942 = vmatmul.mubr.f32.gmra.mrb[0].mxu0 %v662
        %v943 = vpop.f32.mrb[0].mxu0
        %v944 = vadd.f32 0.0, %v943
        %v945 = vpop.f32.mrb[0].mxu0
        %v946 = vadd.f32 0.0, %v945
        %947 = vmatprep.mubr.f32.mxu0 0.0
        %948 = vmatmul.mubr.f32.gmra.mrb[0].mxu0 %v665
        %v949 = vpop.f32.mrb[0].mxu0
        %v950 = vadd.f32 0.0, %v949
        %v951 = vpop.f32.mrb[0].mxu0
        %v952 = vadd.f32 0.0, %v951
        %953 = vmatprep.mubr.f32.mxu0 0.0
        %954 = vmatmul.mubr.f32.gmra.mrb[0].mxu0 %v668
        %v955 = vpop.f32.mrb[0].mxu0
        %v956 = vadd.f32 0.0, %v955
        %v957 = vpop.f32.mrb[0].mxu0
        %v958 = vadd.f32 0.0, %v957
        %959 = vmatprep.mubr.f32.mxu0 0.0
        %960 = vmatmul.mubr.f32.gmra.mrb[0].mxu0 %v671
        %v961 = vpop.f32.mrb[0].mxu0
        %v962 = vadd.f32 0.0, %v961
        %v963 = vpop.f32.mrb[0].mxu0
        %v964 = vadd.f32 0.0, %v963
        %965 = vmatprep.mubr.f32.mxu0 0.0
        %966 = vmatmul.mubr.f32.gmra.mrb[0].mxu0 %v674
        %v967 = vpop.f32.mrb[0].mxu0
        %v968 = vadd.f32 0.0, %v967
        %v969 = vpop.f32.mrb[0].mxu0
        %v970 = vadd.f32 0.0, %v969
        %971 = vmatprep.mubr.f32.mxu0 0.0
        %972 = vmatmul.mubr.f32.gmra.mrb[0].mxu0 %v677
        %v973 = vpop.f32.mrb[0].mxu0
        %v974 = vadd.f32 0.0, %v973
        %v975 = vpop.f32.mrb[0].mxu0
        %v976 = vadd.f32 0.0, %v975
        %977 = vmatprep.mubr.f32.mxu0 0.0
        %978 = vmatmul.mubr.f32.gmra.mrb[0].mxu0 %v680
        %v979 = vpop.f32.mrb[0].mxu0
        %v980 = vadd.f32 0.0, %v979
        %v981 = vpop.f32.mrb[0].mxu0
        %v982 = vadd.f32 0.0, %v981
        %983 = vmatprep.mubr.f32.mxu0 0.0
        %984 = vmatmul.mubr.f32.gmra.mrb[0].mxu0 %v683
        %v985 = vpop.f32.mrb[0].mxu0
        %v986 = vadd.f32 0.0, %v985
        %v987 = vpop.f32.mrb[0].mxu0
        %v988 = vadd.f32 0.0, %v987
        %989 = vmatprep.mubr.f32.mxu0 0.0
        %990 = vmatmul.mubr.f32.gmra.mrb[0].mxu0 %v686
        %v991 = vpop.f32.mrb[0].mxu0
        %v992 = vadd.f32 0.0, %v991
        %v993 = vpop.f32.mrb[0].mxu0
        %v994 = vadd.f32 0.0, %v993
        %995 = vmatprep.mubr.f32.mxu0 0.0
        %996 = vmatmul.mubr.f32.gmra.mrb[0].mxu0 %v689
        %v997 = vpop.f32.mrb[0].mxu0
        %v998 = vadd.f32 0.0, %v997
        %v999 = vpop.f32.mrb[0].mxu0
        %v1000 = vadd.f32 0.0, %v999
        %1001 = vmatprep.mubr.f32.mxu0 0.0
        %1002 = vmatmul.mubr.f32.gmra.mrb[0].mxu0 %v692
        %v1003 = vpop.f32.mrb[0].mxu0
        %v1004 = vadd.f32 0.0, %v1003
        %v1005 = vpop.f32.mrb[0].mxu0
        %v1006 = vadd.f32 0.0, %v1005
        %1007 = vmatprep.mubr.f32.mxu0 0.0
        %1008 = vmatmul.mubr.f32.gmra.mrb[0].mxu0 %v695
        %v1009 = vpop.f32.mrb[0].mxu0
        %v1010 = vadd.f32 0.0, %v1009
        %v1011 = vpop.f32.mrb[0].mxu0
        %v1012 = vadd.f32 0.0, %v1011
        %1013 = vmatprep.mubr.f32.mxu0 0.0
        %1014 = vmatmul.mubr.f32.gmra.mrb[0].mxu0 %v698
        %v1015 = vpop.f32.mrb[0].mxu0
        %v1016 = vadd.f32 0.0, %v1015
        %v1017 = vpop.f32.mrb[0].mxu0
        %v1018 = vadd.f32 0.0, %v1017
        %1019 = vmatprep.mubr.f32.mxu0 0.0
        %1020 = vmatmul.mubr.f32.gmra.mrb[0].mxu0 %v701
        %v1021 = vpop.f32.mrb[0].mxu0
        %v1022 = vadd.f32 0.0, %v1021
        %v1023 = vpop.f32.mrb[0].mxu0
        %v1024 = vadd.f32 0.0, %v1023
        %1025 = vmatprep.mubr.f32.mxu0 0.0
        %1026 = vmatmul.mubr.f32.gmra.mrb[0].mxu0 %v704
        %v1027 = vpop.f32.mrb[0].mxu0
        %v1028 = vadd.f32 0.0, %v1027
        %v1029 = vpop.f32.mrb[0].mxu0
        %v1030 = vadd.f32 0.0, %v1029
        %1031 = vmatprep.mubr.f32.mxu0 0.0
        %1032 = vmatmul.mubr.f32.gmra.mrb[0].mxu0 %v707
        %v1033 = vpop.f32.mrb[0].mxu0
        %v1034 = vadd.f32 0.0, %v1033
        %v1035 = vpop.f32.mrb[0].mxu0
        %v1036 = vadd.f32 0.0, %v1035
        %1037 = vmatprep.mubr.f32.mxu0 0.0
        %1038 = vmatmul.mubr.f32.gmra.mrb[0].mxu0 %v710
        %v1039 = vpop.f32.mrb[0].mxu0
        %v1040 = vadd.f32 0.0, %v1039
        %v1041 = vpop.f32.mrb[0].mxu0
        %v1042 = vadd.f32 0.0, %v1041
        %1043 = vmatprep.mubr.f32.mxu0 0.0
        %1044 = vmatmul.mubr.f32.gmra.mrb[0].mxu0 %v713
        %v1045 = vpop.f32.mrb[0].mxu0
        %v1046 = vadd.f32 0.0, %v1045
        %v1047 = vpop.f32.mrb[0].mxu0
        %v1048 = vadd.f32 0.0, %v1047
        %1049 = vmatprep.mubr.f32.mxu0 0.0
        %1050 = vmatmul.mubr.f32.gmra.mrb[0].mxu0 %v716
        %v1051 = vpop.f32.mrb[0].mxu0
        %v1052 = vadd.f32 0.0, %v1051
        %v1053 = vpop.f32.mrb[0].mxu0
        %v1054 = vadd.f32 0.0, %v1053
        %1055 = vmatprep.mubr.f32.mxu0 0.0
        %1056 = vmatmul.mubr.f32.gmra.mrb[0].mxu0 %v719
        %v1057 = vpop.f32.mrb[0].mxu0
        %v1058 = vadd.f32 0.0, %v1057
        %v1059 = vpop.f32.mrb[0].mxu0
        %v1060 = vadd.f32 0.0, %v1059
        %1061 = vmatprep.mubr.f32.mxu0 0.0
        %1062 = vmatmul.mubr.f32.gmra.mrb[0].mxu0 %v722
        %v1063 = vpop.f32.mrb[0].mxu0
        %v1064 = vadd.f32 0.0, %v1063
        %v1065 = vpop.f32.mrb[0].mxu0
        %v1066 = vadd.f32 0.0, %v1065
        %1067 = vmatprep.mubr.f32.mxu0 0.0
        %1068 = vmatmul.mubr.f32.gmra.mrb[0].mxu0 %v725
        %v1069 = vpop.f32.mrb[0].mxu0
        %v1070 = vadd.f32 0.0, %v1069
        %v1071 = vpop.f32.mrb[0].mxu0
        %v1072 = vadd.f32 0.0, %v1071
        %1073 = vmatprep.mubr.f32.mxu0 0.0
        %1074 = vmatmul.mubr.f32.gmra.mrb[0].mxu0 %v728
        %v1075 = vpop.f32.mrb[0].mxu0
        %v1076 = vadd.f32 0.0, %v1075
        %v1077 = vpop.f32.mrb[0].mxu0
        %v1078 = vadd.f32 0.0, %v1077
        %1079 = vmatprep.mubr.f32.mxu0 0.0
        %1080 = vmatmul.mubr.f32.gmra.mrb[0].mxu0 %v731
        %v1081 = vpop.f32.mrb[0].mxu0
        %v1082 = vadd.f32 0.0, %v1081
        %v1083 = vpop.f32.mrb[0].mxu0
        %v1084 = vadd.f32 0.0, %v1083
        %1085 = vdwg.mxu0
        %v1086 = vmax.f32 %v896, %v898
        %1087 = vmax.xlane.f32.xlu0 %v1086
        %v1088 = vpop.xlane.xlu0 %1087
        %v1089 = vmax.f32 %v902, %v904
        %1090 = vmax.xlane.f32.xlu0 %v1089
        %v1091 = vpop.xlane.xlu0 %1090
        %v1092 = vmax.f32 %v908, %v910
        %1093 = vmax.xlane.f32.xlu0 %v1092
        %v1094 = vpop.xlane.xlu0 %1093
        %v1095 = vmax.f32 %v914, %v916
        %1096 = vmax.xlane.f32.xlu0 %v1095
        %v1097 = vpop.xlane.xlu0 %1096
        %v1098 = vmax.f32 %v920, %v922
        %1099 = vmax.xlane.f32.xlu0 %v1098
        %v1100 = vpop.xlane.xlu0 %1099
        %v1101 = vmax.f32 %v926, %v928
        %1102 = vmax.xlane.f32.xlu0 %v1101
        %v1103 = vpop.xlane.xlu0 %1102
        %v1104 = vmax.f32 %v932, %v934
        %1105 = vmax.xlane.f32.xlu0 %v1104
        %v1106 = vpop.xlane.xlu0 %1105
        %v1107 = vmax.f32 %v938, %v940
        %1108 = vmax.xlane.f32.xlu0 %v1107
        %v1109 = vpop.xlane.xlu0 %1108
        %v1110 = vmax.f32 %v944, %v946
        %1111 = vmax.xlane.f32.xlu0 %v1110
        %v1112 = vpop.xlane.xlu0 %1111
        %v1113 = vmax.f32 %v950, %v952
        %1114 = vmax.xlane.f32.xlu0 %v1113
        %v1115 = vpop.xlane.xlu0 %1114
        %v1116 = vmax.f32 %v956, %v958
        %1117 = vmax.xlane.f32.xlu0 %v1116
        %v1118 = vpop.xlane.xlu0 %1117
        %v1119 = vmax.f32 %v962, %v964
        %1120 = vmax.xlane.f32.xlu0 %v1119
        %v1121 = vpop.xlane.xlu0 %1120
        %v1122 = vmax.f32 %v968, %v970
        %1123 = vmax.xlane.f32.xlu0 %v1122
        %v1124 = vpop.xlane.xlu0 %1123
        %v1125 = vmax.f32 %v974, %v976
        %1126 = vmax.xlane.f32.xlu0 %v1125
        %v1127 = vpop.xlane.xlu0 %1126
        %v1128 = vmax.f32 %v980, %v982
        %1129 = vmax.xlane.f32.xlu0 %v1128
        %v1130 = vpop.xlane.xlu0 %1129
        %v1131 = vmax.f32 %v986, %v988
        %1132 = vmax.xlane.f32.xlu0 %v1131
        %v1133 = vpop.xlane.xlu0 %1132
        %v1134 = vmax.f32 %v992, %v994
        %1135 = vmax.xlane.f32.xlu0 %v1134
        %v1136 = vpop.xlane.xlu0 %1135
        %v1137 = vmax.f32 %v998, %v1000
        %1138 = vmax.xlane.f32.xlu0 %v1137
        %v1139 = vpop.xlane.xlu0 %1138
        %v1140 = vmax.f32 %v1004, %v1006
        %1141 = vmax.xlane.f32.xlu0 %v1140
        %v1142 = vpop.xlane.xlu0 %1141
        %v1143 = vmax.f32 %v1010, %v1012
        %1144 = vmax.xlane.f32.xlu0 %v1143
        %v1145 = vpop.xlane.xlu0 %1144
        %v1146 = vmax.f32 %v1016, %v1018
        %1147 = vmax.xlane.f32.xlu0 %v1146
        %v1148 = vpop.xlane.xlu0 %1147
        %v1149 = vmax.f32 %v1022, %v1024
        %1150 = vmax.xlane.f32.xlu0 %v1149
        %v1151 = vpop.xlane.xlu0 %1150
        %v1152 = vmax.f32 %v1028, %v1030
        %1153 = vmax.xlane.f32.xlu0 %v1152
        %v1154 = vpop.xlane.xlu0 %1153
        %v1155 = vmax.f32 %v1034, %v1036
        %1156 = vmax.xlane.f32.xlu0 %v1155
        %v1157 = vpop.xlane.xlu0 %1156
        %v1158 = vmax.f32 %v1040, %v1042
        %1159 = vmax.xlane.f32.xlu0 %v1158
        %v1160 = vpop.xlane.xlu0 %1159
        %v1161 = vmax.f32 %v1046, %v1048
        %1162 = vmax.xlane.f32.xlu0 %v1161
        %v1163 = vpop.xlane.xlu0 %1162
        %v1164 = vmax.f32 %v1052, %v1054
        %1165 = vmax.xlane.f32.xlu0 %v1164
        %v1166 = vpop.xlane.xlu0 %1165
        %v1167 = vmax.f32 %v1058, %v1060
        %1168 = vmax.xlane.f32.xlu0 %v1167
        %v1169 = vpop.xlane.xlu0 %1168
        %v1170 = vmax.f32 %v1064, %v1066
        %1171 = vmax.xlane.f32.xlu0 %v1170
        %v1172 = vpop.xlane.xlu0 %1171
        %v1173 = vmax.f32 %v1070, %v1072
        %1174 = vmax.xlane.f32.xlu0 %v1173
        %v1175 = vpop.xlane.xlu0 %1174
        %v1176 = vmax.f32 %v1076, %v1078
        %1177 = vmax.xlane.f32.xlu0 %v1176
        %v1178 = vpop.xlane.xlu0 %1177
        %v1179 = vmax.f32 %v1082, %v1084
        %1180 = vmax.xlane.f32.xlu0 %v1179
        %v1181 = vpop.xlane.xlu0 %1180
        %v1182 = vsub.f32 %v896, %v1088
        %v1183 = vsub.f32 %v898, %v1088
        %v1184 = vsub.f32 %v902, %v1091
        %v1185 = vsub.f32 %v904, %v1091
        %v1186 = vsub.f32 %v908, %v1094
        %v1187 = vsub.f32 %v910, %v1094
        %v1188 = vsub.f32 %v914, %v1097
        %v1189 = vsub.f32 %v916, %v1097
        %v1190 = vsub.f32 %v920, %v1100
        %v1191 = vsub.f32 %v922, %v1100
        %v1192 = vsub.f32 %v926, %v1103
        %v1193 = vsub.f32 %v928, %v1103
        %v1194 = vsub.f32 %v932, %v1106
        %v1195 = vsub.f32 %v934, %v1106
        %v1196 = vsub.f32 %v938, %v1109
        %v1197 = vsub.f32 %v940, %v1109
        %v1198 = vsub.f32 %v944, %v1112
        %v1199 = vsub.f32 %v946, %v1112
        %v1200 = vsub.f32 %v950, %v1115
        %v1201 = vsub.f32 %v952, %v1115
        %v1202 = vsub.f32 %v956, %v1118
        %v1203 = vsub.f32 %v958, %v1118
        %v1204 = vsub.f32 %v962, %v1121
        %v1205 = vsub.f32 %v964, %v1121
        %v1206 = vsub.f32 %v968, %v1124
        %v1207 = vsub.f32 %v970, %v1124
        %v1208 = vsub.f32 %v974, %v1127
        %v1209 = vsub.f32 %v976, %v1127
        %v1210 = vsub.f32 %v980, %v1130
        %v1211 = vsub.f32 %v982, %v1130
        %v1212 = vsub.f32 %v986, %v1133
        %v1213 = vsub.f32 %v988, %v1133
        %v1214 = vsub.f32 %v992, %v1136
        %v1215 = vsub.f32 %v994, %v1136
        %v1216 = vsub.f32 %v998, %v1139
        %v1217 = vsub.f32 %v1000, %v1139
        %v1218 = vsub.f32 %v1004, %v1142
        %v1219 = vsub.f32 %v1006, %v1142
        %v1220 = vsub.f32 %v1010, %v1145
        %v1221 = vsub.f32 %v1012, %v1145
        %v1222 = vsub.f32 %v1016, %v1148
        %v1223 = vsub.f32 %v1018, %v1148
        %v1224 = vsub.f32 %v1022, %v1151
        %v1225 = vsub.f32 %v1024, %v1151
        %v1226 = vsub.f32 %v1028, %v1154
        %v1227 = vsub.f32 %v1030, %v1154
        %v1228 = vsub.f32 %v1034, %v1157
        %v1229 = vsub.f32 %v1036, %v1157
        %v1230 = vsub.f32 %v1040, %v1160
        %v1231 = vsub.f32 %v1042, %v1160
        %v1232 = vsub.f32 %v1046, %v1163
        %v1233 = vsub.f32 %v1048, %v1163
        %v1234 = vsub.f32 %v1052, %v1166
        %v1235 = vsub.f32 %v1054, %v1166
        %v1236 = vsub.f32 %v1058, %v1169
        %v1237 = vsub.f32 %v1060, %v1169
        %v1238 = vsub.f32 %v1064, %v1172
        %v1239 = vsub.f32 %v1066, %v1172
        %v1240 = vsub.f32 %v1070, %v1175
        %v1241 = vsub.f32 %v1072, %v1175
        %v1242 = vsub.f32 %v1076, %v1178
        %v1243 = vsub.f32 %v1078, %v1178
        %v1244 = vsub.f32 %v1082, %v1181
        %v1245 = vsub.f32 %v1084, %v1181
        %v1246 = vmul.f32 %v1182, 1.442695
        %v1247 = vpow.pop %v1246
        %v1248 = vmul.f32 %v1183, 1.442695
        %v1249 = vpow.pop %v1248
        %v1250 = vmul.f32 %v1184, 1.442695
        %v1251 = vpow.pop %v1250
        %v1252 = vmul.f32 %v1185, 1.442695
        %v1253 = vpow.pop %v1252
        %v1254 = vmul.f32 %v1186, 1.442695
        %v1255 = vpow.pop %v1254
        %v1256 = vmul.f32 %v1187, 1.442695
        %v1257 = vpow.pop %v1256
        %v1258 = vmul.f32 %v1188, 1.442695
        %v1259 = vpow.pop %v1258
        %v1260 = vmul.f32 %v1189, 1.442695
        %v1261 = vpow.pop %v1260
        %v1262 = vmul.f32 %v1190, 1.442695
        %v1263 = vpow.pop %v1262
        %v1264 = vmul.f32 %v1191, 1.442695
        %v1265 = vpow.pop %v1264
        %v1266 = vmul.f32 %v1192, 1.442695
        %v1267 = vpow.pop %v1266
        %v1268 = vmul.f32 %v1193, 1.442695
        %v1269 = vpow.pop %v1268
        %v1270 = vmul.f32 %v1194, 1.442695
        %v1271 = vpow.pop %v1270
        %v1272 = vmul.f32 %v1195, 1.442695
        %v1273 = vpow.pop %v1272
        %v1274 = vmul.f32 %v1196, 1.442695
        %v1275 = vpow.pop %v1274
        %v1276 = vmul.f32 %v1197, 1.442695
        %v1277 = vpow.pop %v1276
        %v1278 = vmul.f32 %v1198, 1.442695
        %v1279 = vpow.pop %v1278
        %v1280 = vmul.f32 %v1199, 1.442695
        %v1281 = vpow.pop %v1280
        %v1282 = vmul.f32 %v1200, 1.442695
        %v1283 = vpow.pop %v1282
        %v1284 = vmul.f32 %v1201, 1.442695
        %v1285 = vpow.pop %v1284
        %v1286 = vmul.f32 %v1202, 1.442695
        %v1287 = vpow.pop %v1286
        %v1288 = vmul.f32 %v1203, 1.442695
        %v1289 = vpow.pop %v1288
        %v1290 = vmul.f32 %v1204, 1.442695
        %v1291 = vpow.pop %v1290
        %v1292 = vmul.f32 %v1205, 1.442695
        %v1293 = vpow.pop %v1292
        %v1294 = vmul.f32 %v1206, 1.442695
        %v1295 = vpow.pop %v1294
        %v1296 = vmul.f32 %v1207, 1.442695
        %v1297 = vpow.pop %v1296
        %v1298 = vmul.f32 %v1208, 1.442695
        %v1299 = vpow.pop %v1298
        %v1300 = vmul.f32 %v1209, 1.442695
        %v1301 = vpow.pop %v1300
        %v1302 = vmul.f32 %v1210, 1.442695
        %v1303 = vpow.pop %v1302
        %v1304 = vmul.f32 %v1211, 1.442695
        %v1305 = vpow.pop %v1304
        %v1306 = vmul.f32 %v1212, 1.442695
        %v1307 = vpow.pop %v1306
        %v1308 = vmul.f32 %v1213, 1.442695
        %v1309 = vpow.pop %v1308
        %v1310 = vmul.f32 %v1214, 1.442695
        %v1311 = vpow.pop %v1310
        %v1312 = vmul.f32 %v1215, 1.442695
        %v1313 = vpow.pop %v1312
        %v1314 = vmul.f32 %v1216, 1.442695
        %v1315 = vpow.pop %v1314
        %v1316 = vmul.f32 %v1217, 1.442695
        %v1317 = vpow.pop %v1316
        %v1318 = vmul.f32 %v1218, 1.442695
        %v1319 = vpow.pop %v1318
        %v1320 = vmul.f32 %v1219, 1.442695
        %v1321 = vpow.pop %v1320
        %v1322 = vmul.f32 %v1220, 1.442695
        %v1323 = vpow.pop %v1322
        %v1324 = vmul.f32 %v1221, 1.442695
        %v1325 = vpow.pop %v1324
        %v1326 = vmul.f32 %v1222, 1.442695
        %v1327 = vpow.pop %v1326
        %v1328 = vmul.f32 %v1223, 1.442695
        %v1329 = vpow.pop %v1328
        %v1330 = vmul.f32 %v1224, 1.442695
        %v1331 = vpow.pop %v1330
        %v1332 = vmul.f32 %v1225, 1.442695
        %v1333 = vpow.pop %v1332
        %v1334 = vmul.f32 %v1226, 1.442695
        %v1335 = vpow.pop %v1334
        %v1336 = vmul.f32 %v1227, 1.442695
        %v1337 = vpow.pop %v1336
        %v1338 = vmul.f32 %v1228, 1.442695
        %v1339 = vpow.pop %v1338
        %v1340 = vmul.f32 %v1229, 1.442695
        %v1341 = vpow.pop %v1340
        %v1342 = vmul.f32 %v1230, 1.442695
        %v1343 = vpow.pop %v1342
        %v1344 = vmul.f32 %v1231, 1.442695
        %v1345 = vpow.pop %v1344
        %v1346 = vmul.f32 %v1232, 1.442695
        %v1347 = vpow.pop %v1346
        %v1348 = vmul.f32 %v1233, 1.442695
        %v1349 = vpow.pop %v1348
        %v1350 = vmul.f32 %v1234, 1.442695
        %v1351 = vpow.pop %v1350
        %v1352 = vmul.f32 %v1235, 1.442695
        %v1353 = vpow.pop %v1352
        %v1354 = vmul.f32 %v1236, 1.442695
        %v1355 = vpow.pop %v1354
        %v1356 = vmul.f32 %v1237, 1.442695
        %v1357 = vpow.pop %v1356
        %v1358 = vmul.f32 %v1238, 1.442695
        %v1359 = vpow.pop %v1358
        %v1360 = vmul.f32 %v1239, 1.442695
        %v1361 = vpow.pop %v1360
        %v1362 = vmul.f32 %v1240, 1.442695
        %v1363 = vpow.pop %v1362
        %v1364 = vmul.f32 %v1241, 1.442695
        %v1365 = vpow.pop %v1364
        %v1366 = vmul.f32 %v1242, 1.442695
        %v1367 = vpow.pop %v1366
        %v1368 = vmul.f32 %v1243, 1.442695
        %v1369 = vpow.pop %v1368
        %v1370 = vmul.f32 %v1244, 1.442695
        %v1371 = vpow.pop %v1370
        %v1372 = vmul.f32 %v1245, 1.442695
        %v1373 = vpow.pop %v1372
        %v1374 = vadd.f32 %v1247, %v1249
        %1375 = vadd.xlane.f32.xlu0 %v1374
        %v1376 = vpop.xlane.xlu0 %1375
        %v1377 = vadd.f32 %v1251, %v1253
        %1378 = vadd.xlane.f32.xlu0 %v1377
        %v1379 = vpop.xlane.xlu0 %1378
        %v1380 = vadd.f32 %v1255, %v1257
        %1381 = vadd.xlane.f32.xlu0 %v1380
        %v1382 = vpop.xlane.xlu0 %1381
        %v1383 = vadd.f32 %v1259, %v1261
        %1384 = vadd.xlane.f32.xlu0 %v1383
        %v1385 = vpop.xlane.xlu0 %1384
        %v1386 = vadd.f32 %v1263, %v1265
        %1387 = vadd.xlane.f32.xlu0 %v1386
        %v1388 = vpop.xlane.xlu0 %1387
        %v1389 = vadd.f32 %v1267, %v1269
        %1390 = vadd.xlane.f32.xlu0 %v1389
        %v1391 = vpop.xlane.xlu0 %1390
        %v1392 = vadd.f32 %v1271, %v1273
        %1393 = vadd.xlane.f32.xlu0 %v1392
        %v1394 = vpop.xlane.xlu0 %1393
        %v1395 = vadd.f32 %v1275, %v1277
        %1396 = vadd.xlane.f32.xlu0 %v1395
        %v1397 = vpop.xlane.xlu0 %1396
        %v1398 = vadd.f32 %v1279, %v1281
        %1399 = vadd.xlane.f32.xlu0 %v1398
        %v1400 = vpop.xlane.xlu0 %1399
        %v1401 = vadd.f32 %v1283, %v1285
        %1402 = vadd.xlane.f32.xlu0 %v1401
        %v1403 = vpop.xlane.xlu0 %1402
        %v1404 = vadd.f32 %v1287, %v1289
        %1405 = vadd.xlane.f32.xlu0 %v1404
        %v1406 = vpop.xlane.xlu0 %1405
        %v1407 = vadd.f32 %v1291, %v1293
        %1408 = vadd.xlane.f32.xlu0 %v1407
        %v1409 = vpop.xlane.xlu0 %1408
        %v1410 = vadd.f32 %v1295, %v1297
        %1411 = vadd.xlane.f32.xlu0 %v1410
        %v1412 = vpop.xlane.xlu0 %1411
        %v1413 = vadd.f32 %v1299, %v1301
        %1414 = vadd.xlane.f32.xlu0 %v1413
        %v1415 = vpop.xlane.xlu0 %1414
        %v1416 = vadd.f32 %v1303, %v1305
        %1417 = vadd.xlane.f32.xlu0 %v1416
        %v1418 = vpop.xlane.xlu0 %1417
        %v1419 = vadd.f32 %v1307, %v1309
        %1420 = vadd.xlane.f32.xlu0 %v1419
        %v1421 = vpop.xlane.xlu0 %1420
        %v1422 = vadd.f32 %v1311, %v1313
        %1423 = vadd.xlane.f32.xlu0 %v1422
        %v1424 = vpop.xlane.xlu0 %1423
        %v1425 = vadd.f32 %v1315, %v1317
        %1426 = vadd.xlane.f32.xlu0 %v1425
        %v1427 = vpop.xlane.xlu0 %1426
        %v1428 = vadd.f32 %v1319, %v1321
        %1429 = vadd.xlane.f32.xlu0 %v1428
        %v1430 = vpop.xlane.xlu0 %1429
        %v1431 = vadd.f32 %v1323, %v1325
        %1432 = vadd.xlane.f32.xlu0 %v1431
        %v1433 = vpop.xlane.xlu0 %1432
        %v1434 = vadd.f32 %v1327, %v1329
        %1435 = vadd.xlane.f32.xlu0 %v1434
        %v1436 = vpop.xlane.xlu0 %1435
        %v1437 = vadd.f32 %v1331, %v1333
        %1438 = vadd.xlane.f32.xlu0 %v1437
        %v1439 = vpop.xlane.xlu0 %1438
        %v1440 = vadd.f32 %v1335, %v1337
        %1441 = vadd.xlane.f32.xlu0 %v1440
        %v1442 = vpop.xlane.xlu0 %1441
        %v1443 = vadd.f32 %v1339, %v1341
        %1444 = vadd.xlane.f32.xlu0 %v1443
        %v1445 = vpop.xlane.xlu0 %1444
        %v1446 = vadd.f32 %v1343, %v1345
        %1447 = vadd.xlane.f32.xlu0 %v1446
        %v1448 = vpop.xlane.xlu0 %1447
        %v1449 = vadd.f32 %v1347, %v1349
        %1450 = vadd.xlane.f32.xlu0 %v1449
        %v1451 = vpop.xlane.xlu0 %1450
        %v1452 = vadd.f32 %v1351, %v1353
        %1453 = vadd.xlane.f32.xlu0 %v1452
        %v1454 = vpop.xlane.xlu0 %1453
        %v1455 = vadd.f32 %v1355, %v1357
        %1456 = vadd.xlane.f32.xlu0 %v1455
        %v1457 = vpop.xlane.xlu0 %1456
        %v1458 = vadd.f32 %v1359, %v1361
        %1459 = vadd.xlane.f32.xlu0 %v1458
        %v1460 = vpop.xlane.xlu0 %1459
        %v1461 = vadd.f32 %v1363, %v1365
        %1462 = vadd.xlane.f32.xlu0 %v1461
        %v1463 = vpop.xlane.xlu0 %1462
        %v1464 = vadd.f32 %v1367, %v1369
        %1465 = vadd.xlane.f32.xlu0 %v1464
        %v1466 = vpop.xlane.xlu0 %1465
        %v1467 = vadd.f32 %v1371, %v1373
        %1468 = vadd.xlane.f32.xlu0 %v1467
        %v1469 = vpop.xlane.xlu0 %1468
        %1470 = vmatprep.subr.mxu0 0.0
        %1471 = vmatpush1.msra.mxu0 %v275
        %1472 = vmatprep.subr.mxu0 0.0
        %1473 = vmatpush1.msra.mxu0 %v276
        %1474 = vmatprep.subr.mxu0 0.0
        %1475 = vmatpush1.msra.mxu0 %v277
        %1476 = vmatprep.subr.mxu0 0.0
        %1477 = vmatpush1.msra.mxu0 %v278
        %1478 = vmatprep.subr.mxu0 0.0
        %1479 = vmatpush1.msra.mxu0 %v279
        %1480 = vmatprep.subr.mxu0 0.0
        %1481 = vmatpush1.msra.mxu0 %v280
        %1482 = vmatprep.subr.mxu0 0.0
        %1483 = vmatpush1.msra.mxu0 %v281
        %1484 = vmatprep.subr.mxu0 0.0
        %1485 = vmatpush1.msra.mxu0 %v282
        %1486 = vmatprep.subr.mxu0 0.0
        %1487 = vmatpush1.msra.mxu0 %v283
        %1488 = vmatprep.subr.mxu0 0.0
        %1489 = vmatpush1.msra.mxu0 %v284
        %1490 = vmatprep.subr.mxu0 0.0
        %1491 = vmatpush1.msra.mxu0 %v285
        %1492 = vmatprep.subr.mxu0 0.0
        %1493 = vmatpush1.msra.mxu0 %v286
        %1494 = vmatprep.subr.mxu0 0.0
        %1495 = vmatpush1.msra.mxu0 %v287
        %1496 = vmatprep.subr.mxu0 0.0
        %1497 = vmatpush1.msra.mxu0 %v288
        %1498 = vmatprep.subr.mxu0 0.0
        %1499 = vmatpush1.msra.mxu0 %v289
        %1500 = vmatprep.subr.mxu0 0.0
        %1501 = vmatpush1.msra.mxu0 %v290
        %1502 = vmatprep.subr.mxu0 0.0
        %1503 = vmatpush1.msra.mxu0 %v291
        %1504 = vmatprep.subr.mxu0 0.0
        %1505 = vmatpush1.msra.mxu0 %v292
        %1506 = vmatprep.subr.mxu0 0.0
        %1507 = vmatpush1.msra.mxu0 %v293
        %1508 = vmatprep.subr.mxu0 0.0
        %1509 = vmatpush1.msra.mxu0 %v294
        %1510 = vmatprep.subr.mxu0 0.0
        %1511 = vmatpush1.msra.mxu0 %v295
        %1512 = vmatprep.subr.mxu0 0.0
        %1513 = vmatpush1.msra.mxu0 %v296
        %1514 = vmatprep.subr.mxu0 0.0
        %1515 = vmatpush1.msra.mxu0 %v297
        %1516 = vmatprep.subr.mxu0 0.0
        %1517 = vmatpush1.msra.mxu0 %v298
        %1518 = vmatprep.subr.mxu0 0.0
        %1519 = vmatpush1.msra.mxu0 %v299
        %1520 = vmatprep.subr.mxu0 0.0
        %1521 = vmatpush1.msra.mxu0 %v300
        %1522 = vmatprep.subr.mxu0 0.0
        %1523 = vmatpush1.msra.mxu0 %v301
        %1524 = vmatprep.subr.mxu0 0.0
        %1525 = vmatpush1.msra.mxu0 %v302
        %1526 = vmatprep.subr.mxu0 0.0
        %1527 = vmatpush1.msra.mxu0 %v303
        %1528 = vmatprep.subr.mxu0 0.0
        %1529 = vmatpush1.msra.mxu0 %v304
        %1530 = vmatprep.subr.mxu0 0.0
        %1531 = vmatpush1.msra.mxu0 %v305
        %1532 = vmatprep.subr.mxu0 0.0
        %1533 = vmatpush1.msra.mxu0 %v306
        %1534 = vmatprep.mubr.f32.mxu0 %v1249
        %1535 = vmatmul.mubr.f32.gmra.mrb[0].mxu0 %v1247
        %v1536 = vpop.f32.mrb[0].mxu0
        %v1537 = vadd.f32 0.0, %v1536
        %v1538 = vpop.f32.mrb[0].mxu0
        %1539 = vmatprep.mubr.f32.mxu0 %v1253
        %1540 = vmatmul.mubr.f32.gmra.mrb[0].mxu0 %v1251
        %v1541 = vpop.f32.mrb[0].mxu0
        %v1542 = vadd.f32 0.0, %v1541
        %v1543 = vpop.f32.mrb[0].mxu0
        %1544 = vmatprep.mubr.f32.mxu0 %v1257
        %1545 = vmatmul.mubr.f32.gmra.mrb[0].mxu0 %v1255
        %v1546 = vpop.f32.mrb[0].mxu0
        %v1547 = vadd.f32 0.0, %v1546
        %v1548 = vpop.f32.mrb[0].mxu0
        %1549 = vmatprep.mubr.f32.mxu0 %v1261
        %1550 = vmatmul.mubr.f32.gmra.mrb[0].mxu0 %v1259
        %v1551 = vpop.f32.mrb[0].mxu0
        %v1552 = vadd.f32 0.0, %v1551
        %v1553 = vpop.f32.mrb[0].mxu0
        %1554 = vmatprep.mubr.f32.mxu0 %v1265
        %1555 = vmatmul.mubr.f32.gmra.mrb[0].mxu0 %v1263
        %v1556 = vpop.f32.mrb[0].mxu0
        %v1557 = vadd.f32 0.0, %v1556
        %v1558 = vpop.f32.mrb[0].mxu0
        %1559 = vmatprep.mubr.f32.mxu0 %v1269
        %1560 = vmatmul.mubr.f32.gmra.mrb[0].mxu0 %v1267
        %v1561 = vpop.f32.mrb[0].mxu0
        %v1562 = vadd.f32 0.0, %v1561
        %v1563 = vpop.f32.mrb[0].mxu0
        %1564 = vmatprep.mubr.f32.mxu0 %v1273
        %1565 = vmatmul.mubr.f32.gmra.mrb[0].mxu0 %v1271
        %v1566 = vpop.f32.mrb[0].mxu0
        %v1567 = vadd.f32 0.0, %v1566
        %v1568 = vpop.f32.mrb[0].mxu0
        %1569 = vmatprep.mubr.f32.mxu0 %v1277
        %1570 = vmatmul.mubr.f32.gmra.mrb[0].mxu0 %v1275
        %v1571 = vpop.f32.mrb[0].mxu0
        %v1572 = vadd.f32 0.0, %v1571
        %v1573 = vpop.f32.mrb[0].mxu0
        %1574 = vmatprep.mubr.f32.mxu0 %v1281
        %1575 = vmatmul.mubr.f32.gmra.mrb[0].mxu0 %v1279
        %v1576 = vpop.f32.mrb[0].mxu0
        %v1577 = vadd.f32 0.0, %v1576
        %v1578 = vpop.f32.mrb[0].mxu0
        %1579 = vmatprep.mubr.f32.mxu0 %v1285
        %1580 = vmatmul.mubr.f32.gmra.mrb[0].mxu0 %v1283
        %v1581 = vpop.f32.mrb[0].mxu0
        %v1582 = vadd.f32 0.0, %v1581
        %v1583 = vpop.f32.mrb[0].mxu0
        %1584 = vmatprep.mubr.f32.mxu0 %v1289
        %1585 = vmatmul.mubr.f32.gmra.mrb[0].mxu0 %v1287
        %v1586 = vpop.f32.mrb[0].mxu0
        %v1587 = vadd.f32 0.0, %v1586
        %v1588 = vpop.f32.mrb[0].mxu0
        %1589 = vmatprep.mubr.f32.mxu0 %v1293
        %1590 = vmatmul.mubr.f32.gmra.mrb[0].mxu0 %v1291
        %v1591 = vpop.f32.mrb[0].mxu0
        %v1592 = vadd.f32 0.0, %v1591
        %v1593 = vpop.f32.mrb[0].mxu0
        %1594 = vmatprep.mubr.f32.mxu0 %v1297
        %1595 = vmatmul.mubr.f32.gmra.mrb[0].mxu0 %v1295
        %v1596 = vpop.f32.mrb[0].mxu0
        %v1597 = vadd.f32 0.0, %v1596
        %v1598 = vpop.f32.mrb[0].mxu0
        %1599 = vmatprep.mubr.f32.mxu0 %v1301
        %1600 = vmatmul.mubr.f32.gmra.mrb[0].mxu0 %v1299
        %v1601 = vpop.f32.mrb[0].mxu0
        %v1602 = vadd.f32 0.0, %v1601
        %v1603 = vpop.f32.mrb[0].mxu0
        %1604 = vmatprep.mubr.f32.mxu0 %v1305
        %1605 = vmatmul.mubr.f32.gmra.mrb[0].mxu0 %v1303
        %v1606 = vpop.f32.mrb[0].mxu0
        %v1607 = vadd.f32 0.0, %v1606
        %v1608 = vpop.f32.mrb[0].mxu0
        %1609 = vmatprep.mubr.f32.mxu0 %v1309
        %1610 = vmatmul.mubr.f32.gmra.mrb[0].mxu0 %v1307
        %v1611 = vpop.f32.mrb[0].mxu0
        %v1612 = vadd.f32 0.0, %v1611
        %v1613 = vpop.f32.mrb[0].mxu0
        %1614 = vmatprep.mubr.f32.mxu0 %v1313
        %1615 = vmatmul.mubr.f32.gmra.mrb[0].mxu0 %v1311
        %v1616 = vpop.f32.mrb[0].mxu0
        %v1617 = vadd.f32 0.0, %v1616
        %v1618 = vpop.f32.mrb[0].mxu0
        %1619 = vmatprep.mubr.f32.mxu0 %v1317
        %1620 = vmatmul.mubr.f32.gmra.mrb[0].mxu0 %v1315
        %v1621 = vpop.f32.mrb[0].mxu0
        %v1622 = vadd.f32 0.0, %v1621
        %v1623 = vpop.f32.mrb[0].mxu0
        %1624 = vmatprep.mubr.f32.mxu0 %v1321
        %1625 = vmatmul.mubr.f32.gmra.mrb[0].mxu0 %v1319
        %v1626 = vpop.f32.mrb[0].mxu0
        %v1627 = vadd.f32 0.0, %v1626
        %v1628 = vpop.f32.mrb[0].mxu0
        %1629 = vmatprep.mubr.f32.mxu0 %v1325
        %1630 = vmatmul.mubr.f32.gmra.mrb[0].mxu0 %v1323
        %v1631 = vpop.f32.mrb[0].mxu0
        %v1632 = vadd.f32 0.0, %v1631
        %v1633 = vpop.f32.mrb[0].mxu0
        %1634 = vmatprep.mubr.f32.mxu0 %v1329
        %1635 = vmatmul.mubr.f32.gmra.mrb[0].mxu0 %v1327
        %v1636 = vpop.f32.mrb[0].mxu0
        %v1637 = vadd.f32 0.0, %v1636
        %v1638 = vpop.f32.mrb[0].mxu0
        %1639 = vmatprep.mubr.f32.mxu0 %v1333
        %1640 = vmatmul.mubr.f32.gmra.mrb[0].mxu0 %v1331
        %v1641 = vpop.f32.mrb[0].mxu0
        %v1642 = vadd.f32 0.0, %v1641
        %v1643 = vpop.f32.mrb[0].mxu0
        %1644 = vmatprep.mubr.f32.mxu0 %v1337
        %1645 = vmatmul.mubr.f32.gmra.mrb[0].mxu0 %v1335
        %v1646 = vpop.f32.mrb[0].mxu0
        %v1647 = vadd.f32 0.0, %v1646
        %v1648 = vpop.f32.mrb[0].mxu0
        %1649 = vmatprep.mubr.f32.mxu0 %v1341
        %1650 = vmatmul.mubr.f32.gmra.mrb[0].mxu0 %v1339
        %v1651 = vpop.f32.mrb[0].mxu0
        %v1652 = vadd.f32 0.0, %v1651
        %v1653 = vpop.f32.mrb[0].mxu0
        %1654 = vmatprep.mubr.f32.mxu0 %v1345
        %1655 = vmatmul.mubr.f32.gmra.mrb[0].mxu0 %v1343
        %v1656 = vpop.f32.mrb[0].mxu0
        %v1657 = vadd.f32 0.0, %v1656
        %v1658 = vpop.f32.mrb[0].mxu0
        %1659 = vmatprep.mubr.f32.mxu0 %v1349
        %1660 = vmatmul.mubr.f32.gmra.mrb[0].mxu0 %v1347
        %v1661 = vpop.f32.mrb[0].mxu0
        %v1662 = vadd.f32 0.0, %v1661
        %v1663 = vpop.f32.mrb[0].mxu0
        %1664 = vmatprep.mubr.f32.mxu0 %v1353
        %1665 = vmatmul.mubr.f32.gmra.mrb[0].mxu0 %v1351
        %v1666 = vpop.f32.mrb[0].mxu0
        %v1667 = vadd.f32 0.0, %v1666
        %v1668 = vpop.f32.mrb[0].mxu0
        %1669 = vmatprep.mubr.f32.mxu0 %v1357
        %1670 = vmatmul.mubr.f32.gmra.mrb[0].mxu0 %v1355
        %v1671 = vpop.f32.mrb[0].mxu0
        %v1672 = vadd.f32 0.0, %v1671
        %v1673 = vpop.f32.mrb[0].mxu0
        %1674 = vmatprep.mubr.f32.mxu0 %v1361
        %1675 = vmatmul.mubr.f32.gmra.mrb[0].mxu0 %v1359
        %v1676 = vpop.f32.mrb[0].mxu0
        %v1677 = vadd.f32 0.0, %v1676
        %v1678 = vpop.f32.mrb[0].mxu0
        %1679 = vmatprep.mubr.f32.mxu0 %v1365
        %1680 = vmatmul.mubr.f32.gmra.mrb[0].mxu0 %v1363
        %v1681 = vpop.f32.mrb[0].mxu0
        %v1682 = vadd.f32 0.0, %v1681
        %v1683 = vpop.f32.mrb[0].mxu0
        %1684 = vmatprep.mubr.f32.mxu0 %v1369
        %1685 = vmatmul.mubr.f32.gmra.mrb[0].mxu0 %v1367
        %v1686 = vpop.f32.mrb[0].mxu0
        %v1687 = vadd.f32 0.0, %v1686
        %v1688 = vpop.f32.mrb[0].mxu0
        %1689 = vmatprep.mubr.f32.mxu0 %v1373
        %1690 = vmatmul.mubr.f32.gmra.mrb[0].mxu0 %v1371
        %v1691 = vpop.f32.mrb[0].mxu0
        %v1692 = vadd.f32 0.0, %v1691
        %v1693 = vpop.f32.mrb[0].mxu0
        %1694 = vdwg.mxu0
        %v1695 = vrcp.pop %v1376
        %v1696 = vrcp.pop %v1379
        %v1697 = vrcp.pop %v1382
        %v1698 = vrcp.pop %v1385
        %v1699 = vrcp.pop %v1388
        %v1700 = vrcp.pop %v1391
        %v1701 = vrcp.pop %v1394
        %v1702 = vrcp.pop %v1397
        %v1703 = vrcp.pop %v1400
        %v1704 = vrcp.pop %v1403
        %v1705 = vrcp.pop %v1406
        %v1706 = vrcp.pop %v1409
        %v1707 = vrcp.pop %v1412
        %v1708 = vrcp.pop %v1415
        %v1709 = vrcp.pop %v1418
        %v1710 = vrcp.pop %v1421
        %v1711 = vrcp.pop %v1424
        %v1712 = vrcp.pop %v1427
        %v1713 = vrcp.pop %v1430
        %v1714 = vrcp.pop %v1433
        %v1715 = vrcp.pop %v1436
        %v1716 = vrcp.pop %v1439
        %v1717 = vrcp.pop %v1442
        %v1718 = vrcp.pop %v1445
        %v1719 = vrcp.pop %v1448
        %v1720 = vrcp.pop %v1451
        %v1721 = vrcp.pop %v1454
        %v1722 = vrcp.pop %v1457
        %v1723 = vrcp.pop %v1460
        %v1724 = vrcp.pop %v1463
        %v1725 = vrcp.pop %v1466
        %v1726 = vrcp.pop %v1469
        %v1727 = vmul.f32 %v1537, %v1695
        %v1728 = vmul.f32 %v1542, %v1696
        %v1729 = vmul.f32 %v1547, %v1697
        %v1730 = vmul.f32 %v1552, %v1698
        %v1731 = vmul.f32 %v1557, %v1699
        %v1732 = vmul.f32 %v1562, %v1700
        %v1733 = vmul.f32 %v1567, %v1701
        %v1734 = vmul.f32 %v1572, %v1702
        %v1735 = vmul.f32 %v1577, %v1703
        %v1736 = vmul.f32 %v1582, %v1704
        %v1737 = vmul.f32 %v1587, %v1705
        %v1738 = vmul.f32 %v1592, %v1706
        %v1739 = vmul.f32 %v1597, %v1707
        %v1740 = vmul.f32 %v1602, %v1708
        %v1741 = vmul.f32 %v1607, %v1709
        %v1742 = vmul.f32 %v1612, %v1710
        %v1743 = vmul.f32 %v1617, %v1711
        %v1744 = vmul.f32 %v1622, %v1712
        %v1745 = vmul.f32 %v1627, %v1713
        %v1746 = vmul.f32 %v1632, %v1714
        %v1747 = vmul.f32 %v1637, %v1715
        %v1748 = vmul.f32 %v1642, %v1716
        %v1749 = vmul.f32 %v1647, %v1717
        %v1750 = vmul.f32 %v1652, %v1718
        %v1751 = vmul.f32 %v1657, %v1719
        %v1752 = vmul.f32 %v1662, %v1720
        %v1753 = vmul.f32 %v1667, %v1721
        %v1754 = vmul.f32 %v1672, %v1722
        %v1755 = vmul.f32 %v1677, %v1723
        %v1756 = vmul.f32 %v1682, %v1724
        %v1757 = vmul.f32 %v1687, %v1725
        %v1758 = vmul.f32 %v1692, %v1726
        %1759 = vst.msk [vmem:[#allocation2] sm:$0xff] %vm315, 0.0
        %1760 = vst.msk [vmem:[#allocation2 + $0x8] sm:$0xff] %vm315, 0.0
        %1761 = vst.msk [vmem:[#allocation2 + $0x10] sm:$0xff] %vm315, 0.0
        %1762 = vst.msk [vmem:[#allocation2 + $0x18] sm:$0xff] %vm315, 0.0
        %1763 = vst.msk [vmem:[#allocation2 + $0x20] sm:$0xff] %vm315, 0.0
        %1764 = vst.msk [vmem:[#allocation2 + $0x28] sm:$0xff] %vm315, 0.0
        %1765 = vst.msk [vmem:[#allocation2 + $0x30] sm:$0xff] %vm315, 0.0
        %1766 = vst.msk [vmem:[#allocation2 + $0x38] sm:$0xff] %vm315, 0.0
        %1767 = vst.msk [vmem:[#allocation2 + $0x40] sm:$0xff] %vm315, 0.0
        %1768 = vst.msk [vmem:[#allocation2 + $0x48] sm:$0xff] %vm315, 0.0
        %1769 = vst.msk [vmem:[#allocation2 + $0x50] sm:$0xff] %vm315, 0.0
        %1770 = vst.msk [vmem:[#allocation2 + $0x58] sm:$0xff] %vm315, 0.0
        %1771 = vst.msk [vmem:[#allocation2 + $0x60] sm:$0xff] %vm315, 0.0
        %1772 = vst.msk [vmem:[#allocation2 + $0x68] sm:$0xff] %vm315, 0.0
        %1773 = vst.msk [vmem:[#allocation2 + $0x70] sm:$0xff] %vm315, 0.0
        %1774 = vst.msk [vmem:[#allocation2 + $0x78] sm:$0xff] %vm315, 0.0
        %1775 = vst.msk [vmem:[#allocation2 + $0x80] sm:$0xff] %vm315, 0.0
        %1776 = vst.msk [vmem:[#allocation2 + $0x88] sm:$0xff] %vm315, 0.0
        %1777 = vst.msk [vmem:[#allocation2 + $0x90] sm:$0xff] %vm315, 0.0
        %1778 = vst.msk [vmem:[#allocation2 + $0x98] sm:$0xff] %vm315, 0.0
        %1779 = vst.msk [vmem:[#allocation2 + $0xa0] sm:$0xff] %vm315, 0.0
        %1780 = vst.msk [vmem:[#allocation2 + $0xa8] sm:$0xff] %vm315, 0.0
        %1781 = vst.msk [vmem:[#allocation2 + $0xb0] sm:$0xff] %vm315, 0.0
        %1782 = vst.msk [vmem:[#allocation2 + $0xb8] sm:$0xff] %vm315, 0.0
        %1783 = vst.msk [vmem:[#allocation2 + $0xc0] sm:$0xff] %vm315, 0.0
        %1784 = vst.msk [vmem:[#allocation2 + $0xc8] sm:$0xff] %vm315, 0.0
        %1785 = vst.msk [vmem:[#allocation2 + $0xd0] sm:$0xff] %vm315, 0.0
        %1786 = vst.msk [vmem:[#allocation2 + $0xd8] sm:$0xff] %vm315, 0.0
        %1787 = vst.msk [vmem:[#allocation2 + $0xe0] sm:$0xff] %vm315, 0.0
        %1788 = vst.msk [vmem:[#allocation2 + $0xe8] sm:$0xff] %vm315, 0.0
        %1789 = vst.msk [vmem:[#allocation2 + $0xf0] sm:$0xff] %vm315, 0.0
        %1790 = vst.msk [vmem:[#allocation2 + $0xf8] sm:$0xff] %vm315, 0.0
        %1791 = vst.msk [vmem:[#allocation2 + $0x100] sm:$0xff] %vm315, 0.0
        %1792 = vst.msk [vmem:[#allocation2 + $0x108] sm:$0xff] %vm315, 0.0
        %1793 = vst.msk [vmem:[#allocation2 + $0x110] sm:$0xff] %vm315, 0.0
        %1794 = vst.msk [vmem:[#allocation2 + $0x118] sm:$0xff] %vm315, 0.0
        %1795 = vst.msk [vmem:[#allocation2 + $0x120] sm:$0xff] %vm315, 0.0
        %1796 = vst.msk [vmem:[#allocation2 + $0x128] sm:$0xff] %vm315, 0.0
        %1797 = vst.msk [vmem:[#allocation2 + $0x130] sm:$0xff] %vm315, 0.0
        %1798 = vst.msk [vmem:[#allocation2 + $0x138] sm:$0xff] %vm315, 0.0
        %1799 = vst.msk [vmem:[#allocation2 + $0x140] sm:$0xff] %vm315, 0.0
        %1800 = vst.msk [vmem:[#allocation2 + $0x148] sm:$0xff] %vm315, 0.0
        %1801 = vst.msk [vmem:[#allocation2 + $0x150] sm:$0xff] %vm315, 0.0
        %1802 = vst.msk [vmem:[#allocation2 + $0x158] sm:$0xff] %vm315, 0.0
        %1803 = vst.msk [vmem:[#allocation2 + $0x160] sm:$0xff] %vm315, 0.0
        %1804 = vst.msk [vmem:[#allocation2 + $0x168] sm:$0xff] %vm315, 0.0
        %1805 = vst.msk [vmem:[#allocation2 + $0x170] sm:$0xff] %vm315, 0.0
        %1806 = vst.msk [vmem:[#allocation2 + $0x178] sm:$0xff] %vm315, 0.0
        %1807 = vst.msk [vmem:[#allocation2 + $0x180] sm:$0xff] %vm315, 0.0
        %1808 = vst.msk [vmem:[#allocation2 + $0x188] sm:$0xff] %vm315, 0.0
        %1809 = vst.msk [vmem:[#allocation2 + $0x190] sm:$0xff] %vm315, 0.0
        %1810 = vst.msk [vmem:[#allocation2 + $0x198] sm:$0xff] %vm315, 0.0
        %1811 = vst.msk [vmem:[#allocation2 + $0x1a0] sm:$0xff] %vm315, 0.0
        %1812 = vst.msk [vmem:[#allocation2 + $0x1a8] sm:$0xff] %vm315, 0.0
        %1813 = vst.msk [vmem:[#allocation2 + $0x1b0] sm:$0xff] %vm315, 0.0
        %1814 = vst.msk [vmem:[#allocation2 + $0x1b8] sm:$0xff] %vm315, 0.0
        %1815 = vst.msk [vmem:[#allocation2 + $0x1c0] sm:$0xff] %vm315, 0.0
        %1816 = vst.msk [vmem:[#allocation2 + $0x1c8] sm:$0xff] %vm315, 0.0
        %1817 = vst.msk [vmem:[#allocation2 + $0x1d0] sm:$0xff] %vm315, 0.0
        %1818 = vst.msk [vmem:[#allocation2 + $0x1d8] sm:$0xff] %vm315, 0.0
        %1819 = vst.msk [vmem:[#allocation2 + $0x1e0] sm:$0xff] %vm315, 0.0
        %1820 = vst.msk [vmem:[#allocation2 + $0x1e8] sm:$0xff] %vm315, 0.0
        %1821 = vst.msk [vmem:[#allocation2 + $0x1f0] sm:$0xff] %vm315, 0.0
        %1822 = vst.msk [vmem:[#allocation2 + $0x1f8] sm:$0xff] %vm315, 0.0
        %1823 = vst.msk [vmem:[#allocation2 + $0x200] sm:$0xff] %vm315, 0.0
        %1824 = vst.msk [vmem:[#allocation2 + $0x208] sm:$0xff] %vm315, 0.0
        %1825 = vst.msk [vmem:[#allocation2 + $0x210] sm:$0xff] %vm315, 0.0
        %1826 = vst.msk [vmem:[#allocation2 + $0x218] sm:$0xff] %vm315, 0.0
        %1827 = vst.msk [vmem:[#allocation2 + $0x220] sm:$0xff] %vm315, 0.0
        %1828 = vst.msk [vmem:[#allocation2 + $0x228] sm:$0xff] %vm315, 0.0
        %1829 = vst.msk [vmem:[#allocation2 + $0x230] sm:$0xff] %vm315, 0.0
        %1830 = vst.msk [vmem:[#allocation2 + $0x238] sm:$0xff] %vm315, 0.0
        %s1831 = scalar_lea.vmem [#allocation2], 32
        %1832 = vst.msk [vmem:[%s1831 + $0x8] sm:$0xff] %vm315, %v1727
        %1833 = vst.msk [vmem:[%s1831 + $0x10] sm:$0xff] %vm315, %v1728
        %1834 = vst.msk [vmem:[%s1831 + $0x28] sm:$0xff] %vm315, %v1729
        %1835 = vst.msk [vmem:[%s1831 + $0x30] sm:$0xff] %vm315, %v1730
        %1836 = vst.msk [vmem:[%s1831 + $0x48] sm:$0xff] %vm315, %v1731
        %1837 = vst.msk [vmem:[%s1831 + $0x50] sm:$0xff] %vm315, %v1732
        %1838 = vst.msk [vmem:[%s1831 + $0x68] sm:$0xff] %vm315, %v1733
        %1839 = vst.msk [vmem:[%s1831 + $0x70] sm:$0xff] %vm315, %v1734
        %1840 = vst.msk [vmem:[%s1831 + $0x88] sm:$0xff] %vm315, %v1735
        %1841 = vst.msk [vmem:[%s1831 + $0x90] sm:$0xff] %vm315, %v1736
        %1842 = vst.msk [vmem:[%s1831 + $0xa8] sm:$0xff] %vm315, %v1737
        %1843 = vst.msk [vmem:[%s1831 + $0xb0] sm:$0xff] %vm315, %v1738
        %1844 = vst.msk [vmem:[%s1831 + $0xc8] sm:$0xff] %vm315, %v1739
        %1845 = vst.msk [vmem:[%s1831 + $0xd0] sm:$0xff] %vm315, %v1740
        %1846 = vst.msk [vmem:[%s1831 + $0xe8] sm:$0xff] %vm315, %v1741
        %1847 = vst.msk [vmem:[%s1831 + $0xf0] sm:$0xff] %vm315, %v1742
        %1848 = vst.msk [vmem:[%s1831 + $0x108] sm:$0xff] %vm315, %v1743
        %1849 = vst.msk [vmem:[%s1831 + $0x110] sm:$0xff] %vm315, %v1744
        %1850 = vst.msk [vmem:[%s1831 + $0x128] sm:$0xff] %vm315, %v1745
        %1851 = vst.msk [vmem:[%s1831 + $0x130] sm:$0xff] %vm315, %v1746
        %1852 = vst.msk [vmem:[%s1831 + $0x148] sm:$0xff] %vm315, %v1747
        %1853 = vst.msk [vmem:[%s1831 + $0x150] sm:$0xff] %vm315, %v1748
        %1854 = vst.msk [vmem:[%s1831 + $0x168] sm:$0xff] %vm315, %v1749
        %1855 = vst.msk [vmem:[%s1831 + $0x170] sm:$0xff] %vm315, %v1750
        %1856 = vst.msk [vmem:[%s1831 + $0x188] sm:$0xff] %vm315, %v1751
        %1857 = vst.msk [vmem:[%s1831 + $0x190] sm:$0xff] %vm315, %v1752
        %1858 = vst.msk [vmem:[%s1831 + $0x1a8] sm:$0xff] %vm315, %v1753
        %1859 = vst.msk [vmem:[%s1831 + $0x1b0] sm:$0xff] %vm315, %v1754
        %1860 = vst.msk [vmem:[%s1831 + $0x1c8] sm:$0xff] %vm315, %v1755
        %1861 = vst.msk [vmem:[%s1831 + $0x1d0] sm:$0xff] %vm315, %v1756
        %1862 = vst.msk [vmem:[%s1831 + $0x1e8] sm:$0xff] %vm315, %v1757
        %1863 = vst.msk [vmem:[%s1831 + $0x1f0] sm:$0xff] %vm315, %v1758
        %v1864 = vld [vmem:[#allocation2] sm:$0xff]
        %v1865 = vld [vmem:[#allocation2 + $0x8] sm:$0xff]
        %v1866 = vld [vmem:[#allocation2 + $0x10] sm:$0xff]
        %v1867 = vld [vmem:[#allocation2 + $0x18] sm:$0xff]
        %v1868 = vld [vmem:[#allocation2 + $0x20] sm:$0xff]
        %v1869 = vld [vmem:[#allocation2 + $0x28] sm:$0xff]
        %v1870 = vld [vmem:[#allocation2 + $0x30] sm:$0xff]
        %v1871 = vld [vmem:[#allocation2 + $0x38] sm:$0xff]
        %v1872 = vld [vmem:[#allocation2 + $0x40] sm:$0xff]
        %v1873 = vld [vmem:[#allocation2 + $0x48] sm:$0xff]
        %v1874 = vld [vmem:[#allocation2 + $0x50] sm:$0xff]
        %v1875 = vld [vmem:[#allocation2 + $0x58] sm:$0xff]
        %v1876 = vld [vmem:[#allocation2 + $0x60] sm:$0xff]
        %v1877 = vld [vmem:[#allocation2 + $0x68] sm:$0xff]
        %v1878 = vld [vmem:[#allocation2 + $0x70] sm:$0xff]
        %v1879 = vld [vmem:[#allocation2 + $0x78] sm:$0xff]
        %v1880 = vld [vmem:[#allocation2 + $0x80] sm:$0xff]
        %v1881 = vld [vmem:[#allocation2 + $0x88] sm:$0xff]
        %v1882 = vld [vmem:[#allocation2 + $0x90] sm:$0xff]
        %v1883 = vld [vmem:[#allocation2 + $0x98] sm:$0xff]
        %v1884 = vld [vmem:[#allocation2 + $0xa0] sm:$0xff]
        %v1885 = vld [vmem:[#allocation2 + $0xa8] sm:$0xff]
        %v1886 = vld [vmem:[#allocation2 + $0xb0] sm:$0xff]
        %v1887 = vld [vmem:[#allocation2 + $0xb8] sm:$0xff]
        %v1888 = vld [vmem:[#allocation2 + $0xc0] sm:$0xff]
        %v1889 = vld [vmem:[#allocation2 + $0xc8] sm:$0xff]
        %v1890 = vld [vmem:[#allocation2 + $0xd0] sm:$0xff]
        %v1891 = vld [vmem:[#allocation2 + $0xd8] sm:$0xff]
        %v1892 = vld [vmem:[#allocation2 + $0xe0] sm:$0xff]
        %v1893 = vld [vmem:[#allocation2 + $0xe8] sm:$0xff]
        %v1894 = vld [vmem:[#allocation2 + $0xf0] sm:$0xff]
        %v1895 = vld [vmem:[#allocation2 + $0xf8] sm:$0xff]
        %v1896 = vld [vmem:[#allocation2 + $0x100] sm:$0xff]
        %v1897 = vld [vmem:[#allocation2 + $0x108] sm:$0xff]
        %v1898 = vld [vmem:[#allocation2 + $0x110] sm:$0xff]
        %v1899 = vld [vmem:[#allocation2 + $0x118] sm:$0xff]
        %v1900 = vld [vmem:[#allocation2 + $0x120] sm:$0xff]
        %v1901 = vld [vmem:[#allocation2 + $0x128] sm:$0xff]
        %v1902 = vld [vmem:[#allocation2 + $0x130] sm:$0xff]
        %v1903 = vld [vmem:[#allocation2 + $0x138] sm:$0xff]
        %v1904 = vld [vmem:[#allocation2 + $0x140] sm:$0xff]
        %v1905 = vld [vmem:[#allocation2 + $0x148] sm:$0xff]
        %v1906 = vld [vmem:[#allocation2 + $0x150] sm:$0xff]
        %v1907 = vld [vmem:[#allocation2 + $0x158] sm:$0xff]
        %v1908 = vld [vmem:[#allocation2 + $0x160] sm:$0xff]
        %v1909 = vld [vmem:[#allocation2 + $0x168] sm:$0xff]
        %v1910 = vld [vmem:[#allocation2 + $0x170] sm:$0xff]
        %v1911 = vld [vmem:[#allocation2 + $0x178] sm:$0xff]
        %v1912 = vld [vmem:[#allocation2 + $0x180] sm:$0xff]
        %v1913 = vld [vmem:[#allocation2 + $0x188] sm:$0xff]
        %v1914 = vld [vmem:[#allocation2 + $0x190] sm:$0xff]
        %v1915 = vld [vmem:[#allocation2 + $0x198] sm:$0xff]
        %v1916 = vld [vmem:[#allocation2 + $0x1a0] sm:$0xff]
        %v1917 = vld [vmem:[#allocation2 + $0x1a8] sm:$0xff]
        %v1918 = vld [vmem:[#allocation2 + $0x1b0] sm:$0xff]
        %v1919 = vld [vmem:[#allocation2 + $0x1b8] sm:$0xff]
        %v1920 = vld [vmem:[#allocation2 + $0x1c0] sm:$0xff]
        %v1921 = vld [vmem:[#allocation2 + $0x1c8] sm:$0xff]
        %v1922 = vld [vmem:[#allocation2 + $0x1d0] sm:$0xff]
        %v1923 = vld [vmem:[#allocation2 + $0x1d8] sm:$0xff]
        %v1924 = vld [vmem:[#allocation2 + $0x1e0] sm:$0xff]
        %v1925 = vld [vmem:[#allocation2 + $0x1e8] sm:$0xff]
        %v1926 = vld [vmem:[#allocation2 + $0x1f0] sm:$0xff]
        %v1927 = vld [vmem:[#allocation2 + $0x1f8] sm:$0xff]
        %v1928 = vld [vmem:[#allocation2 + $0x200] sm:$0xff]
        %v1929 = vld [vmem:[#allocation2 + $0x208] sm:$0xff]
        %v1930 = vld [vmem:[#allocation2 + $0x210] sm:$0xff]
        %v1931 = vld [vmem:[#allocation2 + $0x218] sm:$0xff]
        %v1932 = vld [vmem:[#allocation2 + $0x220] sm:$0xff]
        %v1933 = vld [vmem:[#allocation2 + $0x228] sm:$0xff]
        %v1934 = vld [vmem:[#allocation2 + $0x230] sm:$0xff]
        %v1935 = vld [vmem:[#allocation2 + $0x238] sm:$0xff]
        %vm1984 = vcmask 1040384
        %v1985 = vrot.slane %v1864, 7
        %v1986 = vrot.slane %v1865, 7
        %v1987 = vsel %vm1984, %v1985, %v1986
        %v1988 = vrot.slane %v1866, 7
        %v1989 = vsel %vm1984, %v1986, %v1988
        %v1990 = vrot.slane %v1868, 7
        %v1991 = vrot.slane %v1869, 7
        %v1992 = vsel %vm1984, %v1990, %v1991
        %v1993 = vrot.slane %v1870, 7
        %v1994 = vsel %vm1984, %v1991, %v1993
        %v1995 = vrot.slane %v1872, 7
        %v1996 = vrot.slane %v1873, 7
        %v1997 = vsel %vm1984, %v1995, %v1996
        %v1998 = vrot.slane %v1874, 7
        %v1999 = vsel %vm1984, %v1996, %v1998
        %v2000 = vrot.slane %v1876, 7
        %v2001 = vrot.slane %v1877, 7
        %v2002 = vsel %vm1984, %v2000, %v2001
        %v2003 = vrot.slane %v1878, 7
        %v2004 = vsel %vm1984, %v2001, %v2003
        %v2005 = vrot.slane %v1880, 7
        %v2006 = vrot.slane %v1881, 7
        %v2007 = vsel %vm1984, %v2005, %v2006
        %v2008 = vrot.slane %v1882, 7
        %v2009 = vsel %vm1984, %v2006, %v2008
        %v2010 = vrot.slane %v1884, 7
        %v2011 = vrot.slane %v1885, 7
        %v2012 = vsel %vm1984, %v2010, %v2011
        %v2013 = vrot.slane %v1886, 7
        %v2014 = vsel %vm1984, %v2011, %v2013
        %v2015 = vrot.slane %v1888, 7
        %v2016 = vrot.slane %v1889, 7
        %v2017 = vsel %vm1984, %v2015, %v2016
        %v2018 = vrot.slane %v1890, 7
        %v2019 = vsel %vm1984, %v2016, %v2018
        %v2020 = vrot.slane %v1892, 7
        %v2021 = vrot.slane %v1893, 7
        %v2022 = vsel %vm1984, %v2020, %v2021
        %v2023 = vrot.slane %v1894, 7
        %v2024 = vsel %vm1984, %v2021, %v2023
        %v2025 = vrot.slane %v1896, 7
        %v2026 = vrot.slane %v1897, 7
        %v2027 = vsel %vm1984, %v2025, %v2026
        %v2028 = vrot.slane %v1898, 7
        %v2029 = vsel %vm1984, %v2026, %v2028
        %v2030 = vrot.slane %v1900, 7
        %v2031 = vrot.slane %v1901, 7
        %v2032 = vsel %vm1984, %v2030, %v2031
        %v2033 = vrot.slane %v1902, 7
        %v2034 = vsel %vm1984, %v2031, %v2033
        %v2035 = vrot.slane %v1904, 7
        %v2036 = vrot.slane %v1905, 7
        %v2037 = vsel %vm1984, %v2035, %v2036
        %v2038 = vrot.slane %v1906, 7
        %v2039 = vsel %vm1984, %v2036, %v2038
        %v2040 = vrot.slane %v1908, 7
        %v2041 = vrot.slane %v1909, 7
        %v2042 = vsel %vm1984, %v2040, %v2041
        %v2043 = vrot.slane %v1910, 7
        %v2044 = vsel %vm1984, %v2041, %v2043
        %v2045 = vrot.slane %v1912, 7
        %v2046 = vrot.slane %v1913, 7
        %v2047 = vsel %vm1984, %v2045, %v2046
        %v2048 = vrot.slane %v1914, 7
        %v2049 = vsel %vm1984, %v2046, %v2048
        %v2050 = vrot.slane %v1916, 7
        %v2051 = vrot.slane %v1917, 7
        %v2052 = vsel %vm1984, %v2050, %v2051
        %v2053 = vrot.slane %v1918, 7
        %v2054 = vsel %vm1984, %v2051, %v2053
        %v2055 = vrot.slane %v1920, 7
        %v2056 = vrot.slane %v1921, 7
        %v2057 = vsel %vm1984, %v2055, %v2056
        %v2058 = vrot.slane %v1922, 7
        %v2059 = vsel %vm1984, %v2056, %v2058
        %v2060 = vrot.slane %v1924, 7
        %v2061 = vrot.slane %v1925, 7
        %v2062 = vsel %vm1984, %v2060, %v2061
        %v2063 = vrot.slane %v1926, 7
        %v2064 = vsel %vm1984, %v2061, %v2063
        %v2065 = vld [vmem:[%s3] sm:$0xff]
        %v2066 = vld [vmem:[%s3 + $0x8] sm:$0xff]
        %v2067 = vld [vmem:[%s3 + $0x10] sm:$0xff]
        %v2068 = vld [vmem:[%s3 + $0x18] sm:$0xff]
        %v2069 = vld [vmem:[%s3 + $0x20] sm:$0xff]
        %v2070 = vld [vmem:[%s3 + $0x28] sm:$0xff]
        %v2071 = vld [vmem:[%s3 + $0x30] sm:$0xff]
        %v2072 = vld [vmem:[%s3 + $0x38] sm:$0xff]
        %v2076 = vrot.slane %v1928, 7
        %v2077 = vrot.slane %v1929, 7
        %v2078 = vsel %vm1984, %v2076, %v2077
        %v2079 = vrot.slane %v1930, 7
        %v2080 = vsel %vm1984, %v2077, %v2079
        %s2081 = scalar_lea.vmem %s3, 192
        %v2082 = vld [vmem:[%s2081] sm:$0xff]
        %v2083 = vld [vmem:[%s2081 + $0x8] sm:$0xff]
        %v2084 = vld [vmem:[%s2081 + $0x10] sm:$0xff]
        %v2085 = vld [vmem:[%s2081 + $0x18] sm:$0xff]
        %v2086 = vld [vmem:[%s2081 + $0x20] sm:$0xff]
        %v2087 = vld [vmem:[%s2081 + $0x28] sm:$0xff]
        %v2088 = vld [vmem:[%s2081 + $0x30] sm:$0xff]
        %v2089 = vld [vmem:[%s2081 + $0x38] sm:$0xff]
        %v2090 = vsel %vm315, %v1992, 0
        %v2092 = vsel %vm315, %v1994, 0
        %v2094 = vsel %vm315, %v1997, 0
        %v2096 = vsel %vm315, %v1999, 0
        %v2098 = vsel %vm315, %v2002, 0
        %v2100 = vsel %vm315, %v2004, 0
        %v2102 = vsel %vm315, %v2007, 0
        %v2104 = vsel %vm315, %v2009, 0
        %v2106 = vsel %vm315, %v2012, 0
        %v2108 = vsel %vm315, %v2014, 0
        %v2110 = vsel %vm315, %v2017, 0
        %v2112 = vsel %vm315, %v2019, 0
        %v2114 = vsel %vm315, %v2022, 0
        %v2116 = vsel %vm315, %v2024, 0
        %v2118 = vsel %vm315, %v2027, 0
        %v2120 = vsel %vm315, %v2029, 0
        %v2122 = vsel %vm315, %v2032, 0
        %v2124 = vsel %vm315, %v2034, 0
        %v2126 = vsel %vm315, %v2037, 0
        %v2128 = vsel %vm315, %v2039, 0
        %v2130 = vsel %vm315, %v2042, 0
        %v2132 = vsel %vm315, %v2044, 0
        %v2134 = vsel %vm315, %v2047, 0
        %v2136 = vsel %vm315, %v2049, 0
        %v2138 = vsel %vm315, %v2052, 0
        %v2140 = vsel %vm315, %v2054, 0
        %v2142 = vsel %vm315, %v2057, 0
        %v2144 = vsel %vm315, %v2059, 0
        %v2146 = vsel %vm315, %v2062, 0
        %v2148 = vsel %vm315, %v2064, 0
        %v2150 = vsel %vm315, %v2078, 0
        %v2152 = vsel %vm315, %v2080, 0
        %2154 = vmatprep.subr.mxu0 0.0
        %2155 = vmatpush1.msra.mxu0 %v2082
        %2156 = vmatprep.subr.mxu0 0.0
        %2157 = vmatpush1.msra.mxu0 %v2083
        %2158 = vmatprep.subr.mxu0 0.0
        %2159 = vmatpush1.msra.mxu0 %v2084
        %2160 = vmatprep.subr.mxu0 0.0
        %2161 = vmatpush1.msra.mxu0 %v2085
        %2162 = vmatprep.subr.mxu0 0.0
        %2163 = vmatpush1.msra.mxu0 %v2086
        %2164 = vmatprep.subr.mxu0 0.0
        %2165 = vmatpush1.msra.mxu0 %v2087
        %2166 = vmatprep.subr.mxu0 0.0
        %2167 = vmatpush1.msra.mxu0 %v2088
        %2168 = vmatprep.subr.mxu0 0.0
        %2169 = vmatpush1.msra.mxu0 %v2089
        %2170 = vmatprep.subr.mxu0 0.0
        %2171 = vmatpush1.msra.mxu0 0.0
        %2172 = vmatprep.subr.mxu0 0.0
        %2173 = vmatpush1.msra.mxu0 0.0
        %2174 = vmatprep.subr.mxu0 0.0
        %2175 = vmatpush1.msra.mxu0 0.0
        %2176 = vmatprep.subr.mxu0 0.0
        %2177 = vmatpush1.msra.mxu0 0.0
        %2178 = vmatprep.subr.mxu0 0.0
        %2179 = vmatpush1.msra.mxu0 0.0
        %2180 = vmatprep.subr.mxu0 0.0
        %2181 = vmatpush1.msra.mxu0 0.0
        %2182 = vmatprep.subr.mxu0 0.0
        %2183 = vmatpush1.msra.mxu0 0.0
        %2184 = vmatprep.subr.mxu0 0.0
        %2185 = vmatpush1.msra.mxu0 0.0
        %2186 = vmatprep.subr.mxu0 0.0
        %2187 = vmatpush1.msra.mxu0 0.0
        %2188 = vmatprep.subr.mxu0 0.0
        %2189 = vmatpush1.msra.mxu0 0.0
        %2190 = vmatprep.subr.mxu0 0.0
        %2191 = vmatpush1.msra.mxu0 0.0
        %2192 = vmatprep.subr.mxu0 0.0
        %2193 = vmatpush1.msra.mxu0 0.0
        %2194 = vmatprep.subr.mxu0 0.0
        %2195 = vmatpush1.msra.mxu0 0.0
        %2196 = vmatprep.subr.mxu0 0.0
        %2197 = vmatpush1.msra.mxu0 0.0
        %2198 = vmatprep.subr.mxu0 0.0
        %2199 = vmatpush1.msra.mxu0 0.0
        %2200 = vmatprep.subr.mxu0 0.0
        %2201 = vmatpush1.msra.mxu0 0.0
        %2202 = vmatprep.subr.mxu0 0.0
        %2203 = vmatpush1.msra.mxu0 0.0
        %2204 = vmatprep.subr.mxu0 0.0
        %2205 = vmatpush1.msra.mxu0 0.0
        %2206 = vmatprep.subr.mxu0 0.0
        %2207 = vmatpush1.msra.mxu0 0.0
        %2208 = vmatprep.subr.mxu0 0.0
        %2209 = vmatpush1.msra.mxu0 0.0
        %2210 = vmatprep.subr.mxu0 0.0
        %2211 = vmatpush1.msra.mxu0 0.0
        %2212 = vmatprep.subr.mxu0 0.0
        %2213 = vmatpush1.msra.mxu0 0.0
        %2214 = vmatprep.subr.mxu0 0.0
        %2215 = vmatpush1.msra.mxu0 0.0
        %2216 = vmatprep.subr.mxu0 0.0
        %2217 = vmatpush1.msra.mxu0 0.0
        %2218 = vmatprep.mubr.f32.mxu0 0.0
        %2219 = vmatmul.mubr.f32.gmra.mrb[0].mxu0 %v2090
        %v2220 = vpop.f32.mrb[0].mxu0
        %v2221 = vadd.f32 0.0, %v2220
        %v2222 = vpop.f32.mrb[0].mxu0
        %2223 = vmatprep.mubr.f32.mxu0 0.0
        %2224 = vmatmul.mubr.f32.gmra.mrb[0].mxu0 %v2092
        %v2225 = vpop.f32.mrb[0].mxu0
        %v2226 = vadd.f32 0.0, %v2225
        %v2227 = vpop.f32.mrb[0].mxu0
        %2228 = vmatprep.mubr.f32.mxu0 0.0
        %2229 = vmatmul.mubr.f32.gmra.mrb[0].mxu0 %v2094
        %v2230 = vpop.f32.mrb[0].mxu0
        %v2231 = vadd.f32 0.0, %v2230
        %v2232 = vpop.f32.mrb[0].mxu0
        %2233 = vmatprep.mubr.f32.mxu0 0.0
        %2234 = vmatmul.mubr.f32.gmra.mrb[0].mxu0 %v2096
        %v2235 = vpop.f32.mrb[0].mxu0
        %v2236 = vadd.f32 0.0, %v2235
        %v2237 = vpop.f32.mrb[0].mxu0
        %2238 = vmatprep.mubr.f32.mxu0 0.0
        %2239 = vmatmul.mubr.f32.gmra.mrb[0].mxu0 %v2098
        %v2240 = vpop.f32.mrb[0].mxu0
        %v2241 = vadd.f32 0.0, %v2240
        %v2242 = vpop.f32.mrb[0].mxu0
        %2243 = vmatprep.mubr.f32.mxu0 0.0
        %2244 = vmatmul.mubr.f32.gmra.mrb[0].mxu0 %v2100
        %v2245 = vpop.f32.mrb[0].mxu0
        %v2246 = vadd.f32 0.0, %v2245
        %v2247 = vpop.f32.mrb[0].mxu0
        %2248 = vmatprep.mubr.f32.mxu0 0.0
        %2249 = vmatmul.mubr.f32.gmra.mrb[0].mxu0 %v2102
        %v2250 = vpop.f32.mrb[0].mxu0
        %v2251 = vadd.f32 0.0, %v2250
        %v2252 = vpop.f32.mrb[0].mxu0
        %2253 = vmatprep.mubr.f32.mxu0 0.0
        %2254 = vmatmul.mubr.f32.gmra.mrb[0].mxu0 %v2104
        %v2255 = vpop.f32.mrb[0].mxu0
        %v2256 = vadd.f32 0.0, %v2255
        %v2257 = vpop.f32.mrb[0].mxu0
        %2258 = vmatprep.mubr.f32.mxu0 0.0
        %2259 = vmatmul.mubr.f32.gmra.mrb[0].mxu0 %v2106
        %v2260 = vpop.f32.mrb[0].mxu0
        %v2261 = vadd.f32 0.0, %v2260
        %v2262 = vpop.f32.mrb[0].mxu0
        %2263 = vmatprep.mubr.f32.mxu0 0.0
        %2264 = vmatmul.mubr.f32.gmra.mrb[0].mxu0 %v2108
        %v2265 = vpop.f32.mrb[0].mxu0
        %v2266 = vadd.f32 0.0, %v2265
        %v2267 = vpop.f32.mrb[0].mxu0
        %2268 = vmatprep.mubr.f32.mxu0 0.0
        %2269 = vmatmul.mubr.f32.gmra.mrb[0].mxu0 %v2110
        %v2270 = vpop.f32.mrb[0].mxu0
        %v2271 = vadd.f32 0.0, %v2270
        %v2272 = vpop.f32.mrb[0].mxu0
        %2273 = vmatprep.mubr.f32.mxu0 0.0
        %2274 = vmatmul.mubr.f32.gmra.mrb[0].mxu0 %v2112
        %v2275 = vpop.f32.mrb[0].mxu0
        %v2276 = vadd.f32 0.0, %v2275
        %v2277 = vpop.f32.mrb[0].mxu0
        %2278 = vmatprep.mubr.f32.mxu0 0.0
        %2279 = vmatmul.mubr.f32.gmra.mrb[0].mxu0 %v2114
        %v2280 = vpop.f32.mrb[0].mxu0
        %v2281 = vadd.f32 0.0, %v2280
        %v2282 = vpop.f32.mrb[0].mxu0
        %2283 = vmatprep.mubr.f32.mxu0 0.0
        %2284 = vmatmul.mubr.f32.gmra.mrb[0].mxu0 %v2116
        %v2285 = vpop.f32.mrb[0].mxu0
        %v2286 = vadd.f32 0.0, %v2285
        %v2287 = vpop.f32.mrb[0].mxu0
        %2288 = vmatprep.mubr.f32.mxu0 0.0
        %2289 = vmatmul.mubr.f32.gmra.mrb[0].mxu0 %v2118
        %v2290 = vpop.f32.mrb[0].mxu0
        %v2291 = vadd.f32 0.0, %v2290
        %v2292 = vpop.f32.mrb[0].mxu0
        %2293 = vmatprep.mubr.f32.mxu0 0.0
        %2294 = vmatmul.mubr.f32.gmra.mrb[0].mxu0 %v2120
        %v2295 = vpop.f32.mrb[0].mxu0
        %v2296 = vadd.f32 0.0, %v2295
        %v2297 = vpop.f32.mrb[0].mxu0
        %2298 = vmatprep.mubr.f32.mxu0 0.0
        %2299 = vmatmul.mubr.f32.gmra.mrb[0].mxu0 %v2122
        %v2300 = vpop.f32.mrb[0].mxu0
        %v2301 = vadd.f32 0.0, %v2300
        %v2302 = vpop.f32.mrb[0].mxu0
        %2303 = vmatprep.mubr.f32.mxu0 0.0
        %2304 = vmatmul.mubr.f32.gmra.mrb[0].mxu0 %v2124
        %v2305 = vpop.f32.mrb[0].mxu0
        %v2306 = vadd.f32 0.0, %v2305
        %v2307 = vpop.f32.mrb[0].mxu0
        %2308 = vmatprep.mubr.f32.mxu0 0.0
        %2309 = vmatmul.mubr.f32.gmra.mrb[0].mxu0 %v2126
        %v2310 = vpop.f32.mrb[0].mxu0
        %v2311 = vadd.f32 0.0, %v2310
        %v2312 = vpop.f32.mrb[0].mxu0
        %2313 = vmatprep.mubr.f32.mxu0 0.0
        %2314 = vmatmul.mubr.f32.gmra.mrb[0].mxu0 %v2128
        %v2315 = vpop.f32.mrb[0].mxu0
        %v2316 = vadd.f32 0.0, %v2315
        %v2317 = vpop.f32.mrb[0].mxu0
        %2318 = vmatprep.mubr.f32.mxu0 0.0
        %2319 = vmatmul.mubr.f32.gmra.mrb[0].mxu0 %v2130
        %v2320 = vpop.f32.mrb[0].mxu0
        %v2321 = vadd.f32 0.0, %v2320
        %v2322 = vpop.f32.mrb[0].mxu0
        %2323 = vmatprep.mubr.f32.mxu0 0.0
        %2324 = vmatmul.mubr.f32.gmra.mrb[0].mxu0 %v2132
        %v2325 = vpop.f32.mrb[0].mxu0
        %v2326 = vadd.f32 0.0, %v2325
        %v2327 = vpop.f32.mrb[0].mxu0
        %2328 = vmatprep.mubr.f32.mxu0 0.0
        %2329 = vmatmul.mubr.f32.gmra.mrb[0].mxu0 %v2134
        %v2330 = vpop.f32.mrb[0].mxu0
        %v2331 = vadd.f32 0.0, %v2330
        %v2332 = vpop.f32.mrb[0].mxu0
        %2333 = vmatprep.mubr.f32.mxu0 0.0
        %2334 = vmatmul.mubr.f32.gmra.mrb[0].mxu0 %v2136
        %v2335 = vpop.f32.mrb[0].mxu0
        %v2336 = vadd.f32 0.0, %v2335
        %v2337 = vpop.f32.mrb[0].mxu0
        %2338 = vmatprep.mubr.f32.mxu0 0.0
        %2339 = vmatmul.mubr.f32.gmra.mrb[0].mxu0 %v2138
        %v2340 = vpop.f32.mrb[0].mxu0
        %v2341 = vadd.f32 0.0, %v2340
        %v2342 = vpop.f32.mrb[0].mxu0
        %2343 = vmatprep.mubr.f32.mxu0 0.0
        %2344 = vmatmul.mubr.f32.gmra.mrb[0].mxu0 %v2140
        %v2345 = vpop.f32.mrb[0].mxu0
        %v2346 = vadd.f32 0.0, %v2345
        %v2347 = vpop.f32.mrb[0].mxu0
        %2348 = vmatprep.mubr.f32.mxu0 0.0
        %2349 = vmatmul.mubr.f32.gmra.mrb[0].mxu0 %v2142
        %v2350 = vpop.f32.mrb[0].mxu0
        %v2351 = vadd.f32 0.0, %v2350
        %v2352 = vpop.f32.mrb[0].mxu0
        %2353 = vmatprep.mubr.f32.mxu0 0.0
        %2354 = vmatmul.mubr.f32.gmra.mrb[0].mxu0 %v2144
        %v2355 = vpop.f32.mrb[0].mxu0
        %v2356 = vadd.f32 0.0, %v2355
        %v2357 = vpop.f32.mrb[0].mxu0
        %2358 = vmatprep.mubr.f32.mxu0 0.0
        %2359 = vmatmul.mubr.f32.gmra.mrb[0].mxu0 %v2146
        %v2360 = vpop.f32.mrb[0].mxu0
        %v2361 = vadd.f32 0.0, %v2360
        %v2362 = vpop.f32.mrb[0].mxu0
        %2363 = vmatprep.mubr.f32.mxu0 0.0
        %2364 = vmatmul.mubr.f32.gmra.mrb[0].mxu0 %v2148
        %v2365 = vpop.f32.mrb[0].mxu0
        %v2366 = vadd.f32 0.0, %v2365
        %v2367 = vpop.f32.mrb[0].mxu0
        %2368 = vmatprep.mubr.f32.mxu0 0.0
        %2369 = vmatmul.mubr.f32.gmra.mrb[0].mxu0 %v2150
        %v2370 = vpop.f32.mrb[0].mxu0
        %v2371 = vadd.f32 0.0, %v2370
        %v2372 = vpop.f32.mrb[0].mxu0
        %2373 = vmatprep.mubr.f32.mxu0 0.0
        %2374 = vmatmul.mubr.f32.gmra.mrb[0].mxu0 %v2152
        %v2375 = vpop.f32.mrb[0].mxu0
        %v2376 = vadd.f32 0.0, %v2375
        %v2377 = vpop.f32.mrb[0].mxu0
        %2378 = vdwg.mxu0
        %v2379 = vsel %vm315, %v1987, 0
        %v2381 = vsel %vm315, %v1989, 0
        %2383 = vmatprep.subr.mxu0 0.0
        %2384 = vmatpush1.msra.mxu0 %v2065
        %2385 = vmatprep.subr.mxu0 0.0
        %2386 = vmatpush1.msra.mxu0 %v2066
        %2387 = vmatprep.subr.mxu0 0.0
        %2388 = vmatpush1.msra.mxu0 %v2067
        %2389 = vmatprep.subr.mxu0 0.0
        %2390 = vmatpush1.msra.mxu0 %v2068
        %2391 = vmatprep.subr.mxu0 0.0
        %2392 = vmatpush1.msra.mxu0 %v2069
        %2393 = vmatprep.subr.mxu0 0.0
        %2394 = vmatpush1.msra.mxu0 %v2070
        %2395 = vmatprep.subr.mxu0 0.0
        %2396 = vmatpush1.msra.mxu0 %v2071
        %2397 = vmatprep.subr.mxu0 0.0
        %2398 = vmatpush1.msra.mxu0 %v2072
        %2399 = vmatprep.subr.mxu0 0.0
        %2400 = vmatpush1.msra.mxu0 0.0
        %2401 = vmatprep.subr.mxu0 0.0
        %2402 = vmatpush1.msra.mxu0 0.0
        %2403 = vmatprep.subr.mxu0 0.0
        %2404 = vmatpush1.msra.mxu0 0.0
        %2405 = vmatprep.subr.mxu0 0.0
        %2406 = vmatpush1.msra.mxu0 0.0
        %2407 = vmatprep.subr.mxu0 0.0
        %2408 = vmatpush1.msra.mxu0 0.0
        %2409 = vmatprep.subr.mxu0 0.0
        %2410 = vmatpush1.msra.mxu0 0.0
        %2411 = vmatprep.subr.mxu0 0.0
        %2412 = vmatpush1.msra.mxu0 0.0
        %2413 = vmatprep.subr.mxu0 0.0
        %2414 = vmatpush1.msra.mxu0 0.0
        %2415 = vmatprep.subr.mxu0 0.0
        %2416 = vmatpush1.msra.mxu0 0.0
        %2417 = vmatprep.subr.mxu0 0.0
        %2418 = vmatpush1.msra.mxu0 0.0
        %2419 = vmatprep.subr.mxu0 0.0
        %2420 = vmatpush1.msra.mxu0 0.0
        %2421 = vmatprep.subr.mxu0 0.0
        %2422 = vmatpush1.msra.mxu0 0.0
        %2423 = vmatprep.subr.mxu0 0.0
        %2424 = vmatpush1.msra.mxu0 0.0
        %2425 = vmatprep.subr.mxu0 0.0
        %2426 = vmatpush1.msra.mxu0 0.0
        %2427 = vmatprep.subr.mxu0 0.0
        %2428 = vmatpush1.msra.mxu0 0.0
        %2429 = vmatprep.subr.mxu0 0.0
        %2430 = vmatpush1.msra.mxu0 0.0
        %2431 = vmatprep.subr.mxu0 0.0
        %2432 = vmatpush1.msra.mxu0 0.0
        %2433 = vmatprep.subr.mxu0 0.0
        %2434 = vmatpush1.msra.mxu0 0.0
        %2435 = vmatprep.subr.mxu0 0.0
        %2436 = vmatpush1.msra.mxu0 0.0
        %2437 = vmatprep.subr.mxu0 0.0
        %2438 = vmatpush1.msra.mxu0 0.0
        %2439 = vmatprep.subr.mxu0 0.0
        %2440 = vmatpush1.msra.mxu0 0.0
        %2441 = vmatprep.subr.mxu0 0.0
        %2442 = vmatpush1.msra.mxu0 0.0
        %2443 = vmatprep.subr.mxu0 0.0
        %2444 = vmatpush1.msra.mxu0 0.0
        %2445 = vmatprep.subr.mxu0 0.0
        %2446 = vmatpush1.msra.mxu0 0.0
        %2447 = vmatprep.mubr.f32.mxu0 0.0
        %2448 = vmatmul.mubr.f32.gmra.mrb[0].mxu0 %v2379
        %v2449 = vpop.f32.mrb[0].mxu0
        %v2450 = vadd.f32 %v2221, %v2449
        %v2451 = vpop.f32.mrb[0].mxu0
        %2452 = vmatprep.mubr.f32.mxu0 0.0
        %2453 = vmatmul.mubr.f32.gmra.mrb[0].mxu0 %v2381
        %v2454 = vpop.f32.mrb[0].mxu0
        %v2455 = vadd.f32 %v2226, %v2454
        %v2456 = vpop.f32.mrb[0].mxu0
        %2457 = vmatprep.mubr.f32.mxu0 0.0
        %2458 = vmatmul.mubr.f32.gmra.mrb[0].mxu0 %v2090
        %v2459 = vpop.f32.mrb[0].mxu0
        %v2460 = vadd.f32 %v2231, %v2459
        %v2461 = vpop.f32.mrb[0].mxu0
        %2462 = vmatprep.mubr.f32.mxu0 0.0
        %2463 = vmatmul.mubr.f32.gmra.mrb[0].mxu0 %v2092
        %v2464 = vpop.f32.mrb[0].mxu0
        %v2465 = vadd.f32 %v2236, %v2464
        %v2466 = vpop.f32.mrb[0].mxu0
        %2467 = vmatprep.mubr.f32.mxu0 0.0
        %2468 = vmatmul.mubr.f32.gmra.mrb[0].mxu0 %v2094
        %v2469 = vpop.f32.mrb[0].mxu0
        %v2470 = vadd.f32 %v2241, %v2469
        %v2471 = vpop.f32.mrb[0].mxu0
        %2472 = vmatprep.mubr.f32.mxu0 0.0
        %2473 = vmatmul.mubr.f32.gmra.mrb[0].mxu0 %v2096
        %v2474 = vpop.f32.mrb[0].mxu0
        %v2475 = vadd.f32 %v2246, %v2474
        %v2476 = vpop.f32.mrb[0].mxu0
        %2477 = vmatprep.mubr.f32.mxu0 0.0
        %2478 = vmatmul.mubr.f32.gmra.mrb[0].mxu0 %v2098
        %v2479 = vpop.f32.mrb[0].mxu0
        %v2480 = vadd.f32 %v2251, %v2479
        %v2481 = vpop.f32.mrb[0].mxu0
        %2482 = vmatprep.mubr.f32.mxu0 0.0
        %2483 = vmatmul.mubr.f32.gmra.mrb[0].mxu0 %v2100
        %v2484 = vpop.f32.mrb[0].mxu0
        %v2485 = vadd.f32 %v2256, %v2484
        %v2486 = vpop.f32.mrb[0].mxu0
        %2487 = vmatprep.mubr.f32.mxu0 0.0
        %2488 = vmatmul.mubr.f32.gmra.mrb[0].mxu0 %v2102
        %v2489 = vpop.f32.mrb[0].mxu0
        %v2490 = vadd.f32 %v2261, %v2489
        %v2491 = vpop.f32.mrb[0].mxu0
        %2492 = vmatprep.mubr.f32.mxu0 0.0
        %2493 = vmatmul.mubr.f32.gmra.mrb[0].mxu0 %v2104
        %v2494 = vpop.f32.mrb[0].mxu0
        %v2495 = vadd.f32 %v2266, %v2494
        %v2496 = vpop.f32.mrb[0].mxu0
        %2497 = vmatprep.mubr.f32.mxu0 0.0
        %2498 = vmatmul.mubr.f32.gmra.mrb[0].mxu0 %v2106
        %v2499 = vpop.f32.mrb[0].mxu0
        %v2500 = vadd.f32 %v2271, %v2499
        %v2501 = vpop.f32.mrb[0].mxu0
        %2502 = vmatprep.mubr.f32.mxu0 0.0
        %2503 = vmatmul.mubr.f32.gmra.mrb[0].mxu0 %v2108
        %v2504 = vpop.f32.mrb[0].mxu0
        %v2505 = vadd.f32 %v2276, %v2504
        %v2506 = vpop.f32.mrb[0].mxu0
        %2507 = vmatprep.mubr.f32.mxu0 0.0
        %2508 = vmatmul.mubr.f32.gmra.mrb[0].mxu0 %v2110
        %v2509 = vpop.f32.mrb[0].mxu0
        %v2510 = vadd.f32 %v2281, %v2509
        %v2511 = vpop.f32.mrb[0].mxu0
        %2512 = vmatprep.mubr.f32.mxu0 0.0
        %2513 = vmatmul.mubr.f32.gmra.mrb[0].mxu0 %v2112
        %v2514 = vpop.f32.mrb[0].mxu0
        %v2515 = vadd.f32 %v2286, %v2514
        %v2516 = vpop.f32.mrb[0].mxu0
        %2517 = vmatprep.mubr.f32.mxu0 0.0
        %2518 = vmatmul.mubr.f32.gmra.mrb[0].mxu0 %v2114
        %v2519 = vpop.f32.mrb[0].mxu0
        %v2520 = vadd.f32 %v2291, %v2519
        %v2521 = vpop.f32.mrb[0].mxu0
        %2522 = vmatprep.mubr.f32.mxu0 0.0
        %2523 = vmatmul.mubr.f32.gmra.mrb[0].mxu0 %v2116
        %v2524 = vpop.f32.mrb[0].mxu0
        %v2525 = vadd.f32 %v2296, %v2524
        %v2526 = vpop.f32.mrb[0].mxu0
        %2527 = vmatprep.mubr.f32.mxu0 0.0
        %2528 = vmatmul.mubr.f32.gmra.mrb[0].mxu0 %v2118
        %v2529 = vpop.f32.mrb[0].mxu0
        %v2530 = vadd.f32 %v2301, %v2529
        %v2531 = vpop.f32.mrb[0].mxu0
        %2532 = vmatprep.mubr.f32.mxu0 0.0
        %2533 = vmatmul.mubr.f32.gmra.mrb[0].mxu0 %v2120
        %v2534 = vpop.f32.mrb[0].mxu0
        %v2535 = vadd.f32 %v2306, %v2534
        %v2536 = vpop.f32.mrb[0].mxu0
        %2537 = vmatprep.mubr.f32.mxu0 0.0
        %2538 = vmatmul.mubr.f32.gmra.mrb[0].mxu0 %v2122
        %v2539 = vpop.f32.mrb[0].mxu0
        %v2540 = vadd.f32 %v2311, %v2539
        %v2541 = vpop.f32.mrb[0].mxu0
        %2542 = vmatprep.mubr.f32.mxu0 0.0
        %2543 = vmatmul.mubr.f32.gmra.mrb[0].mxu0 %v2124
        %v2544 = vpop.f32.mrb[0].mxu0
        %v2545 = vadd.f32 %v2316, %v2544
        %v2546 = vpop.f32.mrb[0].mxu0
        %2547 = vmatprep.mubr.f32.mxu0 0.0
        %2548 = vmatmul.mubr.f32.gmra.mrb[0].mxu0 %v2126
        %v2549 = vpop.f32.mrb[0].mxu0
        %v2550 = vadd.f32 %v2321, %v2549
        %v2551 = vpop.f32.mrb[0].mxu0
        %2552 = vmatprep.mubr.f32.mxu0 0.0
        %2553 = vmatmul.mubr.f32.gmra.mrb[0].mxu0 %v2128
        %v2554 = vpop.f32.mrb[0].mxu0
        %v2555 = vadd.f32 %v2326, %v2554
        %v2556 = vpop.f32.mrb[0].mxu0
        %2557 = vmatprep.mubr.f32.mxu0 0.0
        %2558 = vmatmul.mubr.f32.gmra.mrb[0].mxu0 %v2130
        %v2559 = vpop.f32.mrb[0].mxu0
        %v2560 = vadd.f32 %v2331, %v2559
        %v2561 = vpop.f32.mrb[0].mxu0
        %2562 = vmatprep.mubr.f32.mxu0 0.0
        %2563 = vmatmul.mubr.f32.gmra.mrb[0].mxu0 %v2132
        %v2564 = vpop.f32.mrb[0].mxu0
        %v2565 = vadd.f32 %v2336, %v2564
        %v2566 = vpop.f32.mrb[0].mxu0
        %2567 = vmatprep.mubr.f32.mxu0 0.0
        %2568 = vmatmul.mubr.f32.gmra.mrb[0].mxu0 %v2134
        %v2569 = vpop.f32.mrb[0].mxu0
        %v2570 = vadd.f32 %v2341, %v2569
        %v2571 = vpop.f32.mrb[0].mxu0
        %2572 = vmatprep.mubr.f32.mxu0 0.0
        %2573 = vmatmul.mubr.f32.gmra.mrb[0].mxu0 %v2136
        %v2574 = vpop.f32.mrb[0].mxu0
        %v2575 = vadd.f32 %v2346, %v2574
        %v2576 = vpop.f32.mrb[0].mxu0
        %2577 = vmatprep.mubr.f32.mxu0 0.0
        %2578 = vmatmul.mubr.f32.gmra.mrb[0].mxu0 %v2138
        %v2579 = vpop.f32.mrb[0].mxu0
        %v2580 = vadd.f32 %v2351, %v2579
        %v2581 = vpop.f32.mrb[0].mxu0
        %2582 = vmatprep.mubr.f32.mxu0 0.0
        %2583 = vmatmul.mubr.f32.gmra.mrb[0].mxu0 %v2140
        %v2584 = vpop.f32.mrb[0].mxu0
        %v2585 = vadd.f32 %v2356, %v2584
        %v2586 = vpop.f32.mrb[0].mxu0
        %2587 = vmatprep.mubr.f32.mxu0 0.0
        %2588 = vmatmul.mubr.f32.gmra.mrb[0].mxu0 %v2142
        %v2589 = vpop.f32.mrb[0].mxu0
        %v2590 = vadd.f32 %v2361, %v2589
        %v2591 = vpop.f32.mrb[0].mxu0
        %2592 = vmatprep.mubr.f32.mxu0 0.0
        %2593 = vmatmul.mubr.f32.gmra.mrb[0].mxu0 %v2144
        %v2594 = vpop.f32.mrb[0].mxu0
        %v2595 = vadd.f32 %v2366, %v2594
        %v2596 = vpop.f32.mrb[0].mxu0
        %2597 = vmatprep.mubr.f32.mxu0 0.0
        %2598 = vmatmul.mubr.f32.gmra.mrb[0].mxu0 %v2146
        %v2599 = vpop.f32.mrb[0].mxu0
        %v2600 = vadd.f32 %v2371, %v2599
        %v2601 = vpop.f32.mrb[0].mxu0
        %2602 = vmatprep.mubr.f32.mxu0 0.0
        %2603 = vmatmul.mubr.f32.gmra.mrb[0].mxu0 %v2148
        %v2604 = vpop.f32.mrb[0].mxu0
        %v2605 = vadd.f32 %v2376, %v2604
        %v2606 = vpop.f32.mrb[0].mxu0
        %2607 = vdwg.mxu0
        %v2611 = vrot.slane %v1932, 7
        %v2612 = vrot.slane %v1933, 7
        %v2613 = vsel %vm1984, %v2611, %v2612
        %v2614 = vrot.slane %v1934, 7
        %v2615 = vsel %vm1984, %v2612, %v2614
        %s2616 = scalar_lea.vmem %s3, 384
        %v2617 = vld [vmem:[%s2616] sm:$0xff]
        %v2618 = vld [vmem:[%s2616 + $0x8] sm:$0xff]
        %v2619 = vld [vmem:[%s2616 + $0x10] sm:$0xff]
        %v2620 = vld [vmem:[%s2616 + $0x18] sm:$0xff]
        %v2621 = vld [vmem:[%s2616 + $0x20] sm:$0xff]
        %v2622 = vld [vmem:[%s2616 + $0x28] sm:$0xff]
        %v2623 = vld [vmem:[%s2616 + $0x30] sm:$0xff]
        %v2624 = vld [vmem:[%s2616 + $0x38] sm:$0xff]
        %v2625 = vsel %vm315, %v2613, 0
        %v2627 = vsel %vm315, %v2615, 0
        %2629 = vmatprep.subr.mxu0 0.0
        %2630 = vmatpush1.msra.mxu0 %v2617
        %2631 = vmatprep.subr.mxu0 0.0
        %2632 = vmatpush1.msra.mxu0 %v2618
        %2633 = vmatprep.subr.mxu0 0.0
        %2634 = vmatpush1.msra.mxu0 %v2619
        %2635 = vmatprep.subr.mxu0 0.0
        %2636 = vmatpush1.msra.mxu0 %v2620
        %2637 = vmatprep.subr.mxu0 0.0
        %2638 = vmatpush1.msra.mxu0 %v2621
        %2639 = vmatprep.subr.mxu0 0.0
        %2640 = vmatpush1.msra.mxu0 %v2622
        %2641 = vmatprep.subr.mxu0 0.0
        %2642 = vmatpush1.msra.mxu0 %v2623
        %2643 = vmatprep.subr.mxu0 0.0
        %2644 = vmatpush1.msra.mxu0 %v2624
        %2645 = vmatprep.subr.mxu0 0.0
        %2646 = vmatpush1.msra.mxu0 0.0
        %2647 = vmatprep.subr.mxu0 0.0
        %2648 = vmatpush1.msra.mxu0 0.0
        %2649 = vmatprep.subr.mxu0 0.0
        %2650 = vmatpush1.msra.mxu0 0.0
        %2651 = vmatprep.subr.mxu0 0.0
        %2652 = vmatpush1.msra.mxu0 0.0
        %2653 = vmatprep.subr.mxu0 0.0
        %2654 = vmatpush1.msra.mxu0 0.0
        %2655 = vmatprep.subr.mxu0 0.0
        %2656 = vmatpush1.msra.mxu0 0.0
        %2657 = vmatprep.subr.mxu0 0.0
        %2658 = vmatpush1.msra.mxu0 0.0
        %2659 = vmatprep.subr.mxu0 0.0
        %2660 = vmatpush1.msra.mxu0 0.0
        %2661 = vmatprep.subr.mxu0 0.0
        %2662 = vmatpush1.msra.mxu0 0.0
        %2663 = vmatprep.subr.mxu0 0.0
        %2664 = vmatpush1.msra.mxu0 0.0
        %2665 = vmatprep.subr.mxu0 0.0
        %2666 = vmatpush1.msra.mxu0 0.0
        %2667 = vmatprep.subr.mxu0 0.0
        %2668 = vmatpush1.msra.mxu0 0.0
        %2669 = vmatprep.subr.mxu0 0.0
        %2670 = vmatpush1.msra.mxu0 0.0
        %2671 = vmatprep.subr.mxu0 0.0
        %2672 = vmatpush1.msra.mxu0 0.0
        %2673 = vmatprep.subr.mxu0 0.0
        %2674 = vmatpush1.msra.mxu0 0.0
        %2675 = vmatprep.subr.mxu0 0.0
        %2676 = vmatpush1.msra.mxu0 0.0
        %2677 = vmatprep.subr.mxu0 0.0
        %2678 = vmatpush1.msra.mxu0 0.0
        %2679 = vmatprep.subr.mxu0 0.0
        %2680 = vmatpush1.msra.mxu0 0.0
        %2681 = vmatprep.subr.mxu0 0.0
        %2682 = vmatpush1.msra.mxu0 0.0
        %2683 = vmatprep.subr.mxu0 0.0
        %2684 = vmatpush1.msra.mxu0 0.0
        %2685 = vmatprep.subr.mxu0 0.0
        %2686 = vmatpush1.msra.mxu0 0.0
        %2687 = vmatprep.subr.mxu0 0.0
        %2688 = vmatpush1.msra.mxu0 0.0
        %2689 = vmatprep.subr.mxu0 0.0
        %2690 = vmatpush1.msra.mxu0 0.0
        %2691 = vmatprep.subr.mxu0 0.0
        %2692 = vmatpush1.msra.mxu0 0.0
        %2693 = vmatprep.mubr.f32.mxu0 0.0
        %2694 = vmatmul.mubr.f32.gmra.mrb[0].mxu0 %v2094
        %v2695 = vpop.f32.mrb[0].mxu0
        %v2696 = vadd.f32 0.0, %v2695
        %v2697 = vpop.f32.mrb[0].mxu0
        %2698 = vmatprep.mubr.f32.mxu0 0.0
        %2699 = vmatmul.mubr.f32.gmra.mrb[0].mxu0 %v2096
        %v2700 = vpop.f32.mrb[0].mxu0
        %v2701 = vadd.f32 0.0, %v2700
        %v2702 = vpop.f32.mrb[0].mxu0
        %2703 = vmatprep.mubr.f32.mxu0 0.0
        %2704 = vmatmul.mubr.f32.gmra.mrb[0].mxu0 %v2098
        %v2705 = vpop.f32.mrb[0].mxu0
        %v2706 = vadd.f32 0.0, %v2705
        %v2707 = vpop.f32.mrb[0].mxu0
        %2708 = vmatprep.mubr.f32.mxu0 0.0
        %2709 = vmatmul.mubr.f32.gmra.mrb[0].mxu0 %v2100
        %v2710 = vpop.f32.mrb[0].mxu0
        %v2711 = vadd.f32 0.0, %v2710
        %v2712 = vpop.f32.mrb[0].mxu0
        %2713 = vmatprep.mubr.f32.mxu0 0.0
        %2714 = vmatmul.mubr.f32.gmra.mrb[0].mxu0 %v2102
        %v2715 = vpop.f32.mrb[0].mxu0
        %v2716 = vadd.f32 0.0, %v2715
        %v2717 = vpop.f32.mrb[0].mxu0
        %2718 = vmatprep.mubr.f32.mxu0 0.0
        %2719 = vmatmul.mubr.f32.gmra.mrb[0].mxu0 %v2104
        %v2720 = vpop.f32.mrb[0].mxu0
        %v2721 = vadd.f32 0.0, %v2720
        %v2722 = vpop.f32.mrb[0].mxu0
        %2723 = vmatprep.mubr.f32.mxu0 0.0
        %2724 = vmatmul.mubr.f32.gmra.mrb[0].mxu0 %v2106
        %v2725 = vpop.f32.mrb[0].mxu0
        %v2726 = vadd.f32 0.0, %v2725
        %v2727 = vpop.f32.mrb[0].mxu0
        %2728 = vmatprep.mubr.f32.mxu0 0.0
        %2729 = vmatmul.mubr.f32.gmra.mrb[0].mxu0 %v2108
        %v2730 = vpop.f32.mrb[0].mxu0
        %v2731 = vadd.f32 0.0, %v2730
        %v2732 = vpop.f32.mrb[0].mxu0
        %2733 = vmatprep.mubr.f32.mxu0 0.0
        %2734 = vmatmul.mubr.f32.gmra.mrb[0].mxu0 %v2110
        %v2735 = vpop.f32.mrb[0].mxu0
        %v2736 = vadd.f32 0.0, %v2735
        %v2737 = vpop.f32.mrb[0].mxu0
        %2738 = vmatprep.mubr.f32.mxu0 0.0
        %2739 = vmatmul.mubr.f32.gmra.mrb[0].mxu0 %v2112
        %v2740 = vpop.f32.mrb[0].mxu0
        %v2741 = vadd.f32 0.0, %v2740
        %v2742 = vpop.f32.mrb[0].mxu0
        %2743 = vmatprep.mubr.f32.mxu0 0.0
        %2744 = vmatmul.mubr.f32.gmra.mrb[0].mxu0 %v2114
        %v2745 = vpop.f32.mrb[0].mxu0
        %v2746 = vadd.f32 0.0, %v2745
        %v2747 = vpop.f32.mrb[0].mxu0
        %2748 = vmatprep.mubr.f32.mxu0 0.0
        %2749 = vmatmul.mubr.f32.gmra.mrb[0].mxu0 %v2116
        %v2750 = vpop.f32.mrb[0].mxu0
        %v2751 = vadd.f32 0.0, %v2750
        %v2752 = vpop.f32.mrb[0].mxu0
        %2753 = vmatprep.mubr.f32.mxu0 0.0
        %2754 = vmatmul.mubr.f32.gmra.mrb[0].mxu0 %v2118
        %v2755 = vpop.f32.mrb[0].mxu0
        %v2756 = vadd.f32 0.0, %v2755
        %v2757 = vpop.f32.mrb[0].mxu0
        %2758 = vmatprep.mubr.f32.mxu0 0.0
        %2759 = vmatmul.mubr.f32.gmra.mrb[0].mxu0 %v2120
        %v2760 = vpop.f32.mrb[0].mxu0
        %v2761 = vadd.f32 0.0, %v2760
        %v2762 = vpop.f32.mrb[0].mxu0
        %2763 = vmatprep.mubr.f32.mxu0 0.0
        %2764 = vmatmul.mubr.f32.gmra.mrb[0].mxu0 %v2122
        %v2765 = vpop.f32.mrb[0].mxu0
        %v2766 = vadd.f32 0.0, %v2765
        %v2767 = vpop.f32.mrb[0].mxu0
        %2768 = vmatprep.mubr.f32.mxu0 0.0
        %2769 = vmatmul.mubr.f32.gmra.mrb[0].mxu0 %v2124
        %v2770 = vpop.f32.mrb[0].mxu0
        %v2771 = vadd.f32 0.0, %v2770
        %v2772 = vpop.f32.mrb[0].mxu0
        %2773 = vmatprep.mubr.f32.mxu0 0.0
        %2774 = vmatmul.mubr.f32.gmra.mrb[0].mxu0 %v2126
        %v2775 = vpop.f32.mrb[0].mxu0
        %v2776 = vadd.f32 0.0, %v2775
        %v2777 = vpop.f32.mrb[0].mxu0
        %2778 = vmatprep.mubr.f32.mxu0 0.0
        %2779 = vmatmul.mubr.f32.gmra.mrb[0].mxu0 %v2128
        %v2780 = vpop.f32.mrb[0].mxu0
        %v2781 = vadd.f32 0.0, %v2780
        %v2782 = vpop.f32.mrb[0].mxu0
        %2783 = vmatprep.mubr.f32.mxu0 0.0
        %2784 = vmatmul.mubr.f32.gmra.mrb[0].mxu0 %v2130
        %v2785 = vpop.f32.mrb[0].mxu0
        %v2786 = vadd.f32 0.0, %v2785
        %v2787 = vpop.f32.mrb[0].mxu0
        %2788 = vmatprep.mubr.f32.mxu0 0.0
        %2789 = vmatmul.mubr.f32.gmra.mrb[0].mxu0 %v2132
        %v2790 = vpop.f32.mrb[0].mxu0
        %v2791 = vadd.f32 0.0, %v2790
        %v2792 = vpop.f32.mrb[0].mxu0
        %2793 = vmatprep.mubr.f32.mxu0 0.0
        %2794 = vmatmul.mubr.f32.gmra.mrb[0].mxu0 %v2134
        %v2795 = vpop.f32.mrb[0].mxu0
        %v2796 = vadd.f32 0.0, %v2795
        %v2797 = vpop.f32.mrb[0].mxu0
        %2798 = vmatprep.mubr.f32.mxu0 0.0
        %2799 = vmatmul.mubr.f32.gmra.mrb[0].mxu0 %v2136
        %v2800 = vpop.f32.mrb[0].mxu0
        %v2801 = vadd.f32 0.0, %v2800
        %v2802 = vpop.f32.mrb[0].mxu0
        %2803 = vmatprep.mubr.f32.mxu0 0.0
        %2804 = vmatmul.mubr.f32.gmra.mrb[0].mxu0 %v2138
        %v2805 = vpop.f32.mrb[0].mxu0
        %v2806 = vadd.f32 0.0, %v2805
        %v2807 = vpop.f32.mrb[0].mxu0
        %2808 = vmatprep.mubr.f32.mxu0 0.0
        %2809 = vmatmul.mubr.f32.gmra.mrb[0].mxu0 %v2140
        %v2810 = vpop.f32.mrb[0].mxu0
        %v2811 = vadd.f32 0.0, %v2810
        %v2812 = vpop.f32.mrb[0].mxu0
        %2813 = vmatprep.mubr.f32.mxu0 0.0
        %2814 = vmatmul.mubr.f32.gmra.mrb[0].mxu0 %v2142
        %v2815 = vpop.f32.mrb[0].mxu0
        %v2816 = vadd.f32 0.0, %v2815
        %v2817 = vpop.f32.mrb[0].mxu0
        %2818 = vmatprep.mubr.f32.mxu0 0.0
        %2819 = vmatmul.mubr.f32.gmra.mrb[0].mxu0 %v2144
        %v2820 = vpop.f32.mrb[0].mxu0
        %v2821 = vadd.f32 0.0, %v2820
        %v2822 = vpop.f32.mrb[0].mxu0
        %2823 = vmatprep.mubr.f32.mxu0 0.0
        %2824 = vmatmul.mubr.f32.gmra.mrb[0].mxu0 %v2146
        %v2825 = vpop.f32.mrb[0].mxu0
        %v2826 = vadd.f32 0.0, %v2825
        %v2827 = vpop.f32.mrb[0].mxu0
        %2828 = vmatprep.mubr.f32.mxu0 0.0
        %2829 = vmatmul.mubr.f32.gmra.mrb[0].mxu0 %v2148
        %v2830 = vpop.f32.mrb[0].mxu0
        %v2831 = vadd.f32 0.0, %v2830
        %v2832 = vpop.f32.mrb[0].mxu0
        %2833 = vmatprep.mubr.f32.mxu0 0.0
        %2834 = vmatmul.mubr.f32.gmra.mrb[0].mxu0 %v2150
        %v2835 = vpop.f32.mrb[0].mxu0
        %v2836 = vadd.f32 0.0, %v2835
        %v2837 = vpop.f32.mrb[0].mxu0
        %2838 = vmatprep.mubr.f32.mxu0 0.0
        %2839 = vmatmul.mubr.f32.gmra.mrb[0].mxu0 %v2152
        %v2840 = vpop.f32.mrb[0].mxu0
        %v2841 = vadd.f32 0.0, %v2840
        %v2842 = vpop.f32.mrb[0].mxu0
        %2843 = vmatprep.mubr.f32.mxu0 0.0
        %2844 = vmatmul.mubr.f32.gmra.mrb[0].mxu0 %v2625
        %v2845 = vpop.f32.mrb[0].mxu0
        %v2846 = vadd.f32 0.0, %v2845
        %v2847 = vpop.f32.mrb[0].mxu0
        %2848 = vmatprep.mubr.f32.mxu0 0.0
        %2849 = vmatmul.mubr.f32.gmra.mrb[0].mxu0 %v2627
        %v2850 = vpop.f32.mrb[0].mxu0
        %v2851 = vadd.f32 0.0, %v2850
        %v2852 = vpop.f32.mrb[0].mxu0
        %2853 = vdwg.mxu0
        %v2854 = vadd.f32 %v2450, %v2696
        %v2855 = vadd.f32 %v2455, %v2701
        %v2856 = vadd.f32 %v2460, %v2706
        %v2857 = vadd.f32 %v2465, %v2711
        %v2858 = vadd.f32 %v2470, %v2716
        %v2859 = vadd.f32 %v2475, %v2721
        %v2860 = vadd.f32 %v2480, %v2726
        %v2861 = vadd.f32 %v2485, %v2731
        %v2862 = vadd.f32 %v2490, %v2736
        %v2863 = vadd.f32 %v2495, %v2741
        %v2864 = vadd.f32 %v2500, %v2746
        %v2865 = vadd.f32 %v2505, %v2751
        %v2866 = vadd.f32 %v2510, %v2756
        %v2867 = vadd.f32 %v2515, %v2761
        %v2868 = vadd.f32 %v2520, %v2766
        %v2869 = vadd.f32 %v2525, %v2771
        %v2870 = vadd.f32 %v2530, %v2776
        %v2871 = vadd.f32 %v2535, %v2781
        %v2872 = vadd.f32 %v2540, %v2786
        %v2873 = vadd.f32 %v2545, %v2791
        %v2874 = vadd.f32 %v2550, %v2796
        %v2875 = vadd.f32 %v2555, %v2801
        %v2876 = vadd.f32 %v2560, %v2806
        %v2877 = vadd.f32 %v2565, %v2811
        %v2878 = vadd.f32 %v2570, %v2816
        %v2879 = vadd.f32 %v2575, %v2821
        %v2880 = vadd.f32 %v2580, %v2826
        %v2881 = vadd.f32 %v2585, %v2831
        %v2882 = vadd.f32 %v2590, %v2836
        %v2883 = vadd.f32 %v2595, %v2841
        %v2884 = vadd.f32 %v2600, %v2846
        %v2885 = vadd.f32 %v2605, %v2851
        %s2886 = scalar_lea.vmem %s3, 64
        %v2887 = vld [vmem:[%s2886] sm:$0xff]
        %v2888 = vld [vmem:[%s2886 + $0x8] sm:$0xff]
        %v2889 = vld [vmem:[%s2886 + $0x10] sm:$0xff]
        %v2890 = vld [vmem:[%s2886 + $0x18] sm:$0xff]
        %v2891 = vld [vmem:[%s2886 + $0x20] sm:$0xff]
        %v2892 = vld [vmem:[%s2886 + $0x28] sm:$0xff]
        %v2893 = vld [vmem:[%s2886 + $0x30] sm:$0xff]
        %v2894 = vld [vmem:[%s2886 + $0x38] sm:$0xff]
        %v2895 = vsel %vm315, %v1865, 0
        %v2897 = vsel %vm315, %v1866, 0
        %v2899 = vsel %vm315, %v1869, 0
        %v2901 = vsel %vm315, %v1870, 0
        %v2903 = vsel %vm315, %v1873, 0
        %v2905 = vsel %vm315, %v1874, 0
        %v2907 = vsel %vm315, %v1877, 0
        %v2909 = vsel %vm315, %v1878, 0
        %v2911 = vsel %vm315, %v1881, 0
        %v2913 = vsel %vm315, %v1882, 0
        %v2915 = vsel %vm315, %v1885, 0
        %v2917 = vsel %vm315, %v1886, 0
        %v2919 = vsel %vm315, %v1889, 0
        %v2921 = vsel %vm315, %v1890, 0
        %v2923 = vsel %vm315, %v1893, 0
        %v2925 = vsel %vm315, %v1894, 0
        %v2927 = vsel %vm315, %v1897, 0
        %v2929 = vsel %vm315, %v1898, 0
        %v2931 = vsel %vm315, %v1901, 0
        %v2933 = vsel %vm315, %v1902, 0
        %v2935 = vsel %vm315, %v1905, 0
        %v2937 = vsel %vm315, %v1906, 0
        %v2939 = vsel %vm315, %v1909, 0
        %v2941 = vsel %vm315, %v1910, 0
        %v2943 = vsel %vm315, %v1913, 0
        %v2945 = vsel %vm315, %v1914, 0
        %v2947 = vsel %vm315, %v1917, 0
        %v2949 = vsel %vm315, %v1918, 0
        %v2951 = vsel %vm315, %v1921, 0
        %v2953 = vsel %vm315, %v1922, 0
        %v2955 = vsel %vm315, %v1925, 0
        %v2957 = vsel %vm315, %v1926, 0
        %2959 = vmatprep.subr.mxu0 0.0
        %2960 = vmatpush1.msra.mxu0 %v2887
        %2961 = vmatprep.subr.mxu0 0.0
        %2962 = vmatpush1.msra.mxu0 %v2888
        %2963 = vmatprep.subr.mxu0 0.0
        %2964 = vmatpush1.msra.mxu0 %v2889
        %2965 = vmatprep.subr.mxu0 0.0
        %2966 = vmatpush1.msra.mxu0 %v2890
        %2967 = vmatprep.subr.mxu0 0.0
        %2968 = vmatpush1.msra.mxu0 %v2891
        %2969 = vmatprep.subr.mxu0 0.0
        %2970 = vmatpush1.msra.mxu0 %v2892
        %2971 = vmatprep.subr.mxu0 0.0
        %2972 = vmatpush1.msra.mxu0 %v2893
        %2973 = vmatprep.subr.mxu0 0.0
        %2974 = vmatpush1.msra.mxu0 %v2894
        %2975 = vmatprep.subr.mxu0 0.0
        %2976 = vmatpush1.msra.mxu0 0.0
        %2977 = vmatprep.subr.mxu0 0.0
        %2978 = vmatpush1.msra.mxu0 0.0
        %2979 = vmatprep.subr.mxu0 0.0
        %2980 = vmatpush1.msra.mxu0 0.0
        %2981 = vmatprep.subr.mxu0 0.0
        %2982 = vmatpush1.msra.mxu0 0.0
        %2983 = vmatprep.subr.mxu0 0.0
        %2984 = vmatpush1.msra.mxu0 0.0
        %2985 = vmatprep.subr.mxu0 0.0
        %2986 = vmatpush1.msra.mxu0 0.0
        %2987 = vmatprep.subr.mxu0 0.0
        %2988 = vmatpush1.msra.mxu0 0.0
        %2989 = vmatprep.subr.mxu0 0.0
        %2990 = vmatpush1.msra.mxu0 0.0
        %2991 = vmatprep.subr.mxu0 0.0
        %2992 = vmatpush1.msra.mxu0 0.0
        %2993 = vmatprep.subr.mxu0 0.0
        %2994 = vmatpush1.msra.mxu0 0.0
        %2995 = vmatprep.subr.mxu0 0.0
        %2996 = vmatpush1.msra.mxu0 0.0
        %2997 = vmatprep.subr.mxu0 0.0
        %2998 = vmatpush1.msra.mxu0 0.0
        %2999 = vmatprep.subr.mxu0 0.0
        %3000 = vmatpush1.msra.mxu0 0.0
        %3001 = vmatprep.subr.mxu0 0.0
        %3002 = vmatpush1.msra.mxu0 0.0
        %3003 = vmatprep.subr.mxu0 0.0
        %3004 = vmatpush1.msra.mxu0 0.0
        %3005 = vmatprep.subr.mxu0 0.0
        %3006 = vmatpush1.msra.mxu0 0.0
        %3007 = vmatprep.subr.mxu0 0.0
        %3008 = vmatpush1.msra.mxu0 0.0
        %3009 = vmatprep.subr.mxu0 0.0
        %3010 = vmatpush1.msra.mxu0 0.0
        %3011 = vmatprep.subr.mxu0 0.0
        %3012 = vmatpush1.msra.mxu0 0.0
        %3013 = vmatprep.subr.mxu0 0.0
        %3014 = vmatpush1.msra.mxu0 0.0
        %3015 = vmatprep.subr.mxu0 0.0
        %3016 = vmatpush1.msra.mxu0 0.0
        %3017 = vmatprep.subr.mxu0 0.0
        %3018 = vmatpush1.msra.mxu0 0.0
        %3019 = vmatprep.subr.mxu0 0.0
        %3020 = vmatpush1.msra.mxu0 0.0
        %3021 = vmatprep.subr.mxu0 0.0
        %3022 = vmatpush1.msra.mxu0 0.0
        %3023 = vmatprep.mubr.f32.mxu0 0.0
        %3024 = vmatmul.mubr.f32.gmra.mrb[0].mxu0 %v2895
        %v3025 = vpop.f32.mrb[0].mxu0
        %v3026 = vadd.f32 0.0, %v3025
        %v3027 = vpop.f32.mrb[0].mxu0
        %3028 = vmatprep.mubr.f32.mxu0 0.0
        %3029 = vmatmul.mubr.f32.gmra.mrb[0].mxu0 %v2897
        %v3030 = vpop.f32.mrb[0].mxu0
        %v3031 = vadd.f32 0.0, %v3030
        %v3032 = vpop.f32.mrb[0].mxu0
        %3033 = vmatprep.mubr.f32.mxu0 0.0
        %3034 = vmatmul.mubr.f32.gmra.mrb[0].mxu0 %v2899
        %v3035 = vpop.f32.mrb[0].mxu0
        %v3036 = vadd.f32 0.0, %v3035
        %v3037 = vpop.f32.mrb[0].mxu0
        %3038 = vmatprep.mubr.f32.mxu0 0.0
        %3039 = vmatmul.mubr.f32.gmra.mrb[0].mxu0 %v2901
        %v3040 = vpop.f32.mrb[0].mxu0
        %v3041 = vadd.f32 0.0, %v3040
        %v3042 = vpop.f32.mrb[0].mxu0
        %3043 = vmatprep.mubr.f32.mxu0 0.0
        %3044 = vmatmul.mubr.f32.gmra.mrb[0].mxu0 %v2903
        %v3045 = vpop.f32.mrb[0].mxu0
        %v3046 = vadd.f32 0.0, %v3045
        %v3047 = vpop.f32.mrb[0].mxu0
        %3048 = vmatprep.mubr.f32.mxu0 0.0
        %3049 = vmatmul.mubr.f32.gmra.mrb[0].mxu0 %v2905
        %v3050 = vpop.f32.mrb[0].mxu0
        %v3051 = vadd.f32 0.0, %v3050
        %v3052 = vpop.f32.mrb[0].mxu0
        %3053 = vmatprep.mubr.f32.mxu0 0.0
        %3054 = vmatmul.mubr.f32.gmra.mrb[0].mxu0 %v2907
        %v3055 = vpop.f32.mrb[0].mxu0
        %v3056 = vadd.f32 0.0, %v3055
        %v3057 = vpop.f32.mrb[0].mxu0
        %3058 = vmatprep.mubr.f32.mxu0 0.0
        %3059 = vmatmul.mubr.f32.gmra.mrb[0].mxu0 %v2909
        %v3060 = vpop.f32.mrb[0].mxu0
        %v3061 = vadd.f32 0.0, %v3060
        %v3062 = vpop.f32.mrb[0].mxu0
        %3063 = vmatprep.mubr.f32.mxu0 0.0
        %3064 = vmatmul.mubr.f32.gmra.mrb[0].mxu0 %v2911
        %v3065 = vpop.f32.mrb[0].mxu0
        %v3066 = vadd.f32 0.0, %v3065
        %v3067 = vpop.f32.mrb[0].mxu0
        %3068 = vmatprep.mubr.f32.mxu0 0.0
        %3069 = vmatmul.mubr.f32.gmra.mrb[0].mxu0 %v2913
        %v3070 = vpop.f32.mrb[0].mxu0
        %v3071 = vadd.f32 0.0, %v3070
        %v3072 = vpop.f32.mrb[0].mxu0
        %3073 = vmatprep.mubr.f32.mxu0 0.0
        %3074 = vmatmul.mubr.f32.gmra.mrb[0].mxu0 %v2915
        %v3075 = vpop.f32.mrb[0].mxu0
        %v3076 = vadd.f32 0.0, %v3075
        %v3077 = vpop.f32.mrb[0].mxu0
        %3078 = vmatprep.mubr.f32.mxu0 0.0
        %3079 = vmatmul.mubr.f32.gmra.mrb[0].mxu0 %v2917
        %v3080 = vpop.f32.mrb[0].mxu0
        %v3081 = vadd.f32 0.0, %v3080
        %v3082 = vpop.f32.mrb[0].mxu0
        %3083 = vmatprep.mubr.f32.mxu0 0.0
        %3084 = vmatmul.mubr.f32.gmra.mrb[0].mxu0 %v2919
        %v3085 = vpop.f32.mrb[0].mxu0
        %v3086 = vadd.f32 0.0, %v3085
        %v3087 = vpop.f32.mrb[0].mxu0
        %3088 = vmatprep.mubr.f32.mxu0 0.0
        %3089 = vmatmul.mubr.f32.gmra.mrb[0].mxu0 %v2921
        %v3090 = vpop.f32.mrb[0].mxu0
        %v3091 = vadd.f32 0.0, %v3090
        %v3092 = vpop.f32.mrb[0].mxu0
        %3093 = vmatprep.mubr.f32.mxu0 0.0
        %3094 = vmatmul.mubr.f32.gmra.mrb[0].mxu0 %v2923
        %v3095 = vpop.f32.mrb[0].mxu0
        %v3096 = vadd.f32 0.0, %v3095
        %v3097 = vpop.f32.mrb[0].mxu0
        %3098 = vmatprep.mubr.f32.mxu0 0.0
        %3099 = vmatmul.mubr.f32.gmra.mrb[0].mxu0 %v2925
        %v3100 = vpop.f32.mrb[0].mxu0
        %v3101 = vadd.f32 0.0, %v3100
        %v3102 = vpop.f32.mrb[0].mxu0
        %3103 = vmatprep.mubr.f32.mxu0 0.0
        %3104 = vmatmul.mubr.f32.gmra.mrb[0].mxu0 %v2927
        %v3105 = vpop.f32.mrb[0].mxu0
        %v3106 = vadd.f32 0.0, %v3105
        %v3107 = vpop.f32.mrb[0].mxu0
        %3108 = vmatprep.mubr.f32.mxu0 0.0
        %3109 = vmatmul.mubr.f32.gmra.mrb[0].mxu0 %v2929
        %v3110 = vpop.f32.mrb[0].mxu0
        %v3111 = vadd.f32 0.0, %v3110
        %v3112 = vpop.f32.mrb[0].mxu0
        %3113 = vmatprep.mubr.f32.mxu0 0.0
        %3114 = vmatmul.mubr.f32.gmra.mrb[0].mxu0 %v2931
        %v3115 = vpop.f32.mrb[0].mxu0
        %v3116 = vadd.f32 0.0, %v3115
        %v3117 = vpop.f32.mrb[0].mxu0
        %3118 = vmatprep.mubr.f32.mxu0 0.0
        %3119 = vmatmul.mubr.f32.gmra.mrb[0].mxu0 %v2933
        %v3120 = vpop.f32.mrb[0].mxu0
        %v3121 = vadd.f32 0.0, %v3120
        %v3122 = vpop.f32.mrb[0].mxu0
        %3123 = vmatprep.mubr.f32.mxu0 0.0
        %3124 = vmatmul.mubr.f32.gmra.mrb[0].mxu0 %v2935
        %v3125 = vpop.f32.mrb[0].mxu0
        %v3126 = vadd.f32 0.0, %v3125
        %v3127 = vpop.f32.mrb[0].mxu0
        %3128 = vmatprep.mubr.f32.mxu0 0.0
        %3129 = vmatmul.mubr.f32.gmra.mrb[0].mxu0 %v2937
        %v3130 = vpop.f32.mrb[0].mxu0
        %v3131 = vadd.f32 0.0, %v3130
        %v3132 = vpop.f32.mrb[0].mxu0
        %3133 = vmatprep.mubr.f32.mxu0 0.0
        %3134 = vmatmul.mubr.f32.gmra.mrb[0].mxu0 %v2939
        %v3135 = vpop.f32.mrb[0].mxu0
        %v3136 = vadd.f32 0.0, %v3135
        %v3137 = vpop.f32.mrb[0].mxu0
        %3138 = vmatprep.mubr.f32.mxu0 0.0
        %3139 = vmatmul.mubr.f32.gmra.mrb[0].mxu0 %v2941
        %v3140 = vpop.f32.mrb[0].mxu0
        %v3141 = vadd.f32 0.0, %v3140
        %v3142 = vpop.f32.mrb[0].mxu0
        %3143 = vmatprep.mubr.f32.mxu0 0.0
        %3144 = vmatmul.mubr.f32.gmra.mrb[0].mxu0 %v2943
        %v3145 = vpop.f32.mrb[0].mxu0
        %v3146 = vadd.f32 0.0, %v3145
        %v3147 = vpop.f32.mrb[0].mxu0
        %3148 = vmatprep.mubr.f32.mxu0 0.0
        %3149 = vmatmul.mubr.f32.gmra.mrb[0].mxu0 %v2945
        %v3150 = vpop.f32.mrb[0].mxu0
        %v3151 = vadd.f32 0.0, %v3150
        %v3152 = vpop.f32.mrb[0].mxu0
        %3153 = vmatprep.mubr.f32.mxu0 0.0
        %3154 = vmatmul.mubr.f32.gmra.mrb[0].mxu0 %v2947
        %v3155 = vpop.f32.mrb[0].mxu0
        %v3156 = vadd.f32 0.0, %v3155
        %v3157 = vpop.f32.mrb[0].mxu0
        %3158 = vmatprep.mubr.f32.mxu0 0.0
        %3159 = vmatmul.mubr.f32.gmra.mrb[0].mxu0 %v2949
        %v3160 = vpop.f32.mrb[0].mxu0
        %v3161 = vadd.f32 0.0, %v3160
        %v3162 = vpop.f32.mrb[0].mxu0
        %3163 = vmatprep.mubr.f32.mxu0 0.0
        %3164 = vmatmul.mubr.f32.gmra.mrb[0].mxu0 %v2951
        %v3165 = vpop.f32.mrb[0].mxu0
        %v3166 = vadd.f32 0.0, %v3165
        %v3167 = vpop.f32.mrb[0].mxu0
        %3168 = vmatprep.mubr.f32.mxu0 0.0
        %3169 = vmatmul.mubr.f32.gmra.mrb[0].mxu0 %v2953
        %v3170 = vpop.f32.mrb[0].mxu0
        %v3171 = vadd.f32 0.0, %v3170
        %v3172 = vpop.f32.mrb[0].mxu0
        %3173 = vmatprep.mubr.f32.mxu0 0.0
        %3174 = vmatmul.mubr.f32.gmra.mrb[0].mxu0 %v2955
        %v3175 = vpop.f32.mrb[0].mxu0
        %v3176 = vadd.f32 0.0, %v3175
        %v3177 = vpop.f32.mrb[0].mxu0
        %3178 = vmatprep.mubr.f32.mxu0 0.0
        %3179 = vmatmul.mubr.f32.gmra.mrb[0].mxu0 %v2957
        %v3180 = vpop.f32.mrb[0].mxu0
        %v3181 = vadd.f32 0.0, %v3180
        %v3182 = vpop.f32.mrb[0].mxu0
        %3183 = vdwg.mxu0
        %v3184 = vadd.f32 %v2854, %v3026
        %v3185 = vadd.f32 %v2855, %v3031
        %v3186 = vadd.f32 %v2856, %v3036
        %v3187 = vadd.f32 %v2857, %v3041
        %v3188 = vadd.f32 %v2858, %v3046
        %v3189 = vadd.f32 %v2859, %v3051
        %v3190 = vadd.f32 %v2860, %v3056
        %v3191 = vadd.f32 %v2861, %v3061
        %v3192 = vadd.f32 %v2862, %v3066
        %v3193 = vadd.f32 %v2863, %v3071
        %v3194 = vadd.f32 %v2864, %v3076
        %v3195 = vadd.f32 %v2865, %v3081
        %v3196 = vadd.f32 %v2866, %v3086
        %v3197 = vadd.f32 %v2867, %v3091
        %v3198 = vadd.f32 %v2868, %v3096
        %v3199 = vadd.f32 %v2869, %v3101
        %v3200 = vadd.f32 %v2870, %v3106
        %v3201 = vadd.f32 %v2871, %v3111
        %v3202 = vadd.f32 %v2872, %v3116
        %v3203 = vadd.f32 %v2873, %v3121
        %v3204 = vadd.f32 %v2874, %v3126
        %v3205 = vadd.f32 %v2875, %v3131
        %v3206 = vadd.f32 %v2876, %v3136
        %v3207 = vadd.f32 %v2877, %v3141
        %v3208 = vadd.f32 %v2878, %v3146
        %v3209 = vadd.f32 %v2879, %v3151
        %v3210 = vadd.f32 %v2880, %v3156
        %v3211 = vadd.f32 %v2881, %v3161
        %v3212 = vadd.f32 %v2882, %v3166
        %v3213 = vadd.f32 %v2883, %v3171
        %v3214 = vadd.f32 %v2884, %v3176
        %v3215 = vadd.f32 %v2885, %v3181
        %s3216 = scalar_lea.vmem %s3, 256
        %v3217 = vld [vmem:[%s3216] sm:$0xff]
        %v3218 = vld [vmem:[%s3216 + $0x8] sm:$0xff]
        %v3219 = vld [vmem:[%s3216 + $0x10] sm:$0xff]
        %v3220 = vld [vmem:[%s3216 + $0x18] sm:$0xff]
        %v3221 = vld [vmem:[%s3216 + $0x20] sm:$0xff]
        %v3222 = vld [vmem:[%s3216 + $0x28] sm:$0xff]
        %v3223 = vld [vmem:[%s3216 + $0x30] sm:$0xff]
        %v3224 = vld [vmem:[%s3216 + $0x38] sm:$0xff]
        %v3225 = vsel %vm315, %v1929, 0
        %v3227 = vsel %vm315, %v1930, 0
        %3229 = vmatprep.subr.mxu0 0.0
        %3230 = vmatpush1.msra.mxu0 %v3217
        %3231 = vmatprep.subr.mxu0 0.0
        %3232 = vmatpush1.msra.mxu0 %v3218
        %3233 = vmatprep.subr.mxu0 0.0
        %3234 = vmatpush1.msra.mxu0 %v3219
        %3235 = vmatprep.subr.mxu0 0.0
        %3236 = vmatpush1.msra.mxu0 %v3220
        %3237 = vmatprep.subr.mxu0 0.0
        %3238 = vmatpush1.msra.mxu0 %v3221
        %3239 = vmatprep.subr.mxu0 0.0
        %3240 = vmatpush1.msra.mxu0 %v3222
        %3241 = vmatprep.subr.mxu0 0.0
        %3242 = vmatpush1.msra.mxu0 %v3223
        %3243 = vmatprep.subr.mxu0 0.0
        %3244 = vmatpush1.msra.mxu0 %v3224
        %3245 = vmatprep.subr.mxu0 0.0
        %3246 = vmatpush1.msra.mxu0 0.0
        %3247 = vmatprep.subr.mxu0 0.0
        %3248 = vmatpush1.msra.mxu0 0.0
        %3249 = vmatprep.subr.mxu0 0.0
        %3250 = vmatpush1.msra.mxu0 0.0
        %3251 = vmatprep.subr.mxu0 0.0
        %3252 = vmatpush1.msra.mxu0 0.0
        %3253 = vmatprep.subr.mxu0 0.0
        %3254 = vmatpush1.msra.mxu0 0.0
        %3255 = vmatprep.subr.mxu0 0.0
        %3256 = vmatpush1.msra.mxu0 0.0
        %3257 = vmatprep.subr.mxu0 0.0
        %3258 = vmatpush1.msra.mxu0 0.0
        %3259 = vmatprep.subr.mxu0 0.0
        %3260 = vmatpush1.msra.mxu0 0.0
        %3261 = vmatprep.subr.mxu0 0.0
        %3262 = vmatpush1.msra.mxu0 0.0
        %3263 = vmatprep.subr.mxu0 0.0
        %3264 = vmatpush1.msra.mxu0 0.0
        %3265 = vmatprep.subr.mxu0 0.0
        %3266 = vmatpush1.msra.mxu0 0.0
        %3267 = vmatprep.subr.mxu0 0.0
        %3268 = vmatpush1.msra.mxu0 0.0
        %3269 = vmatprep.subr.mxu0 0.0
        %3270 = vmatpush1.msra.mxu0 0.0
        %3271 = vmatprep.subr.mxu0 0.0
        %3272 = vmatpush1.msra.mxu0 0.0
        %3273 = vmatprep.subr.mxu0 0.0
        %3274 = vmatpush1.msra.mxu0 0.0
        %3275 = vmatprep.subr.mxu0 0.0
        %3276 = vmatpush1.msra.mxu0 0.0
        %3277 = vmatprep.subr.mxu0 0.0
        %3278 = vmatpush1.msra.mxu0 0.0
        %3279 = vmatprep.subr.mxu0 0.0
        %3280 = vmatpush1.msra.mxu0 0.0
        %3281 = vmatprep.subr.mxu0 0.0
        %3282 = vmatpush1.msra.mxu0 0.0
        %3283 = vmatprep.subr.mxu0 0.0
        %3284 = vmatpush1.msra.mxu0 0.0
        %3285 = vmatprep.subr.mxu0 0.0
        %3286 = vmatpush1.msra.mxu0 0.0
        %3287 = vmatprep.subr.mxu0 0.0
        %3288 = vmatpush1.msra.mxu0 0.0
        %3289 = vmatprep.subr.mxu0 0.0
        %3290 = vmatpush1.msra.mxu0 0.0
        %3291 = vmatprep.subr.mxu0 0.0
        %3292 = vmatpush1.msra.mxu0 0.0
        %3293 = vmatprep.mubr.f32.mxu0 0.0
        %3294 = vmatmul.mubr.f32.gmra.mrb[0].mxu0 %v2899
        %v3295 = vpop.f32.mrb[0].mxu0
        %v3296 = vadd.f32 0.0, %v3295
        %v3297 = vpop.f32.mrb[0].mxu0
        %3298 = vmatprep.mubr.f32.mxu0 0.0
        %3299 = vmatmul.mubr.f32.gmra.mrb[0].mxu0 %v2901
        %v3300 = vpop.f32.mrb[0].mxu0
        %v3301 = vadd.f32 0.0, %v3300
        %v3302 = vpop.f32.mrb[0].mxu0
        %3303 = vmatprep.mubr.f32.mxu0 0.0
        %3304 = vmatmul.mubr.f32.gmra.mrb[0].mxu0 %v2903
        %v3305 = vpop.f32.mrb[0].mxu0
        %v3306 = vadd.f32 0.0, %v3305
        %v3307 = vpop.f32.mrb[0].mxu0
        %3308 = vmatprep.mubr.f32.mxu0 0.0
        %3309 = vmatmul.mubr.f32.gmra.mrb[0].mxu0 %v2905
        %v3310 = vpop.f32.mrb[0].mxu0
        %v3311 = vadd.f32 0.0, %v3310
        %v3312 = vpop.f32.mrb[0].mxu0
        %3313 = vmatprep.mubr.f32.mxu0 0.0
        %3314 = vmatmul.mubr.f32.gmra.mrb[0].mxu0 %v2907
        %v3315 = vpop.f32.mrb[0].mxu0
        %v3316 = vadd.f32 0.0, %v3315
        %v3317 = vpop.f32.mrb[0].mxu0
        %3318 = vmatprep.mubr.f32.mxu0 0.0
        %3319 = vmatmul.mubr.f32.gmra.mrb[0].mxu0 %v2909
        %v3320 = vpop.f32.mrb[0].mxu0
        %v3321 = vadd.f32 0.0, %v3320
        %v3322 = vpop.f32.mrb[0].mxu0
        %3323 = vmatprep.mubr.f32.mxu0 0.0
        %3324 = vmatmul.mubr.f32.gmra.mrb[0].mxu0 %v2911
        %v3325 = vpop.f32.mrb[0].mxu0
        %v3326 = vadd.f32 0.0, %v3325
        %v3327 = vpop.f32.mrb[0].mxu0
        %3328 = vmatprep.mubr.f32.mxu0 0.0
        %3329 = vmatmul.mubr.f32.gmra.mrb[0].mxu0 %v2913
        %v3330 = vpop.f32.mrb[0].mxu0
        %v3331 = vadd.f32 0.0, %v3330
        %v3332 = vpop.f32.mrb[0].mxu0
        %3333 = vmatprep.mubr.f32.mxu0 0.0
        %3334 = vmatmul.mubr.f32.gmra.mrb[0].mxu0 %v2915
        %v3335 = vpop.f32.mrb[0].mxu0
        %v3336 = vadd.f32 0.0, %v3335
        %v3337 = vpop.f32.mrb[0].mxu0
        %3338 = vmatprep.mubr.f32.mxu0 0.0
        %3339 = vmatmul.mubr.f32.gmra.mrb[0].mxu0 %v2917
        %v3340 = vpop.f32.mrb[0].mxu0
        %v3341 = vadd.f32 0.0, %v3340
        %v3342 = vpop.f32.mrb[0].mxu0
        %3343 = vmatprep.mubr.f32.mxu0 0.0
        %3344 = vmatmul.mubr.f32.gmra.mrb[0].mxu0 %v2919
        %v3345 = vpop.f32.mrb[0].mxu0
        %v3346 = vadd.f32 0.0, %v3345
        %v3347 = vpop.f32.mrb[0].mxu0
        %3348 = vmatprep.mubr.f32.mxu0 0.0
        %3349 = vmatmul.mubr.f32.gmra.mrb[0].mxu0 %v2921
        %v3350 = vpop.f32.mrb[0].mxu0
        %v3351 = vadd.f32 0.0, %v3350
        %v3352 = vpop.f32.mrb[0].mxu0
        %3353 = vmatprep.mubr.f32.mxu0 0.0
        %3354 = vmatmul.mubr.f32.gmra.mrb[0].mxu0 %v2923
        %v3355 = vpop.f32.mrb[0].mxu0
        %v3356 = vadd.f32 0.0, %v3355
        %v3357 = vpop.f32.mrb[0].mxu0
        %3358 = vmatprep.mubr.f32.mxu0 0.0
        %3359 = vmatmul.mubr.f32.gmra.mrb[0].mxu0 %v2925
        %v3360 = vpop.f32.mrb[0].mxu0
        %v3361 = vadd.f32 0.0, %v3360
        %v3362 = vpop.f32.mrb[0].mxu0
        %3363 = vmatprep.mubr.f32.mxu0 0.0
        %3364 = vmatmul.mubr.f32.gmra.mrb[0].mxu0 %v2927
        %v3365 = vpop.f32.mrb[0].mxu0
        %v3366 = vadd.f32 0.0, %v3365
        %v3367 = vpop.f32.mrb[0].mxu0
        %3368 = vmatprep.mubr.f32.mxu0 0.0
        %3369 = vmatmul.mubr.f32.gmra.mrb[0].mxu0 %v2929
        %v3370 = vpop.f32.mrb[0].mxu0
        %v3371 = vadd.f32 0.0, %v3370
        %v3372 = vpop.f32.mrb[0].mxu0
        %3373 = vmatprep.mubr.f32.mxu0 0.0
        %3374 = vmatmul.mubr.f32.gmra.mrb[0].mxu0 %v2931
        %v3375 = vpop.f32.mrb[0].mxu0
        %v3376 = vadd.f32 0.0, %v3375
        %v3377 = vpop.f32.mrb[0].mxu0
        %3378 = vmatprep.mubr.f32.mxu0 0.0
        %3379 = vmatmul.mubr.f32.gmra.mrb[0].mxu0 %v2933
        %v3380 = vpop.f32.mrb[0].mxu0
        %v3381 = vadd.f32 0.0, %v3380
        %v3382 = vpop.f32.mrb[0].mxu0
        %3383 = vmatprep.mubr.f32.mxu0 0.0
        %3384 = vmatmul.mubr.f32.gmra.mrb[0].mxu0 %v2935
        %v3385 = vpop.f32.mrb[0].mxu0
        %v3386 = vadd.f32 0.0, %v3385
        %v3387 = vpop.f32.mrb[0].mxu0
        %3388 = vmatprep.mubr.f32.mxu0 0.0
        %3389 = vmatmul.mubr.f32.gmra.mrb[0].mxu0 %v2937
        %v3390 = vpop.f32.mrb[0].mxu0
        %v3391 = vadd.f32 0.0, %v3390
        %v3392 = vpop.f32.mrb[0].mxu0
        %3393 = vmatprep.mubr.f32.mxu0 0.0
        %3394 = vmatmul.mubr.f32.gmra.mrb[0].mxu0 %v2939
        %v3395 = vpop.f32.mrb[0].mxu0
        %v3396 = vadd.f32 0.0, %v3395
        %v3397 = vpop.f32.mrb[0].mxu0
        %3398 = vmatprep.mubr.f32.mxu0 0.0
        %3399 = vmatmul.mubr.f32.gmra.mrb[0].mxu0 %v2941
        %v3400 = vpop.f32.mrb[0].mxu0
        %v3401 = vadd.f32 0.0, %v3400
        %v3402 = vpop.f32.mrb[0].mxu0
        %3403 = vmatprep.mubr.f32.mxu0 0.0
        %3404 = vmatmul.mubr.f32.gmra.mrb[0].mxu0 %v2943
        %v3405 = vpop.f32.mrb[0].mxu0
        %v3406 = vadd.f32 0.0, %v3405
        %v3407 = vpop.f32.mrb[0].mxu0
        %3408 = vmatprep.mubr.f32.mxu0 0.0
        %3409 = vmatmul.mubr.f32.gmra.mrb[0].mxu0 %v2945
        %v3410 = vpop.f32.mrb[0].mxu0
        %v3411 = vadd.f32 0.0, %v3410
        %v3412 = vpop.f32.mrb[0].mxu0
        %3413 = vmatprep.mubr.f32.mxu0 0.0
        %3414 = vmatmul.mubr.f32.gmra.mrb[0].mxu0 %v2947
        %v3415 = vpop.f32.mrb[0].mxu0
        %v3416 = vadd.f32 0.0, %v3415
        %v3417 = vpop.f32.mrb[0].mxu0
        %3418 = vmatprep.mubr.f32.mxu0 0.0
        %3419 = vmatmul.mubr.f32.gmra.mrb[0].mxu0 %v2949
        %v3420 = vpop.f32.mrb[0].mxu0
        %v3421 = vadd.f32 0.0, %v3420
        %v3422 = vpop.f32.mrb[0].mxu0
        %3423 = vmatprep.mubr.f32.mxu0 0.0
        %3424 = vmatmul.mubr.f32.gmra.mrb[0].mxu0 %v2951
        %v3425 = vpop.f32.mrb[0].mxu0
        %v3426 = vadd.f32 0.0, %v3425
        %v3427 = vpop.f32.mrb[0].mxu0
        %3428 = vmatprep.mubr.f32.mxu0 0.0
        %3429 = vmatmul.mubr.f32.gmra.mrb[0].mxu0 %v2953
        %v3430 = vpop.f32.mrb[0].mxu0
        %v3431 = vadd.f32 0.0, %v3430
        %v3432 = vpop.f32.mrb[0].mxu0
        %3433 = vmatprep.mubr.f32.mxu0 0.0
        %3434 = vmatmul.mubr.f32.gmra.mrb[0].mxu0 %v2955
        %v3435 = vpop.f32.mrb[0].mxu0
        %v3436 = vadd.f32 0.0, %v3435
        %v3437 = vpop.f32.mrb[0].mxu0
        %3438 = vmatprep.mubr.f32.mxu0 0.0
        %3439 = vmatmul.mubr.f32.gmra.mrb[0].mxu0 %v2957
        %v3440 = vpop.f32.mrb[0].mxu0
        %v3441 = vadd.f32 0.0, %v3440
        %v3442 = vpop.f32.mrb[0].mxu0
        %3443 = vmatprep.mubr.f32.mxu0 0.0
        %3444 = vmatmul.mubr.f32.gmra.mrb[0].mxu0 %v3225
        %v3445 = vpop.f32.mrb[0].mxu0
        %v3446 = vadd.f32 0.0, %v3445
        %v3447 = vpop.f32.mrb[0].mxu0
        %3448 = vmatprep.mubr.f32.mxu0 0.0
        %3449 = vmatmul.mubr.f32.gmra.mrb[0].mxu0 %v3227
        %v3450 = vpop.f32.mrb[0].mxu0
        %v3451 = vadd.f32 0.0, %v3450
        %v3452 = vpop.f32.mrb[0].mxu0
        %3453 = vdwg.mxu0
        %v3454 = vadd.f32 %v3184, %v3296
        %v3455 = vadd.f32 %v3185, %v3301
        %v3456 = vadd.f32 %v3186, %v3306
        %v3457 = vadd.f32 %v3187, %v3311
        %v3458 = vadd.f32 %v3188, %v3316
        %v3459 = vadd.f32 %v3189, %v3321
        %v3460 = vadd.f32 %v3190, %v3326
        %v3461 = vadd.f32 %v3191, %v3331
        %v3462 = vadd.f32 %v3192, %v3336
        %v3463 = vadd.f32 %v3193, %v3341
        %v3464 = vadd.f32 %v3194, %v3346
        %v3465 = vadd.f32 %v3195, %v3351
        %v3466 = vadd.f32 %v3196, %v3356
        %v3467 = vadd.f32 %v3197, %v3361
        %v3468 = vadd.f32 %v3198, %v3366
        %v3469 = vadd.f32 %v3199, %v3371
        %v3470 = vadd.f32 %v3200, %v3376
        %v3471 = vadd.f32 %v3201, %v3381
        %v3472 = vadd.f32 %v3202, %v3386
        %v3473 = vadd.f32 %v3203, %v3391
        %v3474 = vadd.f32 %v3204, %v3396
        %v3475 = vadd.f32 %v3205, %v3401
        %v3476 = vadd.f32 %v3206, %v3406
        %v3477 = vadd.f32 %v3207, %v3411
        %v3478 = vadd.f32 %v3208, %v3416
        %v3479 = vadd.f32 %v3209, %v3421
        %v3480 = vadd.f32 %v3210, %v3426
        %v3481 = vadd.f32 %v3211, %v3431
        %v3482 = vadd.f32 %v3212, %v3436
        %v3483 = vadd.f32 %v3213, %v3441
        %v3484 = vadd.f32 %v3214, %v3446
        %v3485 = vadd.f32 %v3215, %v3451
        %s3486 = scalar_lea.vmem %s3, 448
        %v3487 = vld [vmem:[%s3486] sm:$0xff]
        %v3488 = vld [vmem:[%s3486 + $0x8] sm:$0xff]
        %v3489 = vld [vmem:[%s3486 + $0x10] sm:$0xff]
        %v3490 = vld [vmem:[%s3486 + $0x18] sm:$0xff]
        %v3491 = vld [vmem:[%s3486 + $0x20] sm:$0xff]
        %v3492 = vld [vmem:[%s3486 + $0x28] sm:$0xff]
        %v3493 = vld [vmem:[%s3486 + $0x30] sm:$0xff]
        %v3494 = vld [vmem:[%s3486 + $0x38] sm:$0xff]
        %v3495 = vsel %vm315, %v1933, 0
        %v3497 = vsel %vm315, %v1934, 0
        %3499 = vmatprep.subr.mxu0 0.0
        %3500 = vmatpush1.msra.mxu0 %v3487
        %3501 = vmatprep.subr.mxu0 0.0
        %3502 = vmatpush1.msra.mxu0 %v3488
        %3503 = vmatprep.subr.mxu0 0.0
        %3504 = vmatpush1.msra.mxu0 %v3489
        %3505 = vmatprep.subr.mxu0 0.0
        %3506 = vmatpush1.msra.mxu0 %v3490
        %3507 = vmatprep.subr.mxu0 0.0
        %3508 = vmatpush1.msra.mxu0 %v3491
        %3509 = vmatprep.subr.mxu0 0.0
        %3510 = vmatpush1.msra.mxu0 %v3492
        %3511 = vmatprep.subr.mxu0 0.0
        %3512 = vmatpush1.msra.mxu0 %v3493
        %3513 = vmatprep.subr.mxu0 0.0
        %3514 = vmatpush1.msra.mxu0 %v3494
        %3515 = vmatprep.subr.mxu0 0.0
        %3516 = vmatpush1.msra.mxu0 0.0
        %3517 = vmatprep.subr.mxu0 0.0
        %3518 = vmatpush1.msra.mxu0 0.0
        %3519 = vmatprep.subr.mxu0 0.0
        %3520 = vmatpush1.msra.mxu0 0.0
        %3521 = vmatprep.subr.mxu0 0.0
        %3522 = vmatpush1.msra.mxu0 0.0
        %3523 = vmatprep.subr.mxu0 0.0
        %3524 = vmatpush1.msra.mxu0 0.0
        %3525 = vmatprep.subr.mxu0 0.0
        %3526 = vmatpush1.msra.mxu0 0.0
        %3527 = vmatprep.subr.mxu0 0.0
        %3528 = vmatpush1.msra.mxu0 0.0
        %3529 = vmatprep.subr.mxu0 0.0
        %3530 = vmatpush1.msra.mxu0 0.0
        %3531 = vmatprep.subr.mxu0 0.0
        %3532 = vmatpush1.msra.mxu0 0.0
        %3533 = vmatprep.subr.mxu0 0.0
        %3534 = vmatpush1.msra.mxu0 0.0
        %3535 = vmatprep.subr.mxu0 0.0
        %3536 = vmatpush1.msra.mxu0 0.0
        %3537 = vmatprep.subr.mxu0 0.0
        %3538 = vmatpush1.msra.mxu0 0.0
        %3539 = vmatprep.subr.mxu0 0.0
        %3540 = vmatpush1.msra.mxu0 0.0
        %3541 = vmatprep.subr.mxu0 0.0
        %3542 = vmatpush1.msra.mxu0 0.0
        %3543 = vmatprep.subr.mxu0 0.0
        %3544 = vmatpush1.msra.mxu0 0.0
        %3545 = vmatprep.subr.mxu0 0.0
        %3546 = vmatpush1.msra.mxu0 0.0
        %3547 = vmatprep.subr.mxu0 0.0
        %3548 = vmatpush1.msra.mxu0 0.0
        %3549 = vmatprep.subr.mxu0 0.0
        %3550 = vmatpush1.msra.mxu0 0.0
        %3551 = vmatprep.subr.mxu0 0.0
        %3552 = vmatpush1.msra.mxu0 0.0
        %3553 = vmatprep.subr.mxu0 0.0
        %3554 = vmatpush1.msra.mxu0 0.0
        %3555 = vmatprep.subr.mxu0 0.0
        %3556 = vmatpush1.msra.mxu0 0.0
        %3557 = vmatprep.subr.mxu0 0.0
        %3558 = vmatpush1.msra.mxu0 0.0
        %3559 = vmatprep.subr.mxu0 0.0
        %3560 = vmatpush1.msra.mxu0 0.0
        %3561 = vmatprep.subr.mxu0 0.0
        %3562 = vmatpush1.msra.mxu0 0.0
        %3563 = vmatprep.mubr.f32.mxu0 0.0
        %3564 = vmatmul.mubr.f32.gmra.mrb[0].mxu0 %v2903
        %v3565 = vpop.f32.mrb[0].mxu0
        %v3566 = vadd.f32 0.0, %v3565
        %v3567 = vpop.f32.mrb[0].mxu0
        %3568 = vmatprep.mubr.f32.mxu0 0.0
        %3569 = vmatmul.mubr.f32.gmra.mrb[0].mxu0 %v2905
        %v3570 = vpop.f32.mrb[0].mxu0
        %v3571 = vadd.f32 0.0, %v3570
        %v3572 = vpop.f32.mrb[0].mxu0
        %3573 = vmatprep.mubr.f32.mxu0 0.0
        %3574 = vmatmul.mubr.f32.gmra.mrb[0].mxu0 %v2907
        %v3575 = vpop.f32.mrb[0].mxu0
        %v3576 = vadd.f32 0.0, %v3575
        %v3577 = vpop.f32.mrb[0].mxu0
        %3578 = vmatprep.mubr.f32.mxu0 0.0
        %3579 = vmatmul.mubr.f32.gmra.mrb[0].mxu0 %v2909
        %v3580 = vpop.f32.mrb[0].mxu0
        %v3581 = vadd.f32 0.0, %v3580
        %v3582 = vpop.f32.mrb[0].mxu0
        %3583 = vmatprep.mubr.f32.mxu0 0.0
        %3584 = vmatmul.mubr.f32.gmra.mrb[0].mxu0 %v2911
        %v3585 = vpop.f32.mrb[0].mxu0
        %v3586 = vadd.f32 0.0, %v3585
        %v3587 = vpop.f32.mrb[0].mxu0
        %3588 = vmatprep.mubr.f32.mxu0 0.0
        %3589 = vmatmul.mubr.f32.gmra.mrb[0].mxu0 %v2913
        %v3590 = vpop.f32.mrb[0].mxu0
        %v3591 = vadd.f32 0.0, %v3590
        %v3592 = vpop.f32.mrb[0].mxu0
        %3593 = vmatprep.mubr.f32.mxu0 0.0
        %3594 = vmatmul.mubr.f32.gmra.mrb[0].mxu0 %v2915
        %v3595 = vpop.f32.mrb[0].mxu0
        %v3596 = vadd.f32 0.0, %v3595
        %v3597 = vpop.f32.mrb[0].mxu0
        %3598 = vmatprep.mubr.f32.mxu0 0.0
        %3599 = vmatmul.mubr.f32.gmra.mrb[0].mxu0 %v2917
        %v3600 = vpop.f32.mrb[0].mxu0
        %v3601 = vadd.f32 0.0, %v3600
        %v3602 = vpop.f32.mrb[0].mxu0
        %3603 = vmatprep.mubr.f32.mxu0 0.0
        %3604 = vmatmul.mubr.f32.gmra.mrb[0].mxu0 %v2919
        %v3605 = vpop.f32.mrb[0].mxu0
        %v3606 = vadd.f32 0.0, %v3605
        %v3607 = vpop.f32.mrb[0].mxu0
        %3608 = vmatprep.mubr.f32.mxu0 0.0
        %3609 = vmatmul.mubr.f32.gmra.mrb[0].mxu0 %v2921
        %v3610 = vpop.f32.mrb[0].mxu0
        %v3611 = vadd.f32 0.0, %v3610
        %v3612 = vpop.f32.mrb[0].mxu0
        %3613 = vmatprep.mubr.f32.mxu0 0.0
        %3614 = vmatmul.mubr.f32.gmra.mrb[0].mxu0 %v2923
        %v3615 = vpop.f32.mrb[0].mxu0
        %v3616 = vadd.f32 0.0, %v3615
        %v3617 = vpop.f32.mrb[0].mxu0
        %3618 = vmatprep.mubr.f32.mxu0 0.0
        %3619 = vmatmul.mubr.f32.gmra.mrb[0].mxu0 %v2925
        %v3620 = vpop.f32.mrb[0].mxu0
        %v3621 = vadd.f32 0.0, %v3620
        %v3622 = vpop.f32.mrb[0].mxu0
        %3623 = vmatprep.mubr.f32.mxu0 0.0
        %3624 = vmatmul.mubr.f32.gmra.mrb[0].mxu0 %v2927
        %v3625 = vpop.f32.mrb[0].mxu0
        %v3626 = vadd.f32 0.0, %v3625
        %v3627 = vpop.f32.mrb[0].mxu0
        %3628 = vmatprep.mubr.f32.mxu0 0.0
        %3629 = vmatmul.mubr.f32.gmra.mrb[0].mxu0 %v2929
        %v3630 = vpop.f32.mrb[0].mxu0
        %v3631 = vadd.f32 0.0, %v3630
        %v3632 = vpop.f32.mrb[0].mxu0
        %3633 = vmatprep.mubr.f32.mxu0 0.0
        %3634 = vmatmul.mubr.f32.gmra.mrb[0].mxu0 %v2931
        %v3635 = vpop.f32.mrb[0].mxu0
        %v3636 = vadd.f32 0.0, %v3635
        %v3637 = vpop.f32.mrb[0].mxu0
        %3638 = vmatprep.mubr.f32.mxu0 0.0
        %3639 = vmatmul.mubr.f32.gmra.mrb[0].mxu0 %v2933
        %v3640 = vpop.f32.mrb[0].mxu0
        %v3641 = vadd.f32 0.0, %v3640
        %v3642 = vpop.f32.mrb[0].mxu0
        %3643 = vmatprep.mubr.f32.mxu0 0.0
        %3644 = vmatmul.mubr.f32.gmra.mrb[0].mxu0 %v2935
        %v3645 = vpop.f32.mrb[0].mxu0
        %v3646 = vadd.f32 0.0, %v3645
        %v3647 = vpop.f32.mrb[0].mxu0
        %3648 = vmatprep.mubr.f32.mxu0 0.0
        %3649 = vmatmul.mubr.f32.gmra.mrb[0].mxu0 %v2937
        %v3650 = vpop.f32.mrb[0].mxu0
        %v3651 = vadd.f32 0.0, %v3650
        %v3652 = vpop.f32.mrb[0].mxu0
        %3653 = vmatprep.mubr.f32.mxu0 0.0
        %3654 = vmatmul.mubr.f32.gmra.mrb[0].mxu0 %v2939
        %v3655 = vpop.f32.mrb[0].mxu0
        %v3656 = vadd.f32 0.0, %v3655
        %v3657 = vpop.f32.mrb[0].mxu0
        %3658 = vmatprep.mubr.f32.mxu0 0.0
        %3659 = vmatmul.mubr.f32.gmra.mrb[0].mxu0 %v2941
        %v3660 = vpop.f32.mrb[0].mxu0
        %v3661 = vadd.f32 0.0, %v3660
        %v3662 = vpop.f32.mrb[0].mxu0
        %3663 = vmatprep.mubr.f32.mxu0 0.0
        %3664 = vmatmul.mubr.f32.gmra.mrb[0].mxu0 %v2943
        %v3665 = vpop.f32.mrb[0].mxu0
        %v3666 = vadd.f32 0.0, %v3665
        %v3667 = vpop.f32.mrb[0].mxu0
        %3668 = vmatprep.mubr.f32.mxu0 0.0
        %3669 = vmatmul.mubr.f32.gmra.mrb[0].mxu0 %v2945
        %v3670 = vpop.f32.mrb[0].mxu0
        %v3671 = vadd.f32 0.0, %v3670
        %v3672 = vpop.f32.mrb[0].mxu0
        %3673 = vmatprep.mubr.f32.mxu0 0.0
        %3674 = vmatmul.mubr.f32.gmra.mrb[0].mxu0 %v2947
        %v3675 = vpop.f32.mrb[0].mxu0
        %v3676 = vadd.f32 0.0, %v3675
        %v3677 = vpop.f32.mrb[0].mxu0
        %3678 = vmatprep.mubr.f32.mxu0 0.0
        %3679 = vmatmul.mubr.f32.gmra.mrb[0].mxu0 %v2949
        %v3680 = vpop.f32.mrb[0].mxu0
        %v3681 = vadd.f32 0.0, %v3680
        %v3682 = vpop.f32.mrb[0].mxu0
        %3683 = vmatprep.mubr.f32.mxu0 0.0
        %3684 = vmatmul.mubr.f32.gmra.mrb[0].mxu0 %v2951
        %v3685 = vpop.f32.mrb[0].mxu0
        %v3686 = vadd.f32 0.0, %v3685
        %v3687 = vpop.f32.mrb[0].mxu0
        %3688 = vmatprep.mubr.f32.mxu0 0.0
        %3689 = vmatmul.mubr.f32.gmra.mrb[0].mxu0 %v2953
        %v3690 = vpop.f32.mrb[0].mxu0
        %v3691 = vadd.f32 0.0, %v3690
        %v3692 = vpop.f32.mrb[0].mxu0
        %3693 = vmatprep.mubr.f32.mxu0 0.0
        %3694 = vmatmul.mubr.f32.gmra.mrb[0].mxu0 %v2955
        %v3695 = vpop.f32.mrb[0].mxu0
        %v3696 = vadd.f32 0.0, %v3695
        %v3697 = vpop.f32.mrb[0].mxu0
        %3698 = vmatprep.mubr.f32.mxu0 0.0
        %3699 = vmatmul.mubr.f32.gmra.mrb[0].mxu0 %v2957
        %v3700 = vpop.f32.mrb[0].mxu0
        %v3701 = vadd.f32 0.0, %v3700
        %v3702 = vpop.f32.mrb[0].mxu0
        %3703 = vmatprep.mubr.f32.mxu0 0.0
        %3704 = vmatmul.mubr.f32.gmra.mrb[0].mxu0 %v3225
        %v3705 = vpop.f32.mrb[0].mxu0
        %v3706 = vadd.f32 0.0, %v3705
        %v3707 = vpop.f32.mrb[0].mxu0
        %3708 = vmatprep.mubr.f32.mxu0 0.0
        %3709 = vmatmul.mubr.f32.gmra.mrb[0].mxu0 %v3227
        %v3710 = vpop.f32.mrb[0].mxu0
        %v3711 = vadd.f32 0.0, %v3710
        %v3712 = vpop.f32.mrb[0].mxu0
        %3713 = vmatprep.mubr.f32.mxu0 0.0
        %3714 = vmatmul.mubr.f32.gmra.mrb[0].mxu0 %v3495
        %v3715 = vpop.f32.mrb[0].mxu0
        %v3716 = vadd.f32 0.0, %v3715
        %v3717 = vpop.f32.mrb[0].mxu0
        %3718 = vmatprep.mubr.f32.mxu0 0.0
        %3719 = vmatmul.mubr.f32.gmra.mrb[0].mxu0 %v3497
        %v3720 = vpop.f32.mrb[0].mxu0
        %v3721 = vadd.f32 0.0, %v3720
        %v3722 = vpop.f32.mrb[0].mxu0
        %3723 = vdwg.mxu0
        %v3724 = vadd.f32 %v3454, %v3566
        %v3725 = vadd.f32 %v3455, %v3571
        %v3726 = vadd.f32 %v3456, %v3576
        %v3727 = vadd.f32 %v3457, %v3581
        %v3728 = vadd.f32 %v3458, %v3586
        %v3729 = vadd.f32 %v3459, %v3591
        %v3730 = vadd.f32 %v3460, %v3596
        %v3731 = vadd.f32 %v3461, %v3601
        %v3732 = vadd.f32 %v3462, %v3606
        %v3733 = vadd.f32 %v3463, %v3611
        %v3734 = vadd.f32 %v3464, %v3616
        %v3735 = vadd.f32 %v3465, %v3621
        %v3736 = vadd.f32 %v3466, %v3626
        %v3737 = vadd.f32 %v3467, %v3631
        %v3738 = vadd.f32 %v3468, %v3636
        %v3739 = vadd.f32 %v3469, %v3641
        %v3740 = vadd.f32 %v3470, %v3646
        %v3741 = vadd.f32 %v3471, %v3651
        %v3742 = vadd.f32 %v3472, %v3656
        %v3743 = vadd.f32 %v3473, %v3661
        %v3744 = vadd.f32 %v3474, %v3666
        %v3745 = vadd.f32 %v3475, %v3671
        %v3746 = vadd.f32 %v3476, %v3676
        %v3747 = vadd.f32 %v3477, %v3681
        %v3748 = vadd.f32 %v3478, %v3686
        %v3749 = vadd.f32 %v3479, %v3691
        %v3750 = vadd.f32 %v3480, %v3696
        %v3751 = vadd.f32 %v3481, %v3701
        %v3752 = vadd.f32 %v3482, %v3706
        %v3753 = vadd.f32 %v3483, %v3711
        %v3754 = vadd.f32 %v3484, %v3716
        %v3755 = vadd.f32 %v3485, %v3721
        %vm3772 = vcmask 1046528
        %v3773 = vrot.slane %v1865, 1
        %v3774 = vrot.slane %v1866, 1
        %v3775 = vsel %vm3772, %v3773, %v3774
        %v3776 = vrot.slane %v1867, 1
        %v3777 = vsel %vm3772, %v3774, %v3776
        %v3778 = vrot.slane %v1869, 1
        %v3779 = vrot.slane %v1870, 1
        %v3780 = vsel %vm3772, %v3778, %v3779
        %v3781 = vrot.slane %v1871, 1
        %v3782 = vsel %vm3772, %v3779, %v3781
        %v3783 = vrot.slane %v1873, 1
        %v3784 = vrot.slane %v1874, 1
        %v3785 = vsel %vm3772, %v3783, %v3784
        %v3786 = vrot.slane %v1875, 1
        %v3787 = vsel %vm3772, %v3784, %v3786
        %v3788 = vrot.slane %v1877, 1
        %v3789 = vrot.slane %v1878, 1
        %v3790 = vsel %vm3772, %v3788, %v3789
        %v3791 = vrot.slane %v1879, 1
        %v3792 = vsel %vm3772, %v3789, %v3791
        %v3793 = vrot.slane %v1881, 1
        %v3794 = vrot.slane %v1882, 1
        %v3795 = vsel %vm3772, %v3793, %v3794
        %v3796 = vrot.slane %v1883, 1
        %v3797 = vsel %vm3772, %v3794, %v3796
        %v3798 = vrot.slane %v1885, 1
        %v3799 = vrot.slane %v1886, 1
        %v3800 = vsel %vm3772, %v3798, %v3799
        %v3801 = vrot.slane %v1887, 1
        %v3802 = vsel %vm3772, %v3799, %v3801
        %v3803 = vrot.slane %v1889, 1
        %v3804 = vrot.slane %v1890, 1
        %v3805 = vsel %vm3772, %v3803, %v3804
        %v3806 = vrot.slane %v1891, 1
        %v3807 = vsel %vm3772, %v3804, %v3806
        %v3808 = vrot.slane %v1893, 1
        %v3809 = vrot.slane %v1894, 1
        %v3810 = vsel %vm3772, %v3808, %v3809
        %v3811 = vrot.slane %v1895, 1
        %v3812 = vsel %vm3772, %v3809, %v3811
        %v3813 = vrot.slane %v1897, 1
        %v3814 = vrot.slane %v1898, 1
        %v3815 = vsel %vm3772, %v3813, %v3814
        %v3816 = vrot.slane %v1899, 1
        %v3817 = vsel %vm3772, %v3814, %v3816
        %v3818 = vrot.slane %v1901, 1
        %v3819 = vrot.slane %v1902, 1
        %v3820 = vsel %vm3772, %v3818, %v3819
        %v3821 = vrot.slane %v1903, 1
        %v3822 = vsel %vm3772, %v3819, %v3821
        %v3823 = vrot.slane %v1905, 1
        %v3824 = vrot.slane %v1906, 1
        %v3825 = vsel %vm3772, %v3823, %v3824
        %v3826 = vrot.slane %v1907, 1
        %v3827 = vsel %vm3772, %v3824, %v3826
        %v3828 = vrot.slane %v1909, 1
        %v3829 = vrot.slane %v1910, 1
        %v3830 = vsel %vm3772, %v3828, %v3829
        %v3831 = vrot.slane %v1911, 1
        %v3832 = vsel %vm3772, %v3829, %v3831
        %v3833 = vrot.slane %v1913, 1
        %v3834 = vrot.slane %v1914, 1
        %v3835 = vsel %vm3772, %v3833, %v3834
        %v3836 = vrot.slane %v1915, 1
        %v3837 = vsel %vm3772, %v3834, %v3836
        %v3838 = vrot.slane %v1917, 1
        %v3839 = vrot.slane %v1918, 1
        %v3840 = vsel %vm3772, %v3838, %v3839
        %v3841 = vrot.slane %v1919, 1
        %v3842 = vsel %vm3772, %v3839, %v3841
        %v3843 = vrot.slane %v1921, 1
        %v3844 = vrot.slane %v1922, 1
        %v3845 = vsel %vm3772, %v3843, %v3844
        %v3846 = vrot.slane %v1923, 1
        %v3847 = vsel %vm3772, %v3844, %v3846
        %v3848 = vrot.slane %v1925, 1
        %v3849 = vrot.slane %v1926, 1
        %v3850 = vsel %vm3772, %v3848, %v3849
        %v3851 = vrot.slane %v1927, 1
        %v3852 = vsel %vm3772, %v3849, %v3851
        %s3853 = scalar_lea.vmem %s3, 128
        %v3854 = vld [vmem:[%s3853] sm:$0xff]
        %v3855 = vld [vmem:[%s3853 + $0x8] sm:$0xff]
        %v3856 = vld [vmem:[%s3853 + $0x10] sm:$0xff]
        %v3857 = vld [vmem:[%s3853 + $0x18] sm:$0xff]
        %v3858 = vld [vmem:[%s3853 + $0x20] sm:$0xff]
        %v3859 = vld [vmem:[%s3853 + $0x28] sm:$0xff]
        %v3860 = vld [vmem:[%s3853 + $0x30] sm:$0xff]
        %v3861 = vld [vmem:[%s3853 + $0x38] sm:$0xff]
        %v3862 = vsel %vm315, %v3775, 0
        %v3864 = vsel %vm315, %v3777, 0
        %v3866 = vsel %vm315, %v3780, 0
        %v3868 = vsel %vm315, %v3782, 0
        %v3870 = vsel %vm315, %v3785, 0
        %v3872 = vsel %vm315, %v3787, 0
        %v3874 = vsel %vm315, %v3790, 0
        %v3876 = vsel %vm315, %v3792, 0
        %v3878 = vsel %vm315, %v3795, 0
        %v3880 = vsel %vm315, %v3797, 0
        %v3882 = vsel %vm315, %v3800, 0
        %v3884 = vsel %vm315, %v3802, 0
        %v3886 = vsel %vm315, %v3805, 0
        %v3888 = vsel %vm315, %v3807, 0
        %v3890 = vsel %vm315, %v3810, 0
        %v3892 = vsel %vm315, %v3812, 0
        %v3894 = vsel %vm315, %v3815, 0
        %v3896 = vsel %vm315, %v3817, 0
        %v3898 = vsel %vm315, %v3820, 0
        %v3900 = vsel %vm315, %v3822, 0
        %v3902 = vsel %vm315, %v3825, 0
        %v3904 = vsel %vm315, %v3827, 0
        %v3906 = vsel %vm315, %v3830, 0
        %v3908 = vsel %vm315, %v3832, 0
        %v3910 = vsel %vm315, %v3835, 0
        %v3912 = vsel %vm315, %v3837, 0
        %v3914 = vsel %vm315, %v3840, 0
        %v3916 = vsel %vm315, %v3842, 0
        %v3918 = vsel %vm315, %v3845, 0
        %v3920 = vsel %vm315, %v3847, 0
        %v3922 = vsel %vm315, %v3850, 0
        %v3924 = vsel %vm315, %v3852, 0
        %3926 = vmatprep.subr.mxu0 0.0
        %3927 = vmatpush1.msra.mxu0 %v3854
        %3928 = vmatprep.subr.mxu0 0.0
        %3929 = vmatpush1.msra.mxu0 %v3855
        %3930 = vmatprep.subr.mxu0 0.0
        %3931 = vmatpush1.msra.mxu0 %v3856
        %3932 = vmatprep.subr.mxu0 0.0
        %3933 = vmatpush1.msra.mxu0 %v3857
        %3934 = vmatprep.subr.mxu0 0.0
        %3935 = vmatpush1.msra.mxu0 %v3858
        %3936 = vmatprep.subr.mxu0 0.0
        %3937 = vmatpush1.msra.mxu0 %v3859
        %3938 = vmatprep.subr.mxu0 0.0
        %3939 = vmatpush1.msra.mxu0 %v3860
        %3940 = vmatprep.subr.mxu0 0.0
        %3941 = vmatpush1.msra.mxu0 %v3861
        %3942 = vmatprep.subr.mxu0 0.0
        %3943 = vmatpush1.msra.mxu0 0.0
        %3944 = vmatprep.subr.mxu0 0.0
        %3945 = vmatpush1.msra.mxu0 0.0
        %3946 = vmatprep.subr.mxu0 0.0
        %3947 = vmatpush1.msra.mxu0 0.0
        %3948 = vmatprep.subr.mxu0 0.0
        %3949 = vmatpush1.msra.mxu0 0.0
        %3950 = vmatprep.subr.mxu0 0.0
        %3951 = vmatpush1.msra.mxu0 0.0
        %3952 = vmatprep.subr.mxu0 0.0
        %3953 = vmatpush1.msra.mxu0 0.0
        %3954 = vmatprep.subr.mxu0 0.0
        %3955 = vmatpush1.msra.mxu0 0.0
        %3956 = vmatprep.subr.mxu0 0.0
        %3957 = vmatpush1.msra.mxu0 0.0
        %3958 = vmatprep.subr.mxu0 0.0
        %3959 = vmatpush1.msra.mxu0 0.0
        %3960 = vmatprep.subr.mxu0 0.0
        %3961 = vmatpush1.msra.mxu0 0.0
        %3962 = vmatprep.subr.mxu0 0.0
        %3963 = vmatpush1.msra.mxu0 0.0
        %3964 = vmatprep.subr.mxu0 0.0
        %3965 = vmatpush1.msra.mxu0 0.0
        %3966 = vmatprep.subr.mxu0 0.0
        %3967 = vmatpush1.msra.mxu0 0.0
        %3968 = vmatprep.subr.mxu0 0.0
        %3969 = vmatpush1.msra.mxu0 0.0
        %3970 = vmatprep.subr.mxu0 0.0
        %3971 = vmatpush1.msra.mxu0 0.0
        %3972 = vmatprep.subr.mxu0 0.0
        %3973 = vmatpush1.msra.mxu0 0.0
        %3974 = vmatprep.subr.mxu0 0.0
        %3975 = vmatpush1.msra.mxu0 0.0
        %3976 = vmatprep.subr.mxu0 0.0
        %3977 = vmatpush1.msra.mxu0 0.0
        %3978 = vmatprep.subr.mxu0 0.0
        %3979 = vmatpush1.msra.mxu0 0.0
        %3980 = vmatprep.subr.mxu0 0.0
        %3981 = vmatpush1.msra.mxu0 0.0
        %3982 = vmatprep.subr.mxu0 0.0
        %3983 = vmatpush1.msra.mxu0 0.0
        %3984 = vmatprep.subr.mxu0 0.0
        %3985 = vmatpush1.msra.mxu0 0.0
        %3986 = vmatprep.subr.mxu0 0.0
        %3987 = vmatpush1.msra.mxu0 0.0
        %3988 = vmatprep.subr.mxu0 0.0
        %3989 = vmatpush1.msra.mxu0 0.0
        %3990 = vmatprep.mubr.f32.mxu0 0.0
        %3991 = vmatmul.mubr.f32.gmra.mrb[0].mxu0 %v3862
        %v3992 = vpop.f32.mrb[0].mxu0
        %v3993 = vadd.f32 0.0, %v3992
        %v3994 = vpop.f32.mrb[0].mxu0
        %3995 = vmatprep.mubr.f32.mxu0 0.0
        %3996 = vmatmul.mubr.f32.gmra.mrb[0].mxu0 %v3864
        %v3997 = vpop.f32.mrb[0].mxu0
        %v3998 = vadd.f32 0.0, %v3997
        %v3999 = vpop.f32.mrb[0].mxu0
        %4000 = vmatprep.mubr.f32.mxu0 0.0
        %4001 = vmatmul.mubr.f32.gmra.mrb[0].mxu0 %v3866
        %v4002 = vpop.f32.mrb[0].mxu0
        %v4003 = vadd.f32 0.0, %v4002
        %v4004 = vpop.f32.mrb[0].mxu0
        %4005 = vmatprep.mubr.f32.mxu0 0.0
        %4006 = vmatmul.mubr.f32.gmra.mrb[0].mxu0 %v3868
        %v4007 = vpop.f32.mrb[0].mxu0
        %v4008 = vadd.f32 0.0, %v4007
        %v4009 = vpop.f32.mrb[0].mxu0
        %4010 = vmatprep.mubr.f32.mxu0 0.0
        %4011 = vmatmul.mubr.f32.gmra.mrb[0].mxu0 %v3870
        %v4012 = vpop.f32.mrb[0].mxu0
        %v4013 = vadd.f32 0.0, %v4012
        %v4014 = vpop.f32.mrb[0].mxu0
        %4015 = vmatprep.mubr.f32.mxu0 0.0
        %4016 = vmatmul.mubr.f32.gmra.mrb[0].mxu0 %v3872
        %v4017 = vpop.f32.mrb[0].mxu0
        %v4018 = vadd.f32 0.0, %v4017
        %v4019 = vpop.f32.mrb[0].mxu0
        %4020 = vmatprep.mubr.f32.mxu0 0.0
        %4021 = vmatmul.mubr.f32.gmra.mrb[0].mxu0 %v3874
        %v4022 = vpop.f32.mrb[0].mxu0
        %v4023 = vadd.f32 0.0, %v4022
        %v4024 = vpop.f32.mrb[0].mxu0
        %4025 = vmatprep.mubr.f32.mxu0 0.0
        %4026 = vmatmul.mubr.f32.gmra.mrb[0].mxu0 %v3876
        %v4027 = vpop.f32.mrb[0].mxu0
        %v4028 = vadd.f32 0.0, %v4027
        %v4029 = vpop.f32.mrb[0].mxu0
        %4030 = vmatprep.mubr.f32.mxu0 0.0
        %4031 = vmatmul.mubr.f32.gmra.mrb[0].mxu0 %v3878
        %v4032 = vpop.f32.mrb[0].mxu0
        %v4033 = vadd.f32 0.0, %v4032
        %v4034 = vpop.f32.mrb[0].mxu0
        %4035 = vmatprep.mubr.f32.mxu0 0.0
        %4036 = vmatmul.mubr.f32.gmra.mrb[0].mxu0 %v3880
        %v4037 = vpop.f32.mrb[0].mxu0
        %v4038 = vadd.f32 0.0, %v4037
        %v4039 = vpop.f32.mrb[0].mxu0
        %4040 = vmatprep.mubr.f32.mxu0 0.0
        %4041 = vmatmul.mubr.f32.gmra.mrb[0].mxu0 %v3882
        %v4042 = vpop.f32.mrb[0].mxu0
        %v4043 = vadd.f32 0.0, %v4042
        %v4044 = vpop.f32.mrb[0].mxu0
        %4045 = vmatprep.mubr.f32.mxu0 0.0
        %4046 = vmatmul.mubr.f32.gmra.mrb[0].mxu0 %v3884
        %v4047 = vpop.f32.mrb[0].mxu0
        %v4048 = vadd.f32 0.0, %v4047
        %v4049 = vpop.f32.mrb[0].mxu0
        %4050 = vmatprep.mubr.f32.mxu0 0.0
        %4051 = vmatmul.mubr.f32.gmra.mrb[0].mxu0 %v3886
        %v4052 = vpop.f32.mrb[0].mxu0
        %v4053 = vadd.f32 0.0, %v4052
        %v4054 = vpop.f32.mrb[0].mxu0
        %4055 = vmatprep.mubr.f32.mxu0 0.0
        %4056 = vmatmul.mubr.f32.gmra.mrb[0].mxu0 %v3888
        %v4057 = vpop.f32.mrb[0].mxu0
        %v4058 = vadd.f32 0.0, %v4057
        %v4059 = vpop.f32.mrb[0].mxu0
        %4060 = vmatprep.mubr.f32.mxu0 0.0
        %4061 = vmatmul.mubr.f32.gmra.mrb[0].mxu0 %v3890
        %v4062 = vpop.f32.mrb[0].mxu0
        %v4063 = vadd.f32 0.0, %v4062
        %v4064 = vpop.f32.mrb[0].mxu0
        %4065 = vmatprep.mubr.f32.mxu0 0.0
        %4066 = vmatmul.mubr.f32.gmra.mrb[0].mxu0 %v3892
        %v4067 = vpop.f32.mrb[0].mxu0
        %v4068 = vadd.f32 0.0, %v4067
        %v4069 = vpop.f32.mrb[0].mxu0
        %4070 = vmatprep.mubr.f32.mxu0 0.0
        %4071 = vmatmul.mubr.f32.gmra.mrb[0].mxu0 %v3894
        %v4072 = vpop.f32.mrb[0].mxu0
        %v4073 = vadd.f32 0.0, %v4072
        %v4074 = vpop.f32.mrb[0].mxu0
        %4075 = vmatprep.mubr.f32.mxu0 0.0
        %4076 = vmatmul.mubr.f32.gmra.mrb[0].mxu0 %v3896
        %v4077 = vpop.f32.mrb[0].mxu0
        %v4078 = vadd.f32 0.0, %v4077
        %v4079 = vpop.f32.mrb[0].mxu0
        %4080 = vmatprep.mubr.f32.mxu0 0.0
        %4081 = vmatmul.mubr.f32.gmra.mrb[0].mxu0 %v3898
        %v4082 = vpop.f32.mrb[0].mxu0
        %v4083 = vadd.f32 0.0, %v4082
        %v4084 = vpop.f32.mrb[0].mxu0
        %4085 = vmatprep.mubr.f32.mxu0 0.0
        %4086 = vmatmul.mubr.f32.gmra.mrb[0].mxu0 %v3900
        %v4087 = vpop.f32.mrb[0].mxu0
        %v4088 = vadd.f32 0.0, %v4087
        %v4089 = vpop.f32.mrb[0].mxu0
        %4090 = vmatprep.mubr.f32.mxu0 0.0
        %4091 = vmatmul.mubr.f32.gmra.mrb[0].mxu0 %v3902
        %v4092 = vpop.f32.mrb[0].mxu0
        %v4093 = vadd.f32 0.0, %v4092
        %v4094 = vpop.f32.mrb[0].mxu0
        %4095 = vmatprep.mubr.f32.mxu0 0.0
        %4096 = vmatmul.mubr.f32.gmra.mrb[0].mxu0 %v3904
        %v4097 = vpop.f32.mrb[0].mxu0
        %v4098 = vadd.f32 0.0, %v4097
        %v4099 = vpop.f32.mrb[0].mxu0
        %4100 = vmatprep.mubr.f32.mxu0 0.0
        %4101 = vmatmul.mubr.f32.gmra.mrb[0].mxu0 %v3906
        %v4102 = vpop.f32.mrb[0].mxu0
        %v4103 = vadd.f32 0.0, %v4102
        %v4104 = vpop.f32.mrb[0].mxu0
        %4105 = vmatprep.mubr.f32.mxu0 0.0
        %4106 = vmatmul.mubr.f32.gmra.mrb[0].mxu0 %v3908
        %v4107 = vpop.f32.mrb[0].mxu0
        %v4108 = vadd.f32 0.0, %v4107
        %v4109 = vpop.f32.mrb[0].mxu0
        %4110 = vmatprep.mubr.f32.mxu0 0.0
        %4111 = vmatmul.mubr.f32.gmra.mrb[0].mxu0 %v3910
        %v4112 = vpop.f32.mrb[0].mxu0
        %v4113 = vadd.f32 0.0, %v4112
        %v4114 = vpop.f32.mrb[0].mxu0
        %4115 = vmatprep.mubr.f32.mxu0 0.0
        %4116 = vmatmul.mubr.f32.gmra.mrb[0].mxu0 %v3912
        %v4117 = vpop.f32.mrb[0].mxu0
        %v4118 = vadd.f32 0.0, %v4117
        %v4119 = vpop.f32.mrb[0].mxu0
        %4120 = vmatprep.mubr.f32.mxu0 0.0
        %4121 = vmatmul.mubr.f32.gmra.mrb[0].mxu0 %v3914
        %v4122 = vpop.f32.mrb[0].mxu0
        %v4123 = vadd.f32 0.0, %v4122
        %v4124 = vpop.f32.mrb[0].mxu0
        %4125 = vmatprep.mubr.f32.mxu0 0.0
        %4126 = vmatmul.mubr.f32.gmra.mrb[0].mxu0 %v3916
        %v4127 = vpop.f32.mrb[0].mxu0
        %v4128 = vadd.f32 0.0, %v4127
        %v4129 = vpop.f32.mrb[0].mxu0
        %4130 = vmatprep.mubr.f32.mxu0 0.0
        %4131 = vmatmul.mubr.f32.gmra.mrb[0].mxu0 %v3918
        %v4132 = vpop.f32.mrb[0].mxu0
        %v4133 = vadd.f32 0.0, %v4132
        %v4134 = vpop.f32.mrb[0].mxu0
        %4135 = vmatprep.mubr.f32.mxu0 0.0
        %4136 = vmatmul.mubr.f32.gmra.mrb[0].mxu0 %v3920
        %v4137 = vpop.f32.mrb[0].mxu0
        %v4138 = vadd.f32 0.0, %v4137
        %v4139 = vpop.f32.mrb[0].mxu0
        %4140 = vmatprep.mubr.f32.mxu0 0.0
        %4141 = vmatmul.mubr.f32.gmra.mrb[0].mxu0 %v3922
        %v4142 = vpop.f32.mrb[0].mxu0
        %v4143 = vadd.f32 0.0, %v4142
        %v4144 = vpop.f32.mrb[0].mxu0
        %4145 = vmatprep.mubr.f32.mxu0 0.0
        %4146 = vmatmul.mubr.f32.gmra.mrb[0].mxu0 %v3924
        %v4147 = vpop.f32.mrb[0].mxu0
        %v4148 = vadd.f32 0.0, %v4147
        %v4149 = vpop.f32.mrb[0].mxu0
        %4150 = vdwg.mxu0
        %v4151 = vadd.f32 %v3724, %v3993
        %v4152 = vadd.f32 %v3725, %v3998
        %v4153 = vadd.f32 %v3726, %v4003
        %v4154 = vadd.f32 %v3727, %v4008
        %v4155 = vadd.f32 %v3728, %v4013
        %v4156 = vadd.f32 %v3729, %v4018
        %v4157 = vadd.f32 %v3730, %v4023
        %v4158 = vadd.f32 %v3731, %v4028
        %v4159 = vadd.f32 %v3732, %v4033
        %v4160 = vadd.f32 %v3733, %v4038
        %v4161 = vadd.f32 %v3734, %v4043
        %v4162 = vadd.f32 %v3735, %v4048
        %v4163 = vadd.f32 %v3736, %v4053
        %v4164 = vadd.f32 %v3737, %v4058
        %v4165 = vadd.f32 %v3738, %v4063
        %v4166 = vadd.f32 %v3739, %v4068
        %v4167 = vadd.f32 %v3740, %v4073
        %v4168 = vadd.f32 %v3741, %v4078
        %v4169 = vadd.f32 %v3742, %v4083
        %v4170 = vadd.f32 %v3743, %v4088
        %v4171 = vadd.f32 %v3744, %v4093
        %v4172 = vadd.f32 %v3745, %v4098
        %v4173 = vadd.f32 %v3746, %v4103
        %v4174 = vadd.f32 %v3747, %v4108
        %v4175 = vadd.f32 %v3748, %v4113
        %v4176 = vadd.f32 %v3749, %v4118
        %v4177 = vadd.f32 %v3750, %v4123
        %v4178 = vadd.f32 %v3751, %v4128
        %v4179 = vadd.f32 %v3752, %v4133
        %v4180 = vadd.f32 %v3753, %v4138
        %v4181 = vadd.f32 %v3754, %v4143
        %v4182 = vadd.f32 %v3755, %v4148
        %v4184 = vrot.slane %v1929, 1
        %v4185 = vrot.slane %v1930, 1
        %v4186 = vsel %vm3772, %v4184, %v4185
        %v4187 = vrot.slane %v1931, 1
        %v4188 = vsel %vm3772, %v4185, %v4187
        %s4189 = scalar_lea.vmem %s3, 320
        %v4190 = vld [vmem:[%s4189] sm:$0xff]
        %v4191 = vld [vmem:[%s4189 + $0x8] sm:$0xff]
        %v4192 = vld [vmem:[%s4189 + $0x10] sm:$0xff]
        %v4193 = vld [vmem:[%s4189 + $0x18] sm:$0xff]
        %v4194 = vld [vmem:[%s4189 + $0x20] sm:$0xff]
        %v4195 = vld [vmem:[%s4189 + $0x28] sm:$0xff]
        %v4196 = vld [vmem:[%s4189 + $0x30] sm:$0xff]
        %v4197 = vld [vmem:[%s4189 + $0x38] sm:$0xff]
        %v4198 = vsel %vm315, %v4186, 0
        %v4200 = vsel %vm315, %v4188, 0
        %4202 = vmatprep.subr.mxu0 0.0
        %4203 = vmatpush1.msra.mxu0 %v4190
        %4204 = vmatprep.subr.mxu0 0.0
        %4205 = vmatpush1.msra.mxu0 %v4191
        %4206 = vmatprep.subr.mxu0 0.0
        %4207 = vmatpush1.msra.mxu0 %v4192
        %4208 = vmatprep.subr.mxu0 0.0
        %4209 = vmatpush1.msra.mxu0 %v4193
        %4210 = vmatprep.subr.mxu0 0.0
        %4211 = vmatpush1.msra.mxu0 %v4194
        %4212 = vmatprep.subr.mxu0 0.0
        %4213 = vmatpush1.msra.mxu0 %v4195
        %4214 = vmatprep.subr.mxu0 0.0
        %4215 = vmatpush1.msra.mxu0 %v4196
        %4216 = vmatprep.subr.mxu0 0.0
        %4217 = vmatpush1.msra.mxu0 %v4197
        %4218 = vmatprep.subr.mxu0 0.0
        %4219 = vmatpush1.msra.mxu0 0.0
        %4220 = vmatprep.subr.mxu0 0.0
        %4221 = vmatpush1.msra.mxu0 0.0
        %4222 = vmatprep.subr.mxu0 0.0
        %4223 = vmatpush1.msra.mxu0 0.0
        %4224 = vmatprep.subr.mxu0 0.0
        %4225 = vmatpush1.msra.mxu0 0.0
        %4226 = vmatprep.subr.mxu0 0.0
        %4227 = vmatpush1.msra.mxu0 0.0
        %4228 = vmatprep.subr.mxu0 0.0
        %4229 = vmatpush1.msra.mxu0 0.0
        %4230 = vmatprep.subr.mxu0 0.0
        %4231 = vmatpush1.msra.mxu0 0.0
        %4232 = vmatprep.subr.mxu0 0.0
        %4233 = vmatpush1.msra.mxu0 0.0
        %4234 = vmatprep.subr.mxu0 0.0
        %4235 = vmatpush1.msra.mxu0 0.0
        %4236 = vmatprep.subr.mxu0 0.0
        %4237 = vmatpush1.msra.mxu0 0.0
        %4238 = vmatprep.subr.mxu0 0.0
        %4239 = vmatpush1.msra.mxu0 0.0
        %4240 = vmatprep.subr.mxu0 0.0
        %4241 = vmatpush1.msra.mxu0 0.0
        %4242 = vmatprep.subr.mxu0 0.0
        %4243 = vmatpush1.msra.mxu0 0.0
        %4244 = vmatprep.subr.mxu0 0.0
        %4245 = vmatpush1.msra.mxu0 0.0
        %4246 = vmatprep.subr.mxu0 0.0
        %4247 = vmatpush1.msra.mxu0 0.0
        %4248 = vmatprep.subr.mxu0 0.0
        %4249 = vmatpush1.msra.mxu0 0.0
        %4250 = vmatprep.subr.mxu0 0.0
        %4251 = vmatpush1.msra.mxu0 0.0
        %4252 = vmatprep.subr.mxu0 0.0
        %4253 = vmatpush1.msra.mxu0 0.0
        %4254 = vmatprep.subr.mxu0 0.0
        %4255 = vmatpush1.msra.mxu0 0.0
        %4256 = vmatprep.subr.mxu0 0.0
        %4257 = vmatpush1.msra.mxu0 0.0
        %4258 = vmatprep.subr.mxu0 0.0
        %4259 = vmatpush1.msra.mxu0 0.0
        %4260 = vmatprep.subr.mxu0 0.0
        %4261 = vmatpush1.msra.mxu0 0.0
        %4262 = vmatprep.subr.mxu0 0.0
        %4263 = vmatpush1.msra.mxu0 0.0
        %4264 = vmatprep.subr.mxu0 0.0
        %4265 = vmatpush1.msra.mxu0 0.0
        %4266 = vmatprep.mubr.f32.mxu0 0.0
        %4267 = vmatmul.mubr.f32.gmra.mrb[0].mxu0 %v3866
        %v4268 = vpop.f32.mrb[0].mxu0
        %v4269 = vadd.f32 0.0, %v4268
        %v4270 = vpop.f32.mrb[0].mxu0
        %4271 = vmatprep.mubr.f32.mxu0 0.0
        %4272 = vmatmul.mubr.f32.gmra.mrb[0].mxu0 %v3868
        %v4273 = vpop.f32.mrb[0].mxu0
        %v4274 = vadd.f32 0.0, %v4273
        %v4275 = vpop.f32.mrb[0].mxu0
        %4276 = vmatprep.mubr.f32.mxu0 0.0
        %4277 = vmatmul.mubr.f32.gmra.mrb[0].mxu0 %v3870
        %v4278 = vpop.f32.mrb[0].mxu0
        %v4279 = vadd.f32 0.0, %v4278
        %v4280 = vpop.f32.mrb[0].mxu0
        %4281 = vmatprep.mubr.f32.mxu0 0.0
        %4282 = vmatmul.mubr.f32.gmra.mrb[0].mxu0 %v3872
        %v4283 = vpop.f32.mrb[0].mxu0
        %v4284 = vadd.f32 0.0, %v4283
        %v4285 = vpop.f32.mrb[0].mxu0
        %4286 = vmatprep.mubr.f32.mxu0 0.0
        %4287 = vmatmul.mubr.f32.gmra.mrb[0].mxu0 %v3874
        %v4288 = vpop.f32.mrb[0].mxu0
        %v4289 = vadd.f32 0.0, %v4288
        %v4290 = vpop.f32.mrb[0].mxu0
        %4291 = vmatprep.mubr.f32.mxu0 0.0
        %4292 = vmatmul.mubr.f32.gmra.mrb[0].mxu0 %v3876
        %v4293 = vpop.f32.mrb[0].mxu0
        %v4294 = vadd.f32 0.0, %v4293
        %v4295 = vpop.f32.mrb[0].mxu0
        %4296 = vmatprep.mubr.f32.mxu0 0.0
        %4297 = vmatmul.mubr.f32.gmra.mrb[0].mxu0 %v3878
        %v4298 = vpop.f32.mrb[0].mxu0
        %v4299 = vadd.f32 0.0, %v4298
        %v4300 = vpop.f32.mrb[0].mxu0
        %4301 = vmatprep.mubr.f32.mxu0 0.0
        %4302 = vmatmul.mubr.f32.gmra.mrb[0].mxu0 %v3880
        %v4303 = vpop.f32.mrb[0].mxu0
        %v4304 = vadd.f32 0.0, %v4303
        %v4305 = vpop.f32.mrb[0].mxu0
        %4306 = vmatprep.mubr.f32.mxu0 0.0
        %4307 = vmatmul.mubr.f32.gmra.mrb[0].mxu0 %v3882
        %v4308 = vpop.f32.mrb[0].mxu0
        %v4309 = vadd.f32 0.0, %v4308
        %v4310 = vpop.f32.mrb[0].mxu0
        %4311 = vmatprep.mubr.f32.mxu0 0.0
        %4312 = vmatmul.mubr.f32.gmra.mrb[0].mxu0 %v3884
        %v4313 = vpop.f32.mrb[0].mxu0
        %v4314 = vadd.f32 0.0, %v4313
        %v4315 = vpop.f32.mrb[0].mxu0
        %4316 = vmatprep.mubr.f32.mxu0 0.0
        %4317 = vmatmul.mubr.f32.gmra.mrb[0].mxu0 %v3886
        %v4318 = vpop.f32.mrb[0].mxu0
        %v4319 = vadd.f32 0.0, %v4318
        %v4320 = vpop.f32.mrb[0].mxu0
        %4321 = vmatprep.mubr.f32.mxu0 0.0
        %4322 = vmatmul.mubr.f32.gmra.mrb[0].mxu0 %v3888
        %v4323 = vpop.f32.mrb[0].mxu0
        %v4324 = vadd.f32 0.0, %v4323
        %v4325 = vpop.f32.mrb[0].mxu0
        %4326 = vmatprep.mubr.f32.mxu0 0.0
        %4327 = vmatmul.mubr.f32.gmra.mrb[0].mxu0 %v3890
        %v4328 = vpop.f32.mrb[0].mxu0
        %v4329 = vadd.f32 0.0, %v4328
        %v4330 = vpop.f32.mrb[0].mxu0
        %4331 = vmatprep.mubr.f32.mxu0 0.0
        %4332 = vmatmul.mubr.f32.gmra.mrb[0].mxu0 %v3892
        %v4333 = vpop.f32.mrb[0].mxu0
        %v4334 = vadd.f32 0.0, %v4333
        %v4335 = vpop.f32.mrb[0].mxu0
        %4336 = vmatprep.mubr.f32.mxu0 0.0
        %4337 = vmatmul.mubr.f32.gmra.mrb[0].mxu0 %v3894
        %v4338 = vpop.f32.mrb[0].mxu0
        %v4339 = vadd.f32 0.0, %v4338
        %v4340 = vpop.f32.mrb[0].mxu0
        %4341 = vmatprep.mubr.f32.mxu0 0.0
        %4342 = vmatmul.mubr.f32.gmra.mrb[0].mxu0 %v3896
        %v4343 = vpop.f32.mrb[0].mxu0
        %v4344 = vadd.f32 0.0, %v4343
        %v4345 = vpop.f32.mrb[0].mxu0
        %4346 = vmatprep.mubr.f32.mxu0 0.0
        %4347 = vmatmul.mubr.f32.gmra.mrb[0].mxu0 %v3898
        %v4348 = vpop.f32.mrb[0].mxu0
        %v4349 = vadd.f32 0.0, %v4348
        %v4350 = vpop.f32.mrb[0].mxu0
        %4351 = vmatprep.mubr.f32.mxu0 0.0
        %4352 = vmatmul.mubr.f32.gmra.mrb[0].mxu0 %v3900
        %v4353 = vpop.f32.mrb[0].mxu0
        %v4354 = vadd.f32 0.0, %v4353
        %v4355 = vpop.f32.mrb[0].mxu0
        %4356 = vmatprep.mubr.f32.mxu0 0.0
        %4357 = vmatmul.mubr.f32.gmra.mrb[0].mxu0 %v3902
        %v4358 = vpop.f32.mrb[0].mxu0
        %v4359 = vadd.f32 0.0, %v4358
        %v4360 = vpop.f32.mrb[0].mxu0
        %4361 = vmatprep.mubr.f32.mxu0 0.0
        %4362 = vmatmul.mubr.f32.gmra.mrb[0].mxu0 %v3904
        %v4363 = vpop.f32.mrb[0].mxu0
        %v4364 = vadd.f32 0.0, %v4363
        %v4365 = vpop.f32.mrb[0].mxu0
        %4366 = vmatprep.mubr.f32.mxu0 0.0
        %4367 = vmatmul.mubr.f32.gmra.mrb[0].mxu0 %v3906
        %v4368 = vpop.f32.mrb[0].mxu0
        %v4369 = vadd.f32 0.0, %v4368
        %v4370 = vpop.f32.mrb[0].mxu0
        %4371 = vmatprep.mubr.f32.mxu0 0.0
        %4372 = vmatmul.mubr.f32.gmra.mrb[0].mxu0 %v3908
        %v4373 = vpop.f32.mrb[0].mxu0
        %v4374 = vadd.f32 0.0, %v4373
        %v4375 = vpop.f32.mrb[0].mxu0
        %4376 = vmatprep.mubr.f32.mxu0 0.0
        %4377 = vmatmul.mubr.f32.gmra.mrb[0].mxu0 %v3910
        %v4378 = vpop.f32.mrb[0].mxu0
        %v4379 = vadd.f32 0.0, %v4378
        %v4380 = vpop.f32.mrb[0].mxu0
        %4381 = vmatprep.mubr.f32.mxu0 0.0
        %4382 = vmatmul.mubr.f32.gmra.mrb[0].mxu0 %v3912
        %v4383 = vpop.f32.mrb[0].mxu0
        %v4384 = vadd.f32 0.0, %v4383
        %v4385 = vpop.f32.mrb[0].mxu0
        %4386 = vmatprep.mubr.f32.mxu0 0.0
        %4387 = vmatmul.mubr.f32.gmra.mrb[0].mxu0 %v3914
        %v4388 = vpop.f32.mrb[0].mxu0
        %v4389 = vadd.f32 0.0, %v4388
        %v4390 = vpop.f32.mrb[0].mxu0
        %4391 = vmatprep.mubr.f32.mxu0 0.0
        %4392 = vmatmul.mubr.f32.gmra.mrb[0].mxu0 %v3916
        %v4393 = vpop.f32.mrb[0].mxu0
        %v4394 = vadd.f32 0.0, %v4393
        %v4395 = vpop.f32.mrb[0].mxu0
        %4396 = vmatprep.mubr.f32.mxu0 0.0
        %4397 = vmatmul.mubr.f32.gmra.mrb[0].mxu0 %v3918
        %v4398 = vpop.f32.mrb[0].mxu0
        %v4399 = vadd.f32 0.0, %v4398
        %v4400 = vpop.f32.mrb[0].mxu0
        %4401 = vmatprep.mubr.f32.mxu0 0.0
        %4402 = vmatmul.mubr.f32.gmra.mrb[0].mxu0 %v3920
        %v4403 = vpop.f32.mrb[0].mxu0
        %v4404 = vadd.f32 0.0, %v4403
        %v4405 = vpop.f32.mrb[0].mxu0
        %4406 = vmatprep.mubr.f32.mxu0 0.0
        %4407 = vmatmul.mubr.f32.gmra.mrb[0].mxu0 %v3922
        %v4408 = vpop.f32.mrb[0].mxu0
        %v4409 = vadd.f32 0.0, %v4408
        %v4410 = vpop.f32.mrb[0].mxu0
        %4411 = vmatprep.mubr.f32.mxu0 0.0
        %4412 = vmatmul.mubr.f32.gmra.mrb[0].mxu0 %v3924
        %v4413 = vpop.f32.mrb[0].mxu0
        %v4414 = vadd.f32 0.0, %v4413
        %v4415 = vpop.f32.mrb[0].mxu0
        %4416 = vmatprep.mubr.f32.mxu0 0.0
        %4417 = vmatmul.mubr.f32.gmra.mrb[0].mxu0 %v4198
        %v4418 = vpop.f32.mrb[0].mxu0
        %v4419 = vadd.f32 0.0, %v4418
        %v4420 = vpop.f32.mrb[0].mxu0
        %4421 = vmatprep.mubr.f32.mxu0 0.0
        %4422 = vmatmul.mubr.f32.gmra.mrb[0].mxu0 %v4200
        %v4423 = vpop.f32.mrb[0].mxu0
        %v4424 = vadd.f32 0.0, %v4423
        %v4425 = vpop.f32.mrb[0].mxu0
        %4426 = vdwg.mxu0
        %v4427 = vadd.f32 %v4151, %v4269
        %v4428 = vadd.f32 %v4152, %v4274
        %v4429 = vadd.f32 %v4153, %v4279
        %v4430 = vadd.f32 %v4154, %v4284
        %v4431 = vadd.f32 %v4155, %v4289
        %v4432 = vadd.f32 %v4156, %v4294
        %v4433 = vadd.f32 %v4157, %v4299
        %v4434 = vadd.f32 %v4158, %v4304
        %v4435 = vadd.f32 %v4159, %v4309
        %v4436 = vadd.f32 %v4160, %v4314
        %v4437 = vadd.f32 %v4161, %v4319
        %v4438 = vadd.f32 %v4162, %v4324
        %v4439 = vadd.f32 %v4163, %v4329
        %v4440 = vadd.f32 %v4164, %v4334
        %v4441 = vadd.f32 %v4165, %v4339
        %v4442 = vadd.f32 %v4166, %v4344
        %v4443 = vadd.f32 %v4167, %v4349
        %v4444 = vadd.f32 %v4168, %v4354
        %v4445 = vadd.f32 %v4169, %v4359
        %v4446 = vadd.f32 %v4170, %v4364
        %v4447 = vadd.f32 %v4171, %v4369
        %v4448 = vadd.f32 %v4172, %v4374
        %v4449 = vadd.f32 %v4173, %v4379
        %v4450 = vadd.f32 %v4174, %v4384
        %v4451 = vadd.f32 %v4175, %v4389
        %v4452 = vadd.f32 %v4176, %v4394
        %v4453 = vadd.f32 %v4177, %v4399
        %v4454 = vadd.f32 %v4178, %v4404
        %v4455 = vadd.f32 %v4179, %v4409
        %v4456 = vadd.f32 %v4180, %v4414
        %v4457 = vadd.f32 %v4181, %v4419
        %v4458 = vadd.f32 %v4182, %v4424
        %v4460 = vrot.slane %v1933, 1
        %v4461 = vrot.slane %v1934, 1
        %v4462 = vsel %vm3772, %v4460, %v4461
        %v4463 = vrot.slane %v1935, 1
        %v4464 = vsel %vm3772, %v4461, %v4463
        %s4465 = scalar_lea.vmem %s3, 512
        %v4466 = vld [vmem:[%s4465] sm:$0xff]
        %v4467 = vld [vmem:[%s4465 + $0x8] sm:$0xff]
        %v4468 = vld [vmem:[%s4465 + $0x10] sm:$0xff]
        %v4469 = vld [vmem:[%s4465 + $0x18] sm:$0xff]
        %v4470 = vld [vmem:[%s4465 + $0x20] sm:$0xff]
        %v4471 = vld [vmem:[%s4465 + $0x28] sm:$0xff]
        %v4472 = vld [vmem:[%s4465 + $0x30] sm:$0xff]
        %v4473 = vld [vmem:[%s4465 + $0x38] sm:$0xff]
        %v4474 = vsel %vm315, %v4462, 0
        %v4476 = vsel %vm315, %v4464, 0
        %4478 = vmatprep.subr.mxu0 0.0
        %4479 = vmatpush1.msra.mxu0 %v4466
        %4480 = vmatprep.subr.mxu0 0.0
        %4481 = vmatpush1.msra.mxu0 %v4467
        %4482 = vmatprep.subr.mxu0 0.0
        %4483 = vmatpush1.msra.mxu0 %v4468
        %4484 = vmatprep.subr.mxu0 0.0
        %4485 = vmatpush1.msra.mxu0 %v4469
        %4486 = vmatprep.subr.mxu0 0.0
        %4487 = vmatpush1.msra.mxu0 %v4470
        %4488 = vmatprep.subr.mxu0 0.0
        %4489 = vmatpush1.msra.mxu0 %v4471
        %4490 = vmatprep.subr.mxu0 0.0
        %4491 = vmatpush1.msra.mxu0 %v4472
        %4492 = vmatprep.subr.mxu0 0.0
        %4493 = vmatpush1.msra.mxu0 %v4473
        %4494 = vmatprep.subr.mxu0 0.0
        %4495 = vmatpush1.msra.mxu0 0.0
        %4496 = vmatprep.subr.mxu0 0.0
        %4497 = vmatpush1.msra.mxu0 0.0
        %4498 = vmatprep.subr.mxu0 0.0
        %4499 = vmatpush1.msra.mxu0 0.0
        %4500 = vmatprep.subr.mxu0 0.0
        %4501 = vmatpush1.msra.mxu0 0.0
        %4502 = vmatprep.subr.mxu0 0.0
        %4503 = vmatpush1.msra.mxu0 0.0
        %4504 = vmatprep.subr.mxu0 0.0
        %4505 = vmatpush1.msra.mxu0 0.0
        %4506 = vmatprep.subr.mxu0 0.0
        %4507 = vmatpush1.msra.mxu0 0.0
        %4508 = vmatprep.subr.mxu0 0.0
        %4509 = vmatpush1.msra.mxu0 0.0
        %4510 = vmatprep.subr.mxu0 0.0
        %4511 = vmatpush1.msra.mxu0 0.0
        %4512 = vmatprep.subr.mxu0 0.0
        %4513 = vmatpush1.msra.mxu0 0.0
        %4514 = vmatprep.subr.mxu0 0.0
        %4515 = vmatpush1.msra.mxu0 0.0
        %4516 = vmatprep.subr.mxu0 0.0
        %4517 = vmatpush1.msra.mxu0 0.0
        %4518 = vmatprep.subr.mxu0 0.0
        %4519 = vmatpush1.msra.mxu0 0.0
        %4520 = vmatprep.subr.mxu0 0.0
        %4521 = vmatpush1.msra.mxu0 0.0
        %4522 = vmatprep.subr.mxu0 0.0
        %4523 = vmatpush1.msra.mxu0 0.0
        %4524 = vmatprep.subr.mxu0 0.0
        %4525 = vmatpush1.msra.mxu0 0.0
        %4526 = vmatprep.subr.mxu0 0.0
        %4527 = vmatpush1.msra.mxu0 0.0
        %4528 = vmatprep.subr.mxu0 0.0
        %4529 = vmatpush1.msra.mxu0 0.0
        %4530 = vmatprep.subr.mxu0 0.0
        %4531 = vmatpush1.msra.mxu0 0.0
        %4532 = vmatprep.subr.mxu0 0.0
        %4533 = vmatpush1.msra.mxu0 0.0
        %4534 = vmatprep.subr.mxu0 0.0
        %4535 = vmatpush1.msra.mxu0 0.0
        %4536 = vmatprep.subr.mxu0 0.0
        %4537 = vmatpush1.msra.mxu0 0.0
        %4538 = vmatprep.subr.mxu0 0.0
        %4539 = vmatpush1.msra.mxu0 0.0
        %4540 = vmatprep.subr.mxu0 0.0
        %4541 = vmatpush1.msra.mxu0 0.0
        %4542 = vmatprep.mubr.f32.mxu0 0.0
        %4543 = vmatmul.mubr.f32.gmra.mrb[0].mxu0 %v3870
        %v4544 = vpop.f32.mrb[0].mxu0
        %v4545 = vadd.f32 0.0, %v4544
        %v4546 = vpop.f32.mrb[0].mxu0
        %4547 = vmatprep.mubr.f32.mxu0 0.0
        %4548 = vmatmul.mubr.f32.gmra.mrb[0].mxu0 %v3872
        %v4549 = vpop.f32.mrb[0].mxu0
        %v4550 = vadd.f32 0.0, %v4549
        %v4551 = vpop.f32.mrb[0].mxu0
        %4552 = vmatprep.mubr.f32.mxu0 0.0
        %4553 = vmatmul.mubr.f32.gmra.mrb[0].mxu0 %v3874
        %v4554 = vpop.f32.mrb[0].mxu0
        %v4555 = vadd.f32 0.0, %v4554
        %v4556 = vpop.f32.mrb[0].mxu0
        %4557 = vmatprep.mubr.f32.mxu0 0.0
        %4558 = vmatmul.mubr.f32.gmra.mrb[0].mxu0 %v3876
        %v4559 = vpop.f32.mrb[0].mxu0
        %v4560 = vadd.f32 0.0, %v4559
        %v4561 = vpop.f32.mrb[0].mxu0
        %4562 = vmatprep.mubr.f32.mxu0 0.0
        %4563 = vmatmul.mubr.f32.gmra.mrb[0].mxu0 %v3878
        %v4564 = vpop.f32.mrb[0].mxu0
        %v4565 = vadd.f32 0.0, %v4564
        %v4566 = vpop.f32.mrb[0].mxu0
        %4567 = vmatprep.mubr.f32.mxu0 0.0
        %4568 = vmatmul.mubr.f32.gmra.mrb[0].mxu0 %v3880
        %v4569 = vpop.f32.mrb[0].mxu0
        %v4570 = vadd.f32 0.0, %v4569
        %v4571 = vpop.f32.mrb[0].mxu0
        %4572 = vmatprep.mubr.f32.mxu0 0.0
        %4573 = vmatmul.mubr.f32.gmra.mrb[0].mxu0 %v3882
        %v4574 = vpop.f32.mrb[0].mxu0
        %v4575 = vadd.f32 0.0, %v4574
        %v4576 = vpop.f32.mrb[0].mxu0
        %4577 = vmatprep.mubr.f32.mxu0 0.0
        %4578 = vmatmul.mubr.f32.gmra.mrb[0].mxu0 %v3884
        %v4579 = vpop.f32.mrb[0].mxu0
        %v4580 = vadd.f32 0.0, %v4579
        %v4581 = vpop.f32.mrb[0].mxu0
        %4582 = vmatprep.mubr.f32.mxu0 0.0
        %4583 = vmatmul.mubr.f32.gmra.mrb[0].mxu0 %v3886
        %v4584 = vpop.f32.mrb[0].mxu0
        %v4585 = vadd.f32 0.0, %v4584
        %v4586 = vpop.f32.mrb[0].mxu0
        %4587 = vmatprep.mubr.f32.mxu0 0.0
        %4588 = vmatmul.mubr.f32.gmra.mrb[0].mxu0 %v3888
        %v4589 = vpop.f32.mrb[0].mxu0
        %v4590 = vadd.f32 0.0, %v4589
        %v4591 = vpop.f32.mrb[0].mxu0
        %4592 = vmatprep.mubr.f32.mxu0 0.0
        %4593 = vmatmul.mubr.f32.gmra.mrb[0].mxu0 %v3890
        %v4594 = vpop.f32.mrb[0].mxu0
        %v4595 = vadd.f32 0.0, %v4594
        %v4596 = vpop.f32.mrb[0].mxu0
        %4597 = vmatprep.mubr.f32.mxu0 0.0
        %4598 = vmatmul.mubr.f32.gmra.mrb[0].mxu0 %v3892
        %v4599 = vpop.f32.mrb[0].mxu0
        %v4600 = vadd.f32 0.0, %v4599
        %v4601 = vpop.f32.mrb[0].mxu0
        %4602 = vmatprep.mubr.f32.mxu0 0.0
        %4603 = vmatmul.mubr.f32.gmra.mrb[0].mxu0 %v3894
        %v4604 = vpop.f32.mrb[0].mxu0
        %v4605 = vadd.f32 0.0, %v4604
        %v4606 = vpop.f32.mrb[0].mxu0
        %4607 = vmatprep.mubr.f32.mxu0 0.0
        %4608 = vmatmul.mubr.f32.gmra.mrb[0].mxu0 %v3896
        %v4609 = vpop.f32.mrb[0].mxu0
        %v4610 = vadd.f32 0.0, %v4609
        %v4611 = vpop.f32.mrb[0].mxu0
        %4612 = vmatprep.mubr.f32.mxu0 0.0
        %4613 = vmatmul.mubr.f32.gmra.mrb[0].mxu0 %v3898
        %v4614 = vpop.f32.mrb[0].mxu0
        %v4615 = vadd.f32 0.0, %v4614
        %v4616 = vpop.f32.mrb[0].mxu0
        %4617 = vmatprep.mubr.f32.mxu0 0.0
        %4618 = vmatmul.mubr.f32.gmra.mrb[0].mxu0 %v3900
        %v4619 = vpop.f32.mrb[0].mxu0
        %v4620 = vadd.f32 0.0, %v4619
        %v4621 = vpop.f32.mrb[0].mxu0
        %4622 = vmatprep.mubr.f32.mxu0 0.0
        %4623 = vmatmul.mubr.f32.gmra.mrb[0].mxu0 %v3902
        %v4624 = vpop.f32.mrb[0].mxu0
        %v4625 = vadd.f32 0.0, %v4624
        %v4626 = vpop.f32.mrb[0].mxu0
        %4627 = vmatprep.mubr.f32.mxu0 0.0
        %4628 = vmatmul.mubr.f32.gmra.mrb[0].mxu0 %v3904
        %v4629 = vpop.f32.mrb[0].mxu0
        %v4630 = vadd.f32 0.0, %v4629
        %v4631 = vpop.f32.mrb[0].mxu0
        %4632 = vmatprep.mubr.f32.mxu0 0.0
        %4633 = vmatmul.mubr.f32.gmra.mrb[0].mxu0 %v3906
        %v4634 = vpop.f32.mrb[0].mxu0
        %v4635 = vadd.f32 0.0, %v4634
        %v4636 = vpop.f32.mrb[0].mxu0
        %4637 = vmatprep.mubr.f32.mxu0 0.0
        %4638 = vmatmul.mubr.f32.gmra.mrb[0].mxu0 %v3908
        %v4639 = vpop.f32.mrb[0].mxu0
        %v4640 = vadd.f32 0.0, %v4639
        %v4641 = vpop.f32.mrb[0].mxu0
        %4642 = vmatprep.mubr.f32.mxu0 0.0
        %4643 = vmatmul.mubr.f32.gmra.mrb[0].mxu0 %v3910
        %v4644 = vpop.f32.mrb[0].mxu0
        %v4645 = vadd.f32 0.0, %v4644
        %v4646 = vpop.f32.mrb[0].mxu0
        %4647 = vmatprep.mubr.f32.mxu0 0.0
        %4648 = vmatmul.mubr.f32.gmra.mrb[0].mxu0 %v3912
        %v4649 = vpop.f32.mrb[0].mxu0
        %v4650 = vadd.f32 0.0, %v4649
        %v4651 = vpop.f32.mrb[0].mxu0
        %4652 = vmatprep.mubr.f32.mxu0 0.0
        %4653 = vmatmul.mubr.f32.gmra.mrb[0].mxu0 %v3914
        %v4654 = vpop.f32.mrb[0].mxu0
        %v4655 = vadd.f32 0.0, %v4654
        %v4656 = vpop.f32.mrb[0].mxu0
        %4657 = vmatprep.mubr.f32.mxu0 0.0
        %4658 = vmatmul.mubr.f32.gmra.mrb[0].mxu0 %v3916
        %v4659 = vpop.f32.mrb[0].mxu0
        %v4660 = vadd.f32 0.0, %v4659
        %v4661 = vpop.f32.mrb[0].mxu0
        %4662 = vmatprep.mubr.f32.mxu0 0.0
        %4663 = vmatmul.mubr.f32.gmra.mrb[0].mxu0 %v3918
        %v4664 = vpop.f32.mrb[0].mxu0
        %v4665 = vadd.f32 0.0, %v4664
        %v4666 = vpop.f32.mrb[0].mxu0
        %4667 = vmatprep.mubr.f32.mxu0 0.0
        %4668 = vmatmul.mubr.f32.gmra.mrb[0].mxu0 %v3920
        %v4669 = vpop.f32.mrb[0].mxu0
        %v4670 = vadd.f32 0.0, %v4669
        %v4671 = vpop.f32.mrb[0].mxu0
        %4672 = vmatprep.mubr.f32.mxu0 0.0
        %4673 = vmatmul.mubr.f32.gmra.mrb[0].mxu0 %v3922
        %v4674 = vpop.f32.mrb[0].mxu0
        %v4675 = vadd.f32 0.0, %v4674
        %v4676 = vpop.f32.mrb[0].mxu0
        %4677 = vmatprep.mubr.f32.mxu0 0.0
        %4678 = vmatmul.mubr.f32.gmra.mrb[0].mxu0 %v3924
        %v4679 = vpop.f32.mrb[0].mxu0
        %v4680 = vadd.f32 0.0, %v4679
        %v4681 = vpop.f32.mrb[0].mxu0
        %4682 = vmatprep.mubr.f32.mxu0 0.0
        %4683 = vmatmul.mubr.f32.gmra.mrb[0].mxu0 %v4198
        %v4684 = vpop.f32.mrb[0].mxu0
        %v4685 = vadd.f32 0.0, %v4684
        %v4686 = vpop.f32.mrb[0].mxu0
        %4687 = vmatprep.mubr.f32.mxu0 0.0
        %4688 = vmatmul.mubr.f32.gmra.mrb[0].mxu0 %v4200
        %v4689 = vpop.f32.mrb[0].mxu0
        %v4690 = vadd.f32 0.0, %v4689
        %v4691 = vpop.f32.mrb[0].mxu0
        %4692 = vmatprep.mubr.f32.mxu0 0.0
        %4693 = vmatmul.mubr.f32.gmra.mrb[0].mxu0 %v4474
        %v4694 = vpop.f32.mrb[0].mxu0
        %v4695 = vadd.f32 0.0, %v4694
        %v4696 = vpop.f32.mrb[0].mxu0
        %4697 = vmatprep.mubr.f32.mxu0 0.0
        %4698 = vmatmul.mubr.f32.gmra.mrb[0].mxu0 %v4476
        %v4699 = vpop.f32.mrb[0].mxu0
        %v4700 = vadd.f32 0.0, %v4699
        %v4701 = vpop.f32.mrb[0].mxu0
        %4702 = vdwg.mxu0
        %v4703 = vadd.f32 %v4427, %v4545
        %v4704 = vadd.f32 %v4428, %v4550
        %v4705 = vadd.f32 %v4429, %v4555
        %v4706 = vadd.f32 %v4430, %v4560
        %v4707 = vadd.f32 %v4431, %v4565
        %v4708 = vadd.f32 %v4432, %v4570
        %v4709 = vadd.f32 %v4433, %v4575
        %v4710 = vadd.f32 %v4434, %v4580
        %v4711 = vadd.f32 %v4435, %v4585
        %v4712 = vadd.f32 %v4436, %v4590
        %v4713 = vadd.f32 %v4437, %v4595
        %v4714 = vadd.f32 %v4438, %v4600
        %v4715 = vadd.f32 %v4439, %v4605
        %v4716 = vadd.f32 %v4440, %v4610
        %v4717 = vadd.f32 %v4441, %v4615
        %v4718 = vadd.f32 %v4442, %v4620
        %v4719 = vadd.f32 %v4443, %v4625
        %v4720 = vadd.f32 %v4444, %v4630
        %v4721 = vadd.f32 %v4445, %v4635
        %v4722 = vadd.f32 %v4446, %v4640
        %v4723 = vadd.f32 %v4447, %v4645
        %v4724 = vadd.f32 %v4448, %v4650
        %v4725 = vadd.f32 %v4449, %v4655
        %v4726 = vadd.f32 %v4450, %v4660
        %v4727 = vadd.f32 %v4451, %v4665
        %v4728 = vadd.f32 %v4452, %v4670
        %v4729 = vadd.f32 %v4453, %v4675
        %v4730 = vadd.f32 %v4454, %v4680
        %v4731 = vadd.f32 %v4455, %v4685
        %v4732 = vadd.f32 %v4456, %v4690
        %v4733 = vadd.f32 %v4457, %v4695
        %v4734 = vadd.f32 %v4458, %v4700
        %v4735 = vld [vmem:[%s4] sm:$0x1]
        %v4737 = vlaneseq
        %v4738 = vshrl.u32 %v4737, 7
        %v4739 = vsub.s32 0, %v4738
        %v4740 = vrot.slane %v4735, %v4739
        %v4742 = vadd.f32 %v4703, %v4740
        %v4743 = vadd.f32 %v4704, %v4740
        %v4744 = vadd.f32 %v4705, %v4740
        %v4745 = vadd.f32 %v4706, %v4740
        %v4746 = vadd.f32 %v4707, %v4740
        %v4747 = vadd.f32 %v4708, %v4740
        %v4748 = vadd.f32 %v4709, %v4740
        %v4749 = vadd.f32 %v4710, %v4740
        %v4750 = vadd.f32 %v4711, %v4740
        %v4751 = vadd.f32 %v4712, %v4740
        %v4752 = vadd.f32 %v4713, %v4740
        %v4753 = vadd.f32 %v4714, %v4740
        %v4754 = vadd.f32 %v4715, %v4740
        %v4755 = vadd.f32 %v4716, %v4740
        %v4756 = vadd.f32 %v4717, %v4740
        %v4757 = vadd.f32 %v4718, %v4740
        %v4758 = vadd.f32 %v4719, %v4740
        %v4759 = vadd.f32 %v4720, %v4740
        %v4760 = vadd.f32 %v4721, %v4740
        %v4761 = vadd.f32 %v4722, %v4740
        %v4762 = vadd.f32 %v4723, %v4740
        %v4763 = vadd.f32 %v4724, %v4740
        %v4764 = vadd.f32 %v4725, %v4740
        %v4765 = vadd.f32 %v4726, %v4740
        %v4766 = vadd.f32 %v4727, %v4740
        %v4767 = vadd.f32 %v4728, %v4740
        %v4768 = vadd.f32 %v4729, %v4740
        %v4769 = vadd.f32 %v4730, %v4740
        %v4770 = vadd.f32 %v4731, %v4740
        %v4771 = vadd.f32 %v4732, %v4740
        %v4772 = vadd.f32 %v4733, %v4740
        %v4773 = vadd.f32 %v4734, %v4740
        %vm4774 = vcmp.ge.f32.partialorder %v4742, 0.0
        %vm4775 = vcmp.ge.f32.partialorder %v4743, 0.0
        %vm4776 = vcmp.ge.f32.partialorder %v4744, 0.0
        %vm4777 = vcmp.ge.f32.partialorder %v4745, 0.0
        %vm4778 = vcmp.ge.f32.partialorder %v4746, 0.0
        %vm4779 = vcmp.ge.f32.partialorder %v4747, 0.0
        %vm4780 = vcmp.ge.f32.partialorder %v4748, 0.0
        %vm4781 = vcmp.ge.f32.partialorder %v4749, 0.0
        %vm4782 = vcmp.ge.f32.partialorder %v4750, 0.0
        %vm4783 = vcmp.ge.f32.partialorder %v4751, 0.0
        %vm4784 = vcmp.ge.f32.partialorder %v4752, 0.0
        %vm4785 = vcmp.ge.f32.partialorder %v4753, 0.0
        %vm4786 = vcmp.ge.f32.partialorder %v4754, 0.0
        %vm4787 = vcmp.ge.f32.partialorder %v4755, 0.0
        %vm4788 = vcmp.ge.f32.partialorder %v4756, 0.0
        %vm4789 = vcmp.ge.f32.partialorder %v4757, 0.0
        %vm4790 = vcmp.ge.f32.partialorder %v4758, 0.0
        %vm4791 = vcmp.ge.f32.partialorder %v4759, 0.0
        %vm4792 = vcmp.ge.f32.partialorder %v4760, 0.0
        %vm4793 = vcmp.ge.f32.partialorder %v4761, 0.0
        %vm4794 = vcmp.ge.f32.partialorder %v4762, 0.0
        %vm4795 = vcmp.ge.f32.partialorder %v4763, 0.0
        %vm4796 = vcmp.ge.f32.partialorder %v4764, 0.0
        %vm4797 = vcmp.ge.f32.partialorder %v4765, 0.0
        %vm4798 = vcmp.ge.f32.partialorder %v4766, 0.0
        %vm4799 = vcmp.ge.f32.partialorder %v4767, 0.0
        %vm4800 = vcmp.ge.f32.partialorder %v4768, 0.0
        %vm4801 = vcmp.ge.f32.partialorder %v4769, 0.0
        %vm4802 = vcmp.ge.f32.partialorder %v4770, 0.0
        %vm4803 = vcmp.ge.f32.partialorder %v4771, 0.0
        %vm4804 = vcmp.ge.f32.partialorder %v4772, 0.0
        %vm4805 = vcmp.ge.f32.partialorder %v4773, 0.0
        %v4806 = vmul.f32 %v4742, 0.1
        %v4807 = vmul.f32 %v4743, 0.1
        %v4808 = vmul.f32 %v4744, 0.1
        %v4809 = vmul.f32 %v4745, 0.1
        %v4810 = vmul.f32 %v4746, 0.1
        %v4811 = vmul.f32 %v4747, 0.1
        %v4812 = vmul.f32 %v4748, 0.1
        %v4813 = vmul.f32 %v4749, 0.1
        %v4814 = vmul.f32 %v4750, 0.1
        %v4815 = vmul.f32 %v4751, 0.1
        %v4816 = vmul.f32 %v4752, 0.1
        %v4817 = vmul.f32 %v4753, 0.1
        %v4818 = vmul.f32 %v4754, 0.1
        %v4819 = vmul.f32 %v4755, 0.1
        %v4820 = vmul.f32 %v4756, 0.1
        %v4821 = vmul.f32 %v4757, 0.1
        %v4822 = vmul.f32 %v4758, 0.1
        %v4823 = vmul.f32 %v4759, 0.1
        %v4824 = vmul.f32 %v4760, 0.1
        %v4825 = vmul.f32 %v4761, 0.1
        %v4826 = vmul.f32 %v4762, 0.1
        %v4827 = vmul.f32 %v4763, 0.1
        %v4828 = vmul.f32 %v4764, 0.1
        %v4829 = vmul.f32 %v4765, 0.1
        %v4830 = vmul.f32 %v4766, 0.1
        %v4831 = vmul.f32 %v4767, 0.1
        %v4832 = vmul.f32 %v4768, 0.1
        %v4833 = vmul.f32 %v4769, 0.1
        %v4834 = vmul.f32 %v4770, 0.1
        %v4835 = vmul.f32 %v4771, 0.1
        %v4836 = vmul.f32 %v4772, 0.1
        %v4837 = vmul.f32 %v4773, 0.1
        %v4838 = vsel %vm4774, %v4742, %v4806
        %v4839 = vsel %vm4775, %v4743, %v4807
        %v4840 = vsel %vm4776, %v4744, %v4808
        %v4841 = vsel %vm4777, %v4745, %v4809
        %v4842 = vsel %vm4778, %v4746, %v4810
        %v4843 = vsel %vm4779, %v4747, %v4811
        %v4844 = vsel %vm4780, %v4748, %v4812
        %v4845 = vsel %vm4781, %v4749, %v4813
        %v4846 = vsel %vm4782, %v4750, %v4814
        %v4847 = vsel %vm4783, %v4751, %v4815
        %v4848 = vsel %vm4784, %v4752, %v4816
        %v4849 = vsel %vm4785, %v4753, %v4817
        %v4850 = vsel %vm4786, %v4754, %v4818
        %v4851 = vsel %vm4787, %v4755, %v4819
        %v4852 = vsel %vm4788, %v4756, %v4820
        %v4853 = vsel %vm4789, %v4757, %v4821
        %v4854 = vsel %vm4790, %v4758, %v4822
        %v4855 = vsel %vm4791, %v4759, %v4823
        %v4856 = vsel %vm4792, %v4760, %v4824
        %v4857 = vsel %vm4793, %v4761, %v4825
        %v4858 = vsel %vm4794, %v4762, %v4826
        %v4859 = vsel %vm4795, %v4763, %v4827
        %v4860 = vsel %vm4796, %v4764, %v4828
        %v4861 = vsel %vm4797, %v4765, %v4829
        %v4862 = vsel %vm4798, %v4766, %v4830
        %v4863 = vsel %vm4799, %v4767, %v4831
        %v4864 = vsel %vm4800, %v4768, %v4832
        %v4865 = vsel %vm4801, %v4769, %v4833
        %v4866 = vsel %vm4802, %v4770, %v4834
        %v4867 = vsel %vm4803, %v4771, %v4835
        %v4868 = vsel %vm4804, %v4772, %v4836
        %v4869 = vsel %vm4805, %v4773, %v4837
        %4870 = vst.msk [vmem:[%s232] sm:$0xff] %vm315, %v4838
        %4871 = vst.msk [vmem:[%s232 + $0x8] sm:$0xff] %vm315, %v4839
        %4872 = vst.msk [vmem:[%s232 + $0x10] sm:$0xff] %vm315, %v4840
        %4873 = vst.msk [vmem:[%s232 + $0x18] sm:$0xff] %vm315, %v4841
        %4874 = vst.msk [vmem:[%s232 + $0x20] sm:$0xff] %vm315, %v4842
        %4875 = vst.msk [vmem:[%s232 + $0x28] sm:$0xff] %vm315, %v4843
        %4876 = vst.msk [vmem:[%s232 + $0x30] sm:$0xff] %vm315, %v4844
        %4877 = vst.msk [vmem:[%s232 + $0x38] sm:$0xff] %vm315, %v4845
        %4878 = vst.msk [vmem:[%s232 + $0x40] sm:$0xff] %vm315, %v4846
        %4879 = vst.msk [vmem:[%s232 + $0x48] sm:$0xff] %vm315, %v4847
        %4880 = vst.msk [vmem:[%s232 + $0x50] sm:$0xff] %vm315, %v4848
        %4881 = vst.msk [vmem:[%s232 + $0x58] sm:$0xff] %vm315, %v4849
        %4882 = vst.msk [vmem:[%s232 + $0x60] sm:$0xff] %vm315, %v4850
        %4883 = vst.msk [vmem:[%s232 + $0x68] sm:$0xff] %vm315, %v4851
        %4884 = vst.msk [vmem:[%s232 + $0x70] sm:$0xff] %vm315, %v4852
        %4885 = vst.msk [vmem:[%s232 + $0x78] sm:$0xff] %vm315, %v4853
        %4886 = vst.msk [vmem:[%s232 + $0x80] sm:$0xff] %vm315, %v4854
        %4887 = vst.msk [vmem:[%s232 + $0x88] sm:$0xff] %vm315, %v4855
        %4888 = vst.msk [vmem:[%s232 + $0x90] sm:$0xff] %vm315, %v4856
        %4889 = vst.msk [vmem:[%s232 + $0x98] sm:$0xff] %vm315, %v4857
        %4890 = vst.msk [vmem:[%s232 + $0xa0] sm:$0xff] %vm315, %v4858
        %4891 = vst.msk [vmem:[%s232 + $0xa8] sm:$0xff] %vm315, %v4859
        %4892 = vst.msk [vmem:[%s232 + $0xb0] sm:$0xff] %vm315, %v4860
        %4893 = vst.msk [vmem:[%s232 + $0xb8] sm:$0xff] %vm315, %v4861
        %4894 = vst.msk [vmem:[%s232 + $0xc0] sm:$0xff] %vm315, %v4862
        %4895 = vst.msk [vmem:[%s232 + $0xc8] sm:$0xff] %vm315, %v4863
        %4896 = vst.msk [vmem:[%s232 + $0xd0] sm:$0xff] %vm315, %v4864
        %4897 = vst.msk [vmem:[%s232 + $0xd8] sm:$0xff] %vm315, %v4865
        %4898 = vst.msk [vmem:[%s232 + $0xe0] sm:$0xff] %vm315, %v4866
        %4899 = vst.msk [vmem:[%s232 + $0xe8] sm:$0xff] %vm315, %v4867
        %4900 = vst.msk [vmem:[%s232 + $0xf0] sm:$0xff] %vm315, %v4868
        %4901 = vst.msk [vmem:[%s232 + $0xf8] sm:$0xff] %vm315, %v4869
        %s4902 = sand.u32 %s142, 1
        %s4903 = scalar_lea.sflag [#allocation4], %s4902
        %s4904 = sand.u32 %s142, 1
        %s4905 = smul.addr %s4904, 256
        %s4906 = scalar_lea.vmem [#allocation3], %s4905
        // Predicated region
        $region41: #{correlation_forward.1} parent=39 // pred_check
          %p4907 = pneg %p152
        $region42: #{correlation_forward.1} parent=39 // pred_check_branch
          %4909 = sbr.rel (%p4907) target = $region44
        $region43: #{correlation_forward.1} parent=39 // pred_region
          %s4911 = ssub.s32 4096, 4096
          %4912 = vsyncadd %s4903, %s4911
          %s4913 = smul.addr %s19, 32
          %s4914 = smul.addr %s4913, 128
          %s4915 = scalar_lea.hbm %s5, %s4914
          %s4916 = sshll.u32 %s4906, 4
          %s4917 = int_to_ptr.vmem [resolvable:$true] %s4916
          %4922 = dma.vmem_to_hbm [thread:$0]  %s4917, 4096, %s4915, %s4903, 128, 128, 8
        $region44: #{correlation_forward.1} parent=39 // pred_fallthru
          _
      $region40: #{correlation_forward.1} parent=5 // pred_fallthru
        _
      %p4923 = scmp.le.s32.totalorder 2, %s14
      // Predicated region
      $region45: #{correlation_forward.1} parent=5 // pred_check
        %p4924 = pneg %p4923
      $region46: #{correlation_forward.1} parent=5 // pred_check_branch
        %4926 = sbr.rel (%p4924) target = $region48
      $region47: #{correlation_forward.1} parent=5 // pred_region
        %s4927 = ssub.s32 %s14, 2
        // Predicated region
        $region49: #{correlation_forward.1} parent=47 // pred_check
          %p4928 = pneg %p158
        $region50: #{correlation_forward.1} parent=47 // pred_check_branch
          %4930 = sbr.rel (%p4928) target = $region52
        $region51: #{correlation_forward.1} parent=47 // pred_region
          %s4931 = sand.u32 %s143, 1
          %s4932 = scalar_lea.sflag [#allocation4], %s4931
          %s4933 = sand.u32 %s143, 1
          %s4934 = smul.addr %s4933, 256
          %s4935 = scalar_lea.vmem [#allocation3], %s4934
          %4936 = dma.done %s4932, 4096
        $region52: #{correlation_forward.1} parent=47 // pred_fallthru
          _
      $region48: #{correlation_forward.1} parent=5 // pred_fallthru
        _
    $region6: #{correlation_forward.1} parent=1 // loop_footer
      %s18 = sadd.s32 1, %s14
    $region7: #{correlation_forward.1} parent=1 // loop_footer_branch
      %13 = sbr.rel target = $region3
    $region8: #{correlation_forward.1} parent=1 // loop_exit
      _
    %4937 = vsyncpa [#allocation4], 1
    %s4938 = scalar_lea.sflag [#allocation4], 1
    %4939 = vsyncpa %s4938, 1

</llo_original>
